<compile_context>
chip_gen: v7x
topology: tpu7x:2x2x1
jax: 0.10.0
libtpu: 0.0.40
codegen_flags: <defaults>
</compile_context>

<pallas_src>
import functools

import numpy as np
import jax
import jax.numpy as jnp
from jax.experimental import pallas as pl
from jax.experimental.pallas import tpu as pltpu


# ----------------------------------------------------------------------------
# small helpers
# ----------------------------------------------------------------------------
def _mish(y):
    # mish(y) = y * tanh(softplus(y)) = y * ((1+e^y)^2 - 1) / ((1+e^y)^2 + 1)
    e = jnp.exp(jnp.minimum(y, 20.0))
    t = (1.0 + e) * (1.0 + e)
    return y * (t - 1.0) / (t + 1.0)


def _col_tile(hw, cap=4096):
    # largest HW tile (multiple of 128 when splitting) for Kernel B column tiling
    if hw <= cap:
        return hw
    for t in range(cap, 127, -1):
        if hw % t == 0 and t % 128 == 0:
            return t
    return hw


def _bilinear_matrix(in_size, out_size):
    # F.interpolate(mode='bilinear', align_corners=False)
    L = np.zeros((out_size, in_size), np.float32)
    if in_size == 1:
        L[:, 0] = 1.0
        return L
    scale = in_size / out_size
    for i in range(out_size):
        src = (i + 0.5) * scale - 0.5
        src = min(max(src, 0.0), in_size - 1)
        lo = int(np.floor(src))
        hi = min(lo + 1, in_size - 1)
        frac = src - lo
        L[i, lo] += 1.0 - frac
        L[i, hi] += frac
    return L


def _pool_starts(in_size, out_size, pool=2):
    s = []
    if out_size > 1:
        alpha = (in_size - pool) / (out_size - 1)
        s = [int(i * alpha) for i in range(out_size - 1)]
    s.append(in_size - pool)
    return s


def _pool_col_select(W, out_h, out_w):
    # 0/1 matrix picking the column starts of the 2x2 windows from the row-selected,
    # column-pairwise-maxed array; applied as (C, out_h*W-1) @ M^T (lane-dense output).
    ws = _pool_starts(W, out_w)
    M = np.zeros((out_h * out_w, out_h * W - 1), np.float32)
    for oh in range(out_h):
        for ow, w0 in enumerate(ws):
            M[oh * out_w + ow, oh * W + w0] = 1.0
    return M


# ----------------------------------------------------------------------------
# parameter construction (matches module __init__ shapes) and packing
# ----------------------------------------------------------------------------
def init_params(key, in_ch, out_ch, num_kernels, trans_ch, groups, prev_ch):
    keys = iter(jax.random.split(key, 256))

    def nrm(shape, scale=0.1):
        return (scale * jax.random.normal(next(keys), shape)).astype(jnp.float32)

    params = {"compress_prev_w": nrm((trans_ch, in_ch))}
    ranges = [round(out_ch * i / groups) for i in range(groups + 1)]
    in_per_sub = in_ch // groups
    gps = []
    for g in range(groups):
        c1 = in_per_sub
        c2 = ranges[g + 1] - ranges[g]
        k = num_kernels
        opk = round((c1 ** 0.5 * (c1 * k ** 2 + 36 * c2) ** 0.5 - c1 * k) / (2 * k))
        kernels = []
        for j in range(1, k + 1):
            ks = 2 * j + 1
            kernels.append(dict(
                w1=nrm((opk, c1, ks)), b1=nrm((opk,)),
                w2=nrm((opk, opk, ks)), b2=nrm((opk,)),
                bn_g=jnp.ones((opk,), jnp.float32), bn_b=jnp.zeros((opk,), jnp.float32)))
        sub = dict(
            kernels=kernels,
            compress_w=nrm((c2, opk * k + trans_ch)),
            final_g=jnp.ones((c2,), jnp.float32),
            final_b=jnp.zeros((c2,), jnp.float32))
        gps.append(dict(inp_w=nrm((in_per_sub, in_ch + prev_ch)), sub=sub))
    params["groups"] = gps
    return params


def _u_offsets(opks, num_k):
    offs, off = [], 0
    for opk in opks:
        goffs = []
        for _ in range(num_k):
            goffs.append(off)
            off += opk
        offs.append(goffs)
    return offs, off


def pack_params(params, in_ch, prev_ch, trans_ch, num_kernels, out_ch):
    """Pack per-branch / per-group weights into fused, tap-flattened block matrices."""
    groups = params["groups"]
    f32, bf16 = jnp.float32, jnp.bfloat16
    c1s = [int(g["inp_w"].shape[0]) for g in groups]
    opks = [int(g["sub"]["kernels"][0]["w1"].shape[0]) for g in groups]
    c2s = [int(g["sub"]["compress_w"].shape[0]) for g in groups]
    assert sum(c2s) == out_ch
    C1sum = sum(c1s)
    uoffs, Usum = _u_offsets(opks, num_kernels)
    ks_max = 2 * num_kernels + 1
    p_max = num_kernels

    # fused 1x1 input convs; output rows = [group encoder inputs ... | x_compressed],
    # split by source (x vs prev_layers) so the wrapper never concatenates in HBM.
    wcp = params["compress_prev_w"].astype(f32)                       # x only
    W_x = jnp.concatenate([g["inp_w"].astype(f32)[:, :in_ch] for g in groups]
                          + [wcp], axis=0)                            # (ct, in_ch)
    W_p = jnp.concatenate([g["inp_w"].astype(f32)[:, in_ch:] for g in groups]
                          + [jnp.zeros((trans_ch, prev_ch), f32)], axis=0)

    # tap-fused separable conv weights (single deep-K GEMM per direction).
    # W1 (Usum, ks_max*C1sum): column block d holds tap-d weights, block-structured
    # across groups/branches; W2 (Usum, ks_max*Usum) is block-diagonal per branch.
    W1 = np.zeros((Usum, ks_max * C1sum), np.float32)
    W2 = np.zeros((Usum, ks_max * Usum), np.float32)
    r1 = 0
    for gi, g in enumerate(groups):
        c1, opk = c1s[gi], opks[gi]
        for j, kb in enumerate(g["sub"]["kernels"]):
            ks = int(kb["w1"].shape[2])
            pj = ks // 2
            uo = uoffs[gi][j]
            w1 = np.asarray(kb["w1"], np.float32)                     # (opk, c1, ks)
            w2 = np.asarray(kb["w2"], np.float32)                     # (opk, opk, ks)
            for t in range(ks):
                d = t + (p_max - pj)
                W1[uo:uo + opk, d * C1sum + r1: d * C1sum + r1 + c1] = w1[:, :, t]
                W2[uo:uo + opk, d * Usum + uo: d * Usum + uo + opk] = w2[:, :, t]
        r1 += c1

    def cat_branches(name):
        return jnp.concatenate([kb[name].astype(f32)
                                for g in groups for kb in g["sub"]["kernels"]], axis=0)

    b1 = cat_branches("b1")
    b2 = cat_branches("b2")
    bn1_g = cat_branches("bn_g")
    bn1_b = cat_branches("bn_b")

    # fused compress 1x1 conv: rows = output channels (group order), cols = [Usum | trans]
    Wc = np.zeros((out_ch, Usum + trans_ch), np.float32)
    co = 0
    for gi, g in enumerate(groups):
        c2, opk = c2s[gi], opks[gi]
        cw = np.asarray(g["sub"]["compress_w"], np.float32)           # (c2, opk*k + trans)
        u0 = uoffs[gi][0]
        usz = opk * num_kernels
        Wc[co:co + c2, u0:u0 + usz] = cw[:, :usz]
        Wc[co:co + c2, Usum:] = cw[:, usz:]
        co += c2
    bn2_g = jnp.concatenate([g["sub"]["final_g"] for g in groups])
    bn2_b = jnp.concatenate([g["sub"]["final_b"] for g in groups])

    weights = dict(
        W_x=W_x.astype(bf16), W_p=W_p.astype(bf16),
        W1=jnp.asarray(W1, dtype=bf16), b1=b1.reshape(-1, 1),
        W2=jnp.asarray(W2, dtype=bf16), b2=b2.reshape(-1, 1),
        bn1_g=bn1_g, bn1_b=bn1_b,
        Wc=jnp.asarray(Wc, dtype=bf16),
        bn2_g=bn2_g, bn2_b=bn2_b)
    meta = dict(ks_max=ks_max, p_max=p_max, C1sum=C1sum, Usum=Usum,
                trans=trans_ch, out_ch=out_ch)
    return weights, meta


# ----------------------------------------------------------------------------
# fused forward pass
# ----------------------------------------------------------------------------
def encoder_layer_grouped_forward(weights, x, prev_layers, meta, out_h, out_w):
    p_max, ks_max = meta["p_max"], meta["ks_max"]
    trans, C1sum, Usum, out_ch = meta["trans"], meta["C1sum"], meta["Usum"], meta["out_ch"]
    N, in_ch, H, W = x.shape
    prev_ch = prev_layers.shape[1]
    HW = H * W
    rows = N * HW
    ct = C1sum + trans
    ci = trans + prev_ch
    oo = out_h * out_w
    f32, bf16 = jnp.float32, jnp.bfloat16

    cp1 = pltpu.CompilerParams(dimension_semantics=("parallel",))
    cp2 = pltpu.CompilerParams(dimension_semantics=("parallel", "parallel"))

    # module boundary: NCHW is already channel-major / HW-minor -> free reshape only.
    x2 = x.reshape(N, in_ch, HW).astype(f32)
    prev2 = prev_layers.reshape(N, prev_ch, HW).astype(f32)

    # ---------------- Kernel A: 1x1 input convs + tap-fused separable convs -------------
    def kernel_a(x_ref, p_ref, wx_ref, wp_ref, w1_ref, b1_ref, w2_ref, b2_ref,
                 v_ref, xc_ref, st_ref):
        xb = x_ref[0].astype(bf16)                                    # (in_ch, HW)
        pb = p_ref[0].astype(bf16)                                    # (prev_ch, HW)
        # fused 1x1 input convs of all groups + compress_prev, no padded rows
        z = (jnp.dot(wx_ref[...], xb, preferred_element_type=f32)
             + jnp.dot(wp_ref[...], pb, preferred_element_type=f32))  # (ct, HW)
        enc = z[:C1sum]                                               # (C1sum, HW)
        xc_ref[0] = z[C1sum:]                                         # (trans, HW)

        # (k,1) conv along H: zero-pad H rows in VMEM (flat lanes), stack tap-shifted
        # slices and contract in ONE deep-K GEMM (K = ks_max*C1sum).
        zrow = jnp.zeros((C1sum, p_max * W), f32)
        encp = jnp.concatenate([zrow, enc, zrow], axis=1)             # (C1sum, (H+2p)*W)
        sh = jnp.concatenate(
            [encp[:, d * W: d * W + HW] for d in range(ks_max)], axis=0)
        u = jnp.dot(w1_ref[...], sh.astype(bf16),
                    preferred_element_type=f32) + b1_ref[...]         # (Usum, HW)

        # (1,k) conv along W: flat lane shifts + static per-tap validity masks,
        # ONE deep-K GEMM (K = ks_max*Usum).
        zcol = jnp.zeros((Usum, p_max), f32)
        upf = jnp.concatenate([zcol, u, zcol], axis=1)                # (Usum, HW + 2p)
        widx = jax.lax.broadcasted_iota(jnp.int32, (1, HW), 1) % W
        taps = []
        for d in range(ks_max):
            o = d - p_max
            sl = upf[:, p_max + o: p_max + o + HW]
            valid = jnp.logical_and(widx + o >= 0, widx + o < W)
            taps.append(jnp.where(valid, sl, 0.0))
        sw = jnp.concatenate(taps, axis=0)                            # (ks_max*Usum, HW)
        v = jnp.dot(w2_ref[...], sw.astype(bf16),
                    preferred_element_type=f32) + b2_ref[...]         # (Usum, HW)

        v_ref[0] = v.astype(bf16)
        # per-image BN1 partial sums / sumsqs (f32, computed before the bf16 down-cast)
        st_ref[0] = jnp.sum(jnp.concatenate([v, v * v], axis=0), axis=1, keepdims=True)

    U, xcomp, st1 = pl.pallas_call(
        kernel_a,
        out_shape=(jax.ShapeDtypeStruct((N, Usum, HW), bf16),
                   jax.ShapeDtypeStruct((N, trans, HW), f32),
                   jax.ShapeDtypeStruct((N, 2 * Usum, 1), f32)),
        grid=(N,),
        in_specs=[
            pl.BlockSpec((1, in_ch, HW), lambda n: (n, 0, 0)),
            pl.BlockSpec((1, prev_ch, HW), lambda n: (n, 0, 0)),
            pl.BlockSpec((ct, in_ch), lambda n: (0, 0)),
            pl.BlockSpec((ct, prev_ch), lambda n: (0, 0)),
            pl.BlockSpec((Usum, ks_max * C1sum), lambda n: (0, 0)),
            pl.BlockSpec((Usum, 1), lambda n: (0, 0)),
            pl.BlockSpec((Usum, ks_max * Usum), lambda n: (0, 0)),
            pl.BlockSpec((Usum, 1), lambda n: (0, 0)),
        ],
        out_specs=(pl.BlockSpec((1, Usum, HW), lambda n: (n, 0, 0)),
                   pl.BlockSpec((1, trans, HW), lambda n: (n, 0, 0)),
                   pl.BlockSpec((1, 2 * Usum, 1), lambda n: (n, 0, 0))),
        compiler_params=cp1,
    )(x2, prev2, weights["W_x"], weights["W_p"], weights["W1"], weights["b1"],
      weights["W2"], weights["b2"])

    # BN1 batch statistics (training-mode, biased variance)
    s1 = jnp.sum(st1, axis=0)[:, 0]
    mean1 = s1[:Usum] / rows
    var1 = jnp.maximum(s1[Usum:] / rows - mean1 * mean1, 0.0)
    scale1 = weights["bn1_g"] * jax.lax.rsqrt(var1 + 1e-5)
    shift1 = weights["bn1_b"] - mean1 * scale1

    # ---------------- Kernel B: BN1 + Mish + fused compress GEMM + BN2 stats ------------
    tl = _col_tile(HW)
    nct = HW // tl

    def kernel_b(u_ref, xc_ref, sc_ref, sh_ref, wc_ref, comp_ref, st_ref):
        a = _mish(u_ref[0].astype(f32) * sc_ref[...] + sh_ref[...])   # (Usum, tl)
        acat = jnp.concatenate([a, xc_ref[0]], axis=0).astype(bf16)   # (Usum+trans, tl)
        comp = jnp.dot(wc_ref[...], acat, preferred_element_type=f32) # (out_ch, tl)
        comp_ref[0] = comp.astype(bf16)
        st_ref[0, 0] = jnp.sum(jnp.concatenate([comp, comp * comp], axis=0),
                               axis=1, keepdims=True)

    comp, st2 = pl.pallas_call(
        kernel_b,
        out_shape=(jax.ShapeDtypeStruct((N, out_ch, HW), bf16),
                   jax.ShapeDtypeStruct((N, nct, 2 * out_ch, 1), f32)),
        grid=(N, nct),
        in_specs=[
            pl.BlockSpec((1, Usum, tl), lambda n, c: (n, 0, c)),
            pl.BlockSpec((1, trans, tl), lambda n, c: (n, 0, c)),
            pl.BlockSpec((Usum, 1), lambda n, c: (0, 0)),
            pl.BlockSpec((Usum, 1), lambda n, c: (0, 0)),
            pl.BlockSpec((out_ch, Usum + trans), lambda n, c: (0, 0)),
        ],
        out_specs=(pl.BlockSpec((1, out_ch, tl), lambda n, c: (n, 0, c)),
                   pl.BlockSpec((1, 1, 2 * out_ch, 1), lambda n, c: (n, c, 0, 0))),
        compiler_params=cp2,
    )(U, xcomp, scale1.reshape(-1, 1), shift1.reshape(-1, 1), weights["Wc"])

    s2 = jnp.sum(st2, axis=(0, 1))[:, 0]
    mean2 = s2[:out_ch] / rows
    var2 = jnp.maximum(s2[out_ch:] / rows - mean2 * mean2, 0.0)
    scale2 = weights["bn2_g"] * jax.lax.rsqrt(var2 + 1e-5)
    shift2 = weights["bn2_b"] - mean2 * scale2

    # ---------------- Kernel C: BN2 + Mish + frac max pool + bilinear downsample --------
    hs = _pool_starts(H, out_h)                                       # compile-time ints
    SWt = jnp.asarray(_pool_col_select(W, out_h, out_w).T, dtype=bf16)  # (out_h*W-1, oo)
    Bt = jnp.asarray(
        np.kron(_bilinear_matrix(H, out_h), _bilinear_matrix(W, out_w)).T, dtype=bf16)

    def kernel_c(comp_ref, xc_ref, p_ref, sc_ref, sh_ref, swt_ref, bt_ref,
                 act_ref, ina_ref):
        y = _mish(comp_ref[0].astype(f32) * sc_ref[...] + sh_ref[...])  # (out_ch, HW)
        # 2x2 fractional max pool: pairwise maxes via flat lane shifts; row selection
        # via static lane slices; column selection via a small 0/1 bf16 matmul.
        pmh = jnp.maximum(y[:, :HW - W], y[:, W:])                      # (C, (H-1)*W)
        t = jnp.concatenate([pmh[:, h0 * W: h0 * W + W] for h0 in hs], axis=1)
        pmw = jnp.maximum(t[:, :out_h * W - 1], t[:, 1:])               # (C, out_h*W-1)
        act_ref[0] = jnp.dot(pmw.astype(bf16), swt_ref[...],
                             preferred_element_type=f32)                # (C, oo)
        # bilinear downsample of the inactive path: in-VMEM channel concat + one matmul
        inact = jnp.concatenate([xc_ref[0], p_ref[0]], axis=0)          # (ci, HW)
        ina_ref[0] = jnp.dot(inact.astype(bf16), bt_ref[...],
                             preferred_element_type=f32)                # (ci, oo)

    act, ina = pl.pallas_call(
        kernel_c,
        out_shape=(jax.ShapeDtypeStruct((N, out_ch, oo), f32),
                   jax.ShapeDtypeStruct((N, ci, oo), f32)),
        grid=(N,),
        in_specs=[
            pl.BlockSpec((1, out_ch, HW), lambda n: (n, 0, 0)),
            pl.BlockSpec((1, trans, HW), lambda n: (n, 0, 0)),
            pl.BlockSpec((1, prev_ch, HW), lambda n: (n, 0, 0)),
            pl.BlockSpec((out_ch, 1), lambda n: (0, 0)),
            pl.BlockSpec((out_ch, 1), lambda n: (0, 0)),
            pl.BlockSpec((out_h * W - 1, oo), lambda n: (0, 0)),
            pl.BlockSpec((HW, oo), lambda n: (0, 0)),
        ],
        out_specs=(pl.BlockSpec((1, out_ch, oo), lambda n: (n, 0, 0)),
                   pl.BlockSpec((1, ci, oo), lambda n: (n, 0, 0))),
        compiler_params=cp1,
    )(comp, xcomp, prev2, scale2.reshape(-1, 1), shift2.reshape(-1, 1), SWt, Bt)

    down_active = act.reshape(N, out_ch, out_h, out_w)
    down_inactive = ina.reshape(N, ci, out_h, out_w)
    return down_active, down_inactive


# ----------------------------------------------------------------------------
if __name__ == "__main__":
    IN_CH, OUT_CH, NUM_K, TRANS_CH, GROUPS, PREV_CH = 8, 8, 2, 4, 2, 4
    N, H, W = 2, 16, 16
    OUT_H, OUT_W = 8, 8          # via set_size(8, 8); down_sample_ratio left at -1

    key = jax.random.PRNGKey(0)
    k_x, k_prev, k_par = jax.random.split(key, 3)
    x = jax.random.normal(k_x, (N, IN_CH, H, W), jnp.float32)
    prev_layers = jax.random.normal(k_prev, (N, PREV_CH, H, W), jnp.float32)

    params = init_params(k_par, IN_CH, OUT_CH, NUM_K, TRANS_CH, GROUPS, PREV_CH)
    weights, meta = pack_params(params, IN_CH, PREV_CH, TRANS_CH, NUM_K, OUT_CH)

    fwd = jax.jit(functools.partial(encoder_layer_grouped_forward,
                                    meta=meta, out_h=OUT_H, out_w=OUT_W))
    down_active, down_inactive = jax.block_until_ready(fwd(weights, x, prev_layers))

    assert down_active.shape == (N, OUT_CH, OUT_H, OUT_W)
    assert down_inactive.shape == (N, TRANS_CH + PREV_CH, OUT_H, OUT_W)
    assert bool(jnp.all(jnp.isfinite(down_active)))
    assert bool(jnp.all(jnp.isfinite(down_inactive)))
    print("KERNEL_OK")
</pallas_src>

<mosaic_0001>
module attributes {stable_mosaic.version = 11 : i64} {
  func.func @kernel_b(%arg0: i32, %arg1: i32, %arg2: memref<1x16x256xbf16, #tpu.memory_space<vmem>>, %arg3: memref<1x4x256xf32, #tpu.memory_space<vmem>>, %arg4: memref<16x1xf32, #tpu.memory_space<vmem>>, %arg5: memref<16x1xf32, #tpu.memory_space<vmem>>, %arg6: memref<8x20xbf16, #tpu.memory_space<vmem>>, %arg7: memref<1x8x256xbf16, #tpu.memory_space<vmem>>, %arg8: memref<1x1x16x1xf32, #tpu.memory_space<vmem>>) attributes {dimension_semantics = [#tpu.dimension_semantics<parallel>, #tpu.dimension_semantics<parallel>], iteration_bounds = array<i64: 2, 1>, scalar_prefetch = 0 : i64, scratch_operands = 0 : i64, tpu.core_type = #tpu.core_type<tc>, window_params = [{transform_indices = @transform_0, window_bounds = array<i64: 1, 16, 256>}, {transform_indices = @transform_1, window_bounds = array<i64: 1, 4, 256>}, {pipeline_mode = #tpu.pipeline_mode<synchronous>, transform_indices = @transform_2, window_bounds = array<i64: 16, 1>}, {pipeline_mode = #tpu.pipeline_mode<synchronous>, transform_indices = @transform_3, window_bounds = array<i64: 16, 1>}, {pipeline_mode = #tpu.pipeline_mode<synchronous>, transform_indices = @transform_4, window_bounds = array<i64: 8, 20>}, {transform_indices = @transform_5, window_bounds = array<i64: 1, 8, 256>}, {transform_indices = @transform_6, window_bounds = array<i64: 1, 1, 16, 1>}]} {
    %c0 = arith.constant 0 : index
    %c0_0 = arith.constant 0 : index
    %c0_1 = arith.constant 0 : index
    %0 = vector.load %arg2[%c0, %c0_0, %c0_1] : memref<1x16x256xbf16, #tpu.memory_space<vmem>>, vector<1x16x256xbf16>
    %1 = vector.shape_cast %0 : vector<1x16x256xbf16> to vector<16x256xbf16>
    %2 = arith.extf %1 : vector<16x256xbf16> to vector<16x256xf32>
    %c0_2 = arith.constant 0 : index
    %c0_3 = arith.constant 0 : index
    %3 = vector.load %arg4[%c0_2, %c0_3] : memref<16x1xf32, #tpu.memory_space<vmem>>, vector<16x1xf32>
    %4 = vector.broadcast %3 : vector<16x1xf32> to vector<16x256xf32>
    %5 = arith.mulf %2, %4 : vector<16x256xf32>
    %c0_4 = arith.constant 0 : index
    %c0_5 = arith.constant 0 : index
    %6 = vector.load %arg5[%c0_4, %c0_5] : memref<16x1xf32, #tpu.memory_space<vmem>>, vector<16x1xf32>
    %7 = vector.broadcast %6 : vector<16x1xf32> to vector<16x256xf32>
    %8 = arith.addf %5, %7 : vector<16x256xf32>
    %cst = arith.constant 2.000000e+01 : f32
    %9 = vector.broadcast %cst : f32 to vector<16x256xf32>
    %10 = arith.minimumf %8, %9 : vector<16x256xf32>
    %11 = math.exp %10 : vector<16x256xf32>
    %cst_6 = arith.constant 1.000000e+00 : f32
    %12 = vector.broadcast %cst_6 : f32 to vector<16x256xf32>
    %13 = arith.addf %12, %11 : vector<16x256xf32>
    %cst_7 = arith.constant 1.000000e+00 : f32
    %14 = vector.broadcast %cst_7 : f32 to vector<16x256xf32>
    %15 = arith.addf %14, %11 : vector<16x256xf32>
    %16 = arith.mulf %13, %15 : vector<16x256xf32>
    %cst_8 = arith.constant 1.000000e+00 : f32
    %17 = vector.broadcast %cst_8 : f32 to vector<16x256xf32>
    %18 = arith.subf %16, %17 : vector<16x256xf32>
    %19 = arith.mulf %8, %18 : vector<16x256xf32>
    %cst_9 = arith.constant 1.000000e+00 : f32
    %20 = vector.broadcast %cst_9 : f32 to vector<16x256xf32>
    %21 = arith.addf %16, %20 : vector<16x256xf32>
    %22 = arith.divf %19, %21 : vector<16x256xf32>
    %c0_10 = arith.constant 0 : index
    %c0_11 = arith.constant 0 : index
    %c0_12 = arith.constant 0 : index
    %23 = vector.load %arg3[%c0_10, %c0_11, %c0_12] : memref<1x4x256xf32, #tpu.memory_space<vmem>>, vector<1x4x256xf32>
    %24 = vector.shape_cast %23 : vector<1x4x256xf32> to vector<4x256xf32>
    %25 = tpu.concatenate %22, %24 in 0 : vector<16x256xf32>, vector<4x256xf32> -> vector<20x256xf32>
    %26 = arith.truncf %25 : vector<20x256xf32> to vector<20x256xbf16>
    %c0_13 = arith.constant 0 : index
    %c0_14 = arith.constant 0 : index
    %27 = vector.load %arg6[%c0_13, %c0_14] : memref<8x20xbf16, #tpu.memory_space<vmem>>, vector<8x20xbf16>
    %cst_15 = arith.constant dense<0.000000e+00> : vector<8x256xf32>
    %28 = tpu.matmul %27, %26, %cst_15 {dimension_numbers = #tpu.dot_dimension_numbers<[1], [0], [0], [1], [0, 0, 1, 1], [], []>} : vector<8x20xbf16>, vector<20x256xbf16>, vector<8x256xf32> -> vector<8x256xf32>
    %29 = arith.truncf %28 : vector<8x256xf32> to vector<8x256xbf16>
    %c0_16 = arith.constant 0 : index
    %c0_17 = arith.constant 0 : index
    %c0_18 = arith.constant 0 : index
    %30 = vector.load %arg7[%c0_16, %c0_17, %c0_18] : memref<1x8x256xbf16, #tpu.memory_space<vmem>>, vector<1x8x256xbf16>
    %31 = vector.shape_cast %30 : vector<1x8x256xbf16> to vector<8x256xbf16>
    %32 = vector.shape_cast %29 : vector<8x256xbf16> to vector<1x8x256xbf16>
    tpu.vector_store %arg7[%c0_16, %c0_17, %c0_18], %32 {strides = array<i32>} : memref<1x8x256xbf16, #tpu.memory_space<vmem>>, vector<1x8x256xbf16>,
    %33 = arith.mulf %28, %28 : vector<8x256xf32>
    %34 = tpu.concatenate %28, %33 in 0 : vector<8x256xf32>, vector<8x256xf32> -> vector<16x256xf32>
    %cst_19 = arith.constant dense<0.000000e+00> : vector<16xf32>
    %35 = vector.multi_reduction <add>, %34, %cst_19 [1] : vector<16x256xf32> to vector<16xf32>
    %36 = vector.shape_cast %35 : vector<16xf32> to vector<16x1xf32>
    %c0_20 = arith.constant 0 : index
    %c0_21 = arith.constant 0 : index
    %c0_22 = arith.constant 0 : index
    %c0_23 = arith.constant 0 : index
    %37 = vector.load %arg8[%c0_20, %c0_21, %c0_22, %c0_23] : memref<1x1x16x1xf32, #tpu.memory_space<vmem>>, vector<1x1x16x1xf32>
    %38 = vector.shape_cast %37 : vector<1x1x16x1xf32> to vector<16x1xf32>
    %39 = vector.shape_cast %36 : vector<16x1xf32> to vector<1x1x16x1xf32>
    tpu.vector_store %arg8[%c0_20, %c0_21, %c0_22, %c0_23], %39 {strides = array<i32>} : memref<1x1x16x1xf32, #tpu.memory_space<vmem>>, vector<1x1x16x1xf32>,
    return
  }
  func.func @transform_0(%arg0: i32, %arg1: i32) -> (i32, i32, i32) {
    %c0_i32 = arith.constant 0 : i32
    %c0_i32_0 = arith.constant 0 : i32
    return %arg0, %c0_i32, %arg1 : i32, i32, i32
  }
  func.func @transform_1(%arg0: i32, %arg1: i32) -> (i32, i32, i32) {
    %c0_i32 = arith.constant 0 : i32
    %c0_i32_0 = arith.constant 0 : i32
    return %arg0, %c0_i32, %arg1 : i32, i32, i32
  }
  func.func @transform_2(%arg0: i32, %arg1: i32) -> (i32, i32) {
    %c0_i32 = arith.constant 0 : i32
    %c0_i32_0 = arith.constant 0 : i32
    %c0_i32_1 = arith.constant 0 : i32
    return %c0_i32, %c0_i32_0 : i32, i32
  }
  func.func @transform_3(%arg0: i32, %arg1: i32) -> (i32, i32) {
    %c0_i32 = arith.constant 0 : i32
    %c0_i32_0 = arith.constant 0 : i32
    %c0_i32_1 = arith.constant 0 : i32
    return %c0_i32, %c0_i32_0 : i32, i32
  }
  func.func @transform_4(%arg0: i32, %arg1: i32) -> (i32, i32) {
    %c0_i32 = arith.constant 0 : i32
    %c0_i32_0 = arith.constant 0 : i32
    %c0_i32_1 = arith.constant 0 : i32
    return %c0_i32, %c0_i32_0 : i32, i32
  }
  func.func @transform_5(%arg0: i32, %arg1: i32) -> (i32, i32, i32) {
    %c0_i32 = arith.constant 0 : i32
    %c0_i32_0 = arith.constant 0 : i32
    return %arg0, %c0_i32, %arg1 : i32, i32, i32
  }
  func.func @transform_6(%arg0: i32, %arg1: i32) -> (i32, i32, i32, i32) {
    %c0_i32 = arith.constant 0 : i32
    %c0_i32_0 = arith.constant 0 : i32
    %c0_i32_1 = arith.constant 0 : i32
    return %arg0, %arg1, %c0_i32, %c0_i32_0 : i32, i32, i32, i32
  }
}

module attributes {stable_mosaic.version = 11 : i64} {
  func.func @kernel_a(%arg0: i32, %arg1: memref<1x8x256xf32, #tpu.memory_space<vmem>>, %arg2: memref<1x4x256xf32, #tpu.memory_space<vmem>>, %arg3: memref<12x8xbf16, #tpu.memory_space<vmem>>, %arg4: memref<12x4xbf16, #tpu.memory_space<vmem>>, %arg5: memref<16x40xbf16, #tpu.memory_space<vmem>>, %arg6: memref<16x1xf32, #tpu.memory_space<vmem>>, %arg7: memref<16x80xbf16, #tpu.memory_space<vmem>>, %arg8: memref<16x1xf32, #tpu.memory_space<vmem>>, %arg9: memref<1x16x256xbf16, #tpu.memory_space<vmem>>, %arg10: memref<1x4x256xf32, #tpu.memory_space<vmem>>, %arg11: memref<1x32x1xf32, #tpu.memory_space<vmem>>) attributes {dimension_semantics = [#tpu.dimension_semantics<parallel>], iteration_bounds = array<i64: 2>, scalar_prefetch = 0 : i64, scratch_operands = 0 : i64, tpu.core_type = #tpu.core_type<tc>, window_params = [{transform_indices = @transform_0, window_bounds = array<i64: 1, 8, 256>}, {transform_indices = @transform_1, window_bounds = array<i64: 1, 4, 256>}, {pipeline_mode = #tpu.pipeline_mode<synchronous>, transform_indices = @transform_2, window_bounds = array<i64: 12, 8>}, {pipeline_mode = #tpu.pipeline_mode<synchronous>, transform_indices = @transform_3, window_bounds = array<i64: 12, 4>}, {pipeline_mode = #tpu.pipeline_mode<synchronous>, transform_indices = @transform_4, window_bounds = array<i64: 16, 40>}, {pipeline_mode = #tpu.pipeline_mode<synchronous>, transform_indices = @transform_5, window_bounds = array<i64: 16, 1>}, {pipeline_mode = #tpu.pipeline_mode<synchronous>, transform_indices = @transform_6, window_bounds = array<i64: 16, 80>}, {pipeline_mode = #tpu.pipeline_mode<synchronous>, transform_indices = @transform_7, window_bounds = array<i64: 16, 1>}, {transform_indices = @transform_8, window_bounds = array<i64: 1, 16, 256>}, {transform_indices = @transform_9, window_bounds = array<i64: 1, 4, 256>}, {transform_indices = @transform_10, window_bounds = array<i64: 1, 32, 1>}]} {
    %c0 = arith.constant 0 : index
    %c0_0 = arith.constant 0 : index
    %c0_1 = arith.constant 0 : index
    %0 = vector.load %arg1[%c0, %c0_0, %c0_1] : memref<1x8x256xf32, #tpu.memory_space<vmem>>, vector<1x8x256xf32>
    %1 = vector.shape_cast %0 : vector<1x8x256xf32> to vector<8x256xf32>
    %2 = arith.truncf %1 : vector<8x256xf32> to vector<8x256xbf16>
    %c0_2 = arith.constant 0 : index
    %c0_3 = arith.constant 0 : index
    %c0_4 = arith.constant 0 : index
    %3 = vector.load %arg2[%c0_2, %c0_3, %c0_4] : memref<1x4x256xf32, #tpu.memory_space<vmem>>, vector<1x4x256xf32>
    %4 = vector.shape_cast %3 : vector<1x4x256xf32> to vector<4x256xf32>
    %5 = arith.truncf %4 : vector<4x256xf32> to vector<4x256xbf16>
    %c0_5 = arith.constant 0 : index
    %c0_6 = arith.constant 0 : index
    %6 = vector.load %arg3[%c0_5, %c0_6] : memref<12x8xbf16, #tpu.memory_space<vmem>>, vector<12x8xbf16>
    %cst = arith.constant dense<0.000000e+00> : vector<12x256xf32>
    %7 = tpu.matmul %6, %2, %cst {dimension_numbers = #tpu.dot_dimension_numbers<[1], [0], [0], [1], [0, 0, 1, 1], [], []>} : vector<12x8xbf16>, vector<8x256xbf16>, vector<12x256xf32> -> vector<12x256xf32>
    %c0_7 = arith.constant 0 : index
    %c0_8 = arith.constant 0 : index
    %8 = vector.load %arg4[%c0_7, %c0_8] : memref<12x4xbf16, #tpu.memory_space<vmem>>, vector<12x4xbf16>
    %cst_9 = arith.constant dense<0.000000e+00> : vector<12x256xf32>
    %9 = tpu.matmul %8, %5, %cst_9 {dimension_numbers = #tpu.dot_dimension_numbers<[1], [0], [0], [1], [0, 0, 1, 1], [], []>} : vector<12x4xbf16>, vector<4x256xbf16>, vector<12x256xf32> -> vector<12x256xf32>
    %10 = arith.addf %7, %9 : vector<12x256xf32>
    %11 = vector.extract_strided_slice %10 {offsets = [0, 0], sizes = [8, 256], strides = [1, 1]} : vector<12x256xf32> to vector<8x256xf32>
    %12 = vector.extract_strided_slice %10 {offsets = [8, 0], sizes = [4, 256], strides = [1, 1]} : vector<12x256xf32> to vector<4x256xf32>
    %c0_10 = arith.constant 0 : index
    %c0_11 = arith.constant 0 : index
    %c0_12 = arith.constant 0 : index
    %13 = vector.load %arg10[%c0_10, %c0_11, %c0_12] : memref<1x4x256xf32, #tpu.memory_space<vmem>>, vector<1x4x256xf32>
    %14 = vector.shape_cast %13 : vector<1x4x256xf32> to vector<4x256xf32>
    %15 = vector.shape_cast %12 : vector<4x256xf32> to vector<1x4x256xf32>
    tpu.vector_store %arg10[%c0_10, %c0_11, %c0_12], %15 {strides = array<i32>} : memref<1x4x256xf32, #tpu.memory_space<vmem>>, vector<1x4x256xf32>,
    %cst_13 = arith.constant 0.000000e+00 : f32
    %16 = vector.broadcast %cst_13 : f32 to vector<8x32xf32>
    %17 = tpu.concatenate %16, %11, %16 in 1 : vector<8x32xf32>, vector<8x256xf32>, vector<8x32xf32> -> vector<8x320xf32>
    %18 = vector.extract_strided_slice %17 {offsets = [0, 0], sizes = [8, 256], strides = [1, 1]} : vector<8x320xf32> to vector<8x256xf32>
    %19 = vector.extract_strided_slice %17 {offsets = [0, 16], sizes = [8, 256], strides = [1, 1]} : vector<8x320xf32> to vector<8x256xf32>
    %20 = vector.extract_strided_slice %17 {offsets = [0, 32], sizes = [8, 256], strides = [1, 1]} : vector<8x320xf32> to vector<8x256xf32>
    %21 = vector.extract_strided_slice %17 {offsets = [0, 48], sizes = [8, 256], strides = [1, 1]} : vector<8x320xf32> to vector<8x256xf32>
    %22 = vector.extract_strided_slice %17 {offsets = [0, 64], sizes = [8, 256], strides = [1, 1]} : vector<8x320xf32> to vector<8x256xf32>
    %23 = tpu.concatenate %18, %19, %20, %21, %22 in 0 : vector<8x256xf32>, vector<8x256xf32>, vector<8x256xf32>, vector<8x256xf32>, vector<8x256xf32> -> vector<40x256xf32>
    %c0_14 = arith.constant 0 : index
    %c0_15 = arith.constant 0 : index
    %24 = vector.load %arg5[%c0_14, %c0_15] : memref<16x40xbf16, #tpu.memory_space<vmem>>, vector<16x40xbf16>
    %25 = arith.truncf %23 : vector<40x256xf32> to vector<40x256xbf16>
    %cst_16 = arith.constant dense<0.000000e+00> : vector<16x256xf32>
    %26 = tpu.matmul %24, %25, %cst_16 {dimension_numbers = #tpu.dot_dimension_numbers<[1], [0], [0], [1], [0, 0, 1, 1], [], []>} : vector<16x40xbf16>, vector<40x256xbf16>, vector<16x256xf32> -> vector<16x256xf32>
    %c0_17 = arith.constant 0 : index
    %c0_18 = arith.constant 0 : index
    %27 = vector.load %arg6[%c0_17, %c0_18] : memref<16x1xf32, #tpu.memory_space<vmem>>, vector<16x1xf32>
    %28 = vector.broadcast %27 : vector<16x1xf32> to vector<16x256xf32>
    %29 = arith.addf %26, %28 : vector<16x256xf32>
    %cst_19 = arith.constant 0.000000e+00 : f32
    %30 = vector.broadcast %cst_19 : f32 to vector<16x2xf32>
    %31 = tpu.concatenate %30, %29, %30 in 1 : vector<16x2xf32>, vector<16x256xf32>, vector<16x2xf32> -> vector<16x260xf32>
    %32 = tpu.iota {dimensions = array<i32: 1>} : vector<1x256xi32>
    %c16_i32 = arith.constant 16 : i32
    %c0_i32 = arith.constant 0 : i32
    %33 = arith.cmpi eq, %c16_i32, %c0_i32 : i32
    %c1_i32 = arith.constant 1 : i32
    %34 = arith.select %33, %c1_i32, %c16_i32 : i32
    %35 = vector.broadcast %34 : i32 to vector<1x256xi32>
    %36 = arith.remsi %32, %35 : vector<1x256xi32>
    %c0_i32_20 = arith.constant 0 : i32
    %37 = vector.broadcast %c0_i32_20 : i32 to vector<1x256xi32>
    %38 = arith.cmpi ne, %36, %37 : vector<1x256xi32>
    %c0_i32_21 = arith.constant 0 : i32
    %39 = vector.broadcast %c0_i32_21 : i32 to vector<1x256xi32>
    %40 = arith.cmpi slt, %36, %39 : vector<1x256xi32>
    %c0_i32_22 = arith.constant 0 : i32
    %41 = arith.cmpi slt, %34, %c0_i32_22 : i32
    %42 = vector.broadcast %41 : i1 to vector<1x256xi1>
    %43 = vector.broadcast %42 : vector<1x256xi1> to vector<1x256xi1>
    %44 = arith.xori %40, %43 : vector<1x256xi1>
    %45 = arith.andi %44, %38 : vector<1x256xi1>
    %46 = vector.broadcast %34 : i32 to vector<1x256xi32>
    %47 = arith.addi %36, %46 : vector<1x256xi32>
    %48 = arith.select %45, %47, %36 : vector<1x256xi1>, vector<1x256xi32>
    %49 = vector.extract_strided_slice %31 {offsets = [0, 0], sizes = [16, 256], strides = [1, 1]} : vector<16x260xf32> to vector<16x256xf32>
    %c-2_i32 = arith.constant -2 : i32
    %50 = vector.broadcast %c-2_i32 : i32 to vector<1x256xi32>
    %51 = arith.addi %48, %50 : vector<1x256xi32>
    %c0_i32_23 = arith.constant 0 : i32
    %52 = vector.broadcast %c0_i32_23 : i32 to vector<1x256xi32>
    %53 = arith.cmpi sge, %51, %52 : vector<1x256xi32>
    %c-2_i32_24 = arith.constant -2 : i32
    %54 = vector.broadcast %c-2_i32_24 : i32 to vector<1x256xi32>
    %55 = arith.addi %48, %54 : vector<1x256xi32>
    %c16_i32_25 = arith.constant 16 : i32
    %56 = vector.broadcast %c16_i32_25 : i32 to vector<1x256xi32>
    %57 = arith.cmpi slt, %55, %56 : vector<1x256xi32>
    %58 = arith.andi %53, %57 : vector<1x256xi1>
    %cst_26 = arith.constant 0.000000e+00 : f32
    %59 = vector.shape_cast %58 : vector<1x256xi1> to vector<1x256xi1>
    %60 = vector.broadcast %59 : vector<1x256xi1> to vector<16x256xi1>
    %61 = vector.broadcast %cst_26 : f32 to vector<16x256xf32>
    %62 = arith.select %60, %49, %61 : vector<16x256xi1>, vector<16x256xf32>
    %63 = vector.extract_strided_slice %31 {offsets = [0, 1], sizes = [16, 256], strides = [1, 1]} : vector<16x260xf32> to vector<16x256xf32>
    %c-1_i32 = arith.constant -1 : i32
    %64 = vector.broadcast %c-1_i32 : i32 to vector<1x256xi32>
    %65 = arith.addi %48, %64 : vector<1x256xi32>
    %c0_i32_27 = arith.constant 0 : i32
    %66 = vector.broadcast %c0_i32_27 : i32 to vector<1x256xi32>
    %67 = arith.cmpi sge, %65, %66 : vector<1x256xi32>
    %c-1_i32_28 = arith.constant -1 : i32
    %68 = vector.broadcast %c-1_i32_28 : i32 to vector<1x256xi32>
    %69 = arith.addi %48, %68 : vector<1x256xi32>
    %c16_i32_29 = arith.constant 16 : i32
    %70 = vector.broadcast %c16_i32_29 : i32 to vector<1x256xi32>
    %71 = arith.cmpi slt, %69, %70 : vector<1x256xi32>
    %72 = arith.andi %67, %71 : vector<1x256xi1>
    %cst_30 = arith.constant 0.000000e+00 : f32
    %73 = vector.shape_cast %72 : vector<1x256xi1> to vector<1x256xi1>
    %74 = vector.broadcast %73 : vector<1x256xi1> to vector<16x256xi1>
    %75 = vector.broadcast %cst_30 : f32 to vector<16x256xf32>
    %76 = arith.select %74, %63, %75 : vector<16x256xi1>, vector<16x256xf32>
    %77 = vector.extract_strided_slice %31 {offsets = [0, 2], sizes = [16, 256], strides = [1, 1]} : vector<16x260xf32> to vector<16x256xf32>
    %c0_i32_31 = arith.constant 0 : i32
    %78 = vector.broadcast %c0_i32_31 : i32 to vector<1x256xi32>
    %79 = arith.addi %48, %78 : vector<1x256xi32>
    %c0_i32_32 = arith.constant 0 : i32
    %80 = vector.broadcast %c0_i32_32 : i32 to vector<1x256xi32>
    %81 = arith.cmpi sge, %79, %80 : vector<1x256xi32>
    %c0_i32_33 = arith.constant 0 : i32
    %82 = vector.broadcast %c0_i32_33 : i32 to vector<1x256xi32>
    %83 = arith.addi %48, %82 : vector<1x256xi32>
    %c16_i32_34 = arith.constant 16 : i32
    %84 = vector.broadcast %c16_i32_34 : i32 to vector<1x256xi32>
    %85 = arith.cmpi slt, %83, %84 : vector<1x256xi32>
    %86 = arith.andi %81, %85 : vector<1x256xi1>
    %cst_35 = arith.constant 0.000000e+00 : f32
    %87 = vector.shape_cast %86 : vector<1x256xi1> to vector<1x256xi1>
    %88 = vector.broadcast %87 : vector<1x256xi1> to vector<16x256xi1>
    %89 = vector.broadcast %cst_35 : f32 to vector<16x256xf32>
    %90 = arith.select %88, %77, %89 : vector<16x256xi1>, vector<16x256xf32>
    %91 = vector.extract_strided_slice %31 {offsets = [0, 3], sizes = [16, 256], strides = [1, 1]} : vector<16x260xf32> to vector<16x256xf32>
    %c1_i32_36 = arith.constant 1 : i32
    %92 = vector.broadcast %c1_i32_36 : i32 to vector<1x256xi32>
    %93 = arith.addi %48, %92 : vector<1x256xi32>
    %c0_i32_37 = arith.constant 0 : i32
    %94 = vector.broadcast %c0_i32_37 : i32 to vector<1x256xi32>
    %95 = arith.cmpi sge, %93, %94 : vector<1x256xi32>
    %c1_i32_38 = arith.constant 1 : i32
    %96 = vector.broadcast %c1_i32_38 : i32 to vector<1x256xi32>
    %97 = arith.addi %48, %96 : vector<1x256xi32>
    %c16_i32_39 = arith.constant 16 : i32
    %98 = vector.broadcast %c16_i32_39 : i32 to vector<1x256xi32>
    %99 = arith.cmpi slt, %97, %98 : vector<1x256xi32>
    %100 = arith.andi %95, %99 : vector<1x256xi1>
    %cst_40 = arith.constant 0.000000e+00 : f32
    %101 = vector.shape_cast %100 : vector<1x256xi1> to vector<1x256xi1>
    %102 = vector.broadcast %101 : vector<1x256xi1> to vector<16x256xi1>
    %103 = vector.broadcast %cst_40 : f32 to vector<16x256xf32>
    %104 = arith.select %102, %91, %103 : vector<16x256xi1>, vector<16x256xf32>
    %105 = vector.extract_strided_slice %31 {offsets = [0, 4], sizes = [16, 256], strides = [1, 1]} : vector<16x260xf32> to vector<16x256xf32>
    %c2_i32 = arith.constant 2 : i32
    %106 = vector.broadcast %c2_i32 : i32 to vector<1x256xi32>
    %107 = arith.addi %48, %106 : vector<1x256xi32>
    %c0_i32_41 = arith.constant 0 : i32
    %108 = vector.broadcast %c0_i32_41 : i32 to vector<1x256xi32>
    %109 = arith.cmpi sge, %107, %108 : vector<1x256xi32>
    %c2_i32_42 = arith.constant 2 : i32
    %110 = vector.broadcast %c2_i32_42 : i32 to vector<1x256xi32>
    %111 = arith.addi %48, %110 : vector<1x256xi32>
    %c16_i32_43 = arith.constant 16 : i32
    %112 = vector.broadcast %c16_i32_43 : i32 to vector<1x256xi32>
    %113 = arith.cmpi slt, %111, %112 : vector<1x256xi32>
    %114 = arith.andi %109, %113 : vector<1x256xi1>
    %cst_44 = arith.constant 0.000000e+00 : f32
    %115 = vector.shape_cast %114 : vector<1x256xi1> to vector<1x256xi1>
    %116 = vector.broadcast %115 : vector<1x256xi1> to vector<16x256xi1>
    %117 = vector.broadcast %cst_44 : f32 to vector<16x256xf32>
    %118 = arith.select %116, %105, %117 : vector<16x256xi1>, vector<16x256xf32>
    %119 = tpu.concatenate %62, %76, %90, %104, %118 in 0 : vector<16x256xf32>, vector<16x256xf32>, vector<16x256xf32>, vector<16x256xf32>, vector<16x256xf32> -> vector<80x256xf32>
    %c0_45 = arith.constant 0 : index
    %c0_46 = arith.constant 0 : index
    %120 = vector.load %arg7[%c0_45, %c0_46] : memref<16x80xbf16, #tpu.memory_space<vmem>>, vector<16x80xbf16>
    %121 = arith.truncf %119 : vector<80x256xf32> to vector<80x256xbf16>
    %cst_47 = arith.constant dense<0.000000e+00> : vector<16x256xf32>
    %122 = tpu.matmul %120, %121, %cst_47 {dimension_numbers = #tpu.dot_dimension_numbers<[1], [0], [0], [1], [0, 0, 1, 1], [], []>} : vector<16x80xbf16>, vector<80x256xbf16>, vector<16x256xf32> -> vector<16x256xf32>
    %c0_48 = arith.constant 0 : index
    %c0_49 = arith.constant 0 : index
    %123 = vector.load %arg8[%c0_48, %c0_49] : memref<16x1xf32, #tpu.memory_space<vmem>>, vector<16x1xf32>
    %124 = vector.broadcast %123 : vector<16x1xf32> to vector<16x256xf32>
    %125 = arith.addf %122, %124 : vector<16x256xf32>
    %126 = arith.truncf %125 : vector<16x256xf32> to vector<16x256xbf16>
    %c0_50 = arith.constant 0 : index
    %c0_51 = arith.constant 0 : index
    %c0_52 = arith.constant 0 : index
    %127 = vector.load %arg9[%c0_50, %c0_51, %c0_52] : memref<1x16x256xbf16, #tpu.memory_space<vmem>>, vector<1x16x256xbf16>
    %128 = vector.shape_cast %127 : vector<1x16x256xbf16> to vector<16x256xbf16>
    %129 = vector.shape_cast %126 : vector<16x256xbf16> to vector<1x16x256xbf16>
    tpu.vector_store %arg9[%c0_50, %c0_51, %c0_52], %129 {strides = array<i32>} : memref<1x16x256xbf16, #tpu.memory_space<vmem>>, vector<1x16x256xbf16>,
    %130 = arith.mulf %125, %125 : vector<16x256xf32>
    %131 = tpu.concatenate %125, %130 in 0 : vector<16x256xf32>, vector<16x256xf32> -> vector<32x256xf32>
    %cst_53 = arith.constant dense<0.000000e+00> : vector<32xf32>
    %132 = vector.multi_reduction <add>, %131, %cst_53 [1] : vector<32x256xf32> to vector<32xf32>
    %133 = vector.shape_cast %132 : vector<32xf32> to vector<32x1xf32>
    %c0_54 = arith.constant 0 : index
    %c0_55 = arith.constant 0 : index
    %c0_56 = arith.constant 0 : index
    %134 = vector.load %arg11[%c0_54, %c0_55, %c0_56] : memref<1x32x1xf32, #tpu.memory_space<vmem>>, vector<1x32x1xf32>
    %135 = vector.shape_cast %134 : vector<1x32x1xf32> to vector<32x1xf32>
    %136 = vector.shape_cast %133 : vector<32x1xf32> to vector<1x32x1xf32>
    tpu.vector_store %arg11[%c0_54, %c0_55, %c0_56], %136 {strides = array<i32>} : memref<1x32x1xf32, #tpu.memory_space<vmem>>, vector<1x32x1xf32>,
    return
  }
  func.func @transform_0(%arg0: i32) -> (i32, i32, i32) {
    %c0_i32 = arith.constant 0 : i32
    %c0_i32_0 = arith.constant 0 : i32
    %c0_i32_1 = arith.constant 0 : i32
    return %arg0, %c0_i32, %c0_i32_0 : i32, i32, i32
  }
  func.func @transform_1(%arg0: i32) -> (i32, i32, i32) {
    %c0_i32 = arith.constant 0 : i32
    %c0_i32_0 = arith.constant 0 : i32
    %c0_i32_1 = arith.constant 0 : i32
    return %arg0, %c0_i32, %c0_i32_0 : i32, i32, i32
  }
  func.func @transform_2(%arg0: i32) -> (i32, i32) {
    %c0_i32 = arith.constant 0 : i32
    %c0_i32_0 = arith.constant 0 : i32
    %c0_i32_1 = arith.constant 0 : i32
    return %c0_i32, %c0_i32_0 : i32, i32
  }
  func.func @transform_3(%arg0: i32) -> (i32, i32) {
    %c0_i32 = arith.constant 0 : i32
    %c0_i32_0 = arith.constant 0 : i32
    %c0_i32_1 = arith.constant 0 : i32
    return %c0_i32, %c0_i32_0 : i32, i32
  }
  func.func @transform_4(%arg0: i32) -> (i32, i32) {
    %c0_i32 = arith.constant 0 : i32
    %c0_i32_0 = arith.constant 0 : i32
    %c0_i32_1 = arith.constant 0 : i32
    return %c0_i32, %c0_i32_0 : i32, i32
  }
  func.func @transform_5(%arg0: i32) -> (i32, i32) {
    %c0_i32 = arith.constant 0 : i32
    %c0_i32_0 = arith.constant 0 : i32
    %c0_i32_1 = arith.constant 0 : i32
    return %c0_i32, %c0_i32_0 : i32, i32
  }
  func.func @transform_6(%arg0: i32) -> (i32, i32) {
    %c0_i32 = arith.constant 0 : i32
    %c0_i32_0 = arith.constant 0 : i32
    %c0_i32_1 = arith.constant 0 : i32
    return %c0_i32, %c0_i32_0 : i32, i32
  }
  func.func @transform_7(%arg0: i32) -> (i32, i32) {
    %c0_i32 = arith.constant 0 : i32
    %c0_i32_0 = arith.constant 0 : i32
    %c0_i32_1 = arith.constant 0 : i32
    return %c0_i32, %c0_i32_0 : i32, i32
  }
  func.func @transform_8(%arg0: i32) -> (i32, i32, i32) {
    %c0_i32 = arith.constant 0 : i32
    %c0_i32_0 = arith.constant 0 : i32
    %c0_i32_1 = arith.constant 0 : i32
    return %arg0, %c0_i32, %c0_i32_0 : i32, i32, i32
  }
  func.func @transform_9(%arg0: i32) -> (i32, i32, i32) {
    %c0_i32 = arith.constant 0 : i32
    %c0_i32_0 = arith.constant 0 : i32
    %c0_i32_1 = arith.constant 0 : i32
    return %arg0, %c0_i32, %c0_i32_0 : i32, i32, i32
  }
  func.func @transform_10(%arg0: i32) -> (i32, i32, i32) {
    %c0_i32 = arith.constant 0 : i32
    %c0_i32_0 = arith.constant 0 : i32
    %c0_i32_1 = arith.constant 0 : i32
    return %arg0, %c0_i32, %c0_i32_0 : i32, i32, i32
  }
}

module attributes {stable_mosaic.version = 11 : i64} {
  func.func @kernel_c(%arg0: i32, %arg1: memref<1x8x256xbf16, #tpu.memory_space<vmem>>, %arg2: memref<1x4x256xf32, #tpu.memory_space<vmem>>, %arg3: memref<1x4x256xf32, #tpu.memory_space<vmem>>, %arg4: memref<8x1xf32, #tpu.memory_space<vmem>>, %arg5: memref<8x1xf32, #tpu.memory_space<vmem>>, %arg6: memref<127x64xbf16, #tpu.memory_space<vmem>>, %arg7: memref<256x64xbf16, #tpu.memory_space<vmem>>, %arg8: memref<1x8x64xf32, #tpu.memory_space<vmem>>, %arg9: memref<1x8x64xf32, #tpu.memory_space<vmem>>) attributes {dimension_semantics = [#tpu.dimension_semantics<parallel>], iteration_bounds = array<i64: 2>, scalar_prefetch = 0 : i64, scratch_operands = 0 : i64, tpu.core_type = #tpu.core_type<tc>, window_params = [{transform_indices = @transform_0, window_bounds = array<i64: 1, 8, 256>}, {transform_indices = @transform_1, window_bounds = array<i64: 1, 4, 256>}, {transform_indices = @transform_2, window_bounds = array<i64: 1, 4, 256>}, {pipeline_mode = #tpu.pipeline_mode<synchronous>, transform_indices = @transform_3, window_bounds = array<i64: 8, 1>}, {pipeline_mode = #tpu.pipeline_mode<synchronous>, transform_indices = @transform_4, window_bounds = array<i64: 8, 1>}, {pipeline_mode = #tpu.pipeline_mode<synchronous>, transform_indices = @transform_5, window_bounds = array<i64: 127, 64>}, {pipeline_mode = #tpu.pipeline_mode<synchronous>, transform_indices = @transform_6, window_bounds = array<i64: 256, 64>}, {transform_indices = @transform_7, window_bounds = array<i64: 1, 8, 64>}, {transform_indices = @transform_8, window_bounds = array<i64: 1, 8, 64>}]} {
    %c0 = arith.constant 0 : index
    %c0_0 = arith.constant 0 : index
    %c0_1 = arith.constant 0 : index
    %0 = vector.load %arg1[%c0, %c0_0, %c0_1] : memref<1x8x256xbf16, #tpu.memory_space<vmem>>, vector<1x8x256xbf16>
    %1 = vector.shape_cast %0 : vector<1x8x256xbf16> to vector<8x256xbf16>
    %2 = arith.extf %1 : vector<8x256xbf16> to vector<8x256xf32>
    %c0_2 = arith.constant 0 : index
    %c0_3 = arith.constant 0 : index
    %3 = vector.load %arg4[%c0_2, %c0_3] : memref<8x1xf32, #tpu.memory_space<vmem>>, vector<8x1xf32>
    %4 = vector.broadcast %3 : vector<8x1xf32> to vector<8x256xf32>
    %5 = arith.mulf %2, %4 : vector<8x256xf32>
    %c0_4 = arith.constant 0 : index
    %c0_5 = arith.constant 0 : index
    %6 = vector.load %arg5[%c0_4, %c0_5] : memref<8x1xf32, #tpu.memory_space<vmem>>, vector<8x1xf32>
    %7 = vector.broadcast %6 : vector<8x1xf32> to vector<8x256xf32>
    %8 = arith.addf %5, %7 : vector<8x256xf32>
    %cst = arith.constant 2.000000e+01 : f32
    %9 = vector.broadcast %cst : f32 to vector<8x256xf32>
    %10 = arith.minimumf %8, %9 : vector<8x256xf32>
    %11 = math.exp %10 : vector<8x256xf32>
    %cst_6 = arith.constant 1.000000e+00 : f32
    %12 = vector.broadcast %cst_6 : f32 to vector<8x256xf32>
    %13 = arith.addf %12, %11 : vector<8x256xf32>
    %cst_7 = arith.constant 1.000000e+00 : f32
    %14 = vector.broadcast %cst_7 : f32 to vector<8x256xf32>
    %15 = arith.addf %14, %11 : vector<8x256xf32>
    %16 = arith.mulf %13, %15 : vector<8x256xf32>
    %cst_8 = arith.constant 1.000000e+00 : f32
    %17 = vector.broadcast %cst_8 : f32 to vector<8x256xf32>
    %18 = arith.subf %16, %17 : vector<8x256xf32>
    %19 = arith.mulf %8, %18 : vector<8x256xf32>
    %cst_9 = arith.constant 1.000000e+00 : f32
    %20 = vector.broadcast %cst_9 : f32 to vector<8x256xf32>
    %21 = arith.addf %16, %20 : vector<8x256xf32>
    %22 = arith.divf %19, %21 : vector<8x256xf32>
    %23 = vector.extract_strided_slice %22 {offsets = [0, 0], sizes = [8, 240], strides = [1, 1]} : vector<8x256xf32> to vector<8x240xf32>
    %24 = vector.extract_strided_slice %22 {offsets = [0, 16], sizes = [8, 240], strides = [1, 1]} : vector<8x256xf32> to vector<8x240xf32>
    %25 = arith.maximumf %23, %24 : vector<8x240xf32>
    %26 = vector.extract_strided_slice %25 {offsets = [0, 0], sizes = [8, 16], strides = [1, 1]} : vector<8x240xf32> to vector<8x16xf32>
    %27 = vector.extract_strided_slice %25 {offsets = [0, 32], sizes = [8, 16], strides = [1, 1]} : vector<8x240xf32> to vector<8x16xf32>
    %28 = vector.extract_strided_slice %25 {offsets = [0, 64], sizes = [8, 16], strides = [1, 1]} : vector<8x240xf32> to vector<8x16xf32>
    %29 = vector.extract_strided_slice %25 {offsets = [0, 96], sizes = [8, 16], strides = [1, 1]} : vector<8x240xf32> to vector<8x16xf32>
    %30 = vector.extract_strided_slice %25 {offsets = [0, 128], sizes = [8, 16], strides = [1, 1]} : vector<8x240xf32> to vector<8x16xf32>
    %31 = vector.extract_strided_slice %25 {offsets = [0, 160], sizes = [8, 16], strides = [1, 1]} : vector<8x240xf32> to vector<8x16xf32>
    %32 = vector.extract_strided_slice %25 {offsets = [0, 192], sizes = [8, 16], strides = [1, 1]} : vector<8x240xf32> to vector<8x16xf32>
    %33 = vector.extract_strided_slice %25 {offsets = [0, 224], sizes = [8, 16], strides = [1, 1]} : vector<8x240xf32> to vector<8x16xf32>
    %34 = tpu.concatenate %26, %27, %28, %29, %30, %31, %32, %33 in 1 : vector<8x16xf32>, vector<8x16xf32>, vector<8x16xf32>, vector<8x16xf32>, vector<8x16xf32>, vector<8x16xf32>, vector<8x16xf32>, vector<8x16xf32> -> vector<8x128xf32>
    %35 = vector.extract_strided_slice %34 {offsets = [0, 0], sizes = [8, 127], strides = [1, 1]} : vector<8x128xf32> to vector<8x127xf32>
    %36 = vector.extract_strided_slice %34 {offsets = [0, 1], sizes = [8, 127], strides = [1, 1]} : vector<8x128xf32> to vector<8x127xf32>
    %37 = arith.maximumf %35, %36 : vector<8x127xf32>
    %38 = arith.truncf %37 : vector<8x127xf32> to vector<8x127xbf16>
    %c0_10 = arith.constant 0 : index
    %c0_11 = arith.constant 0 : index
    %39 = vector.load %arg6[%c0_10, %c0_11] : memref<127x64xbf16, #tpu.memory_space<vmem>>, vector<127x64xbf16>
    %cst_12 = arith.constant dense<0.000000e+00> : vector<8x64xf32>
    %40 = tpu.matmul %38, %39, %cst_12 {dimension_numbers = #tpu.dot_dimension_numbers<[1], [0], [0], [1], [0, 0, 1, 1], [], []>} : vector<8x127xbf16>, vector<127x64xbf16>, vector<8x64xf32> -> vector<8x64xf32>
    %c0_13 = arith.constant 0 : index
    %c0_14 = arith.constant 0 : index
    %c0_15 = arith.constant 0 : index
    %41 = vector.load %arg8[%c0_13, %c0_14, %c0_15] : memref<1x8x64xf32, #tpu.memory_space<vmem>>, vector<1x8x64xf32>
    %42 = vector.shape_cast %41 : vector<1x8x64xf32> to vector<8x64xf32>
    %43 = vector.shape_cast %40 : vector<8x64xf32> to vector<1x8x64xf32>
    tpu.vector_store %arg8[%c0_13, %c0_14, %c0_15], %43 {strides = array<i32>} : memref<1x8x64xf32, #tpu.memory_space<vmem>>, vector<1x8x64xf32>,
    %c0_16 = arith.constant 0 : index
    %c0_17 = arith.constant 0 : index
    %c0_18 = arith.constant 0 : index
    %44 = vector.load %arg2[%c0_16, %c0_17, %c0_18] : memref<1x4x256xf32, #tpu.memory_space<vmem>>, vector<1x4x256xf32>
    %45 = vector.shape_cast %44 : vector<1x4x256xf32> to vector<4x256xf32>
    %c0_19 = arith.constant 0 : index
    %c0_20 = arith.constant 0 : index
    %c0_21 = arith.constant 0 : index
    %46 = vector.load %arg3[%c0_19, %c0_20, %c0_21] : memref<1x4x256xf32, #tpu.memory_space<vmem>>, vector<1x4x256xf32>
    %47 = vector.shape_cast %46 : vector<1x4x256xf32> to vector<4x256xf32>
    %48 = tpu.concatenate %45, %47 in 0 : vector<4x256xf32>, vector<4x256xf32> -> vector<8x256xf32>
    %49 = arith.truncf %48 : vector<8x256xf32> to vector<8x256xbf16>
    %c0_22 = arith.constant 0 : index
    %c0_23 = arith.constant 0 : index
    %50 = vector.load %arg7[%c0_22, %c0_23] : memref<256x64xbf16, #tpu.memory_space<vmem>>, vector<256x64xbf16>
    %cst_24 = arith.constant dense<0.000000e+00> : vector<8x64xf32>
    %51 = tpu.matmul %49, %50, %cst_24 {dimension_numbers = #tpu.dot_dimension_numbers<[1], [0], [0], [1], [0, 0, 1, 1], [], []>} : vector<8x256xbf16>, vector<256x64xbf16>, vector<8x64xf32> -> vector<8x64xf32>
    %c0_25 = arith.constant 0 : index
    %c0_26 = arith.constant 0 : index
    %c0_27 = arith.constant 0 : index
    %52 = vector.load %arg9[%c0_25, %c0_26, %c0_27] : memref<1x8x64xf32, #tpu.memory_space<vmem>>, vector<1x8x64xf32>
    %53 = vector.shape_cast %52 : vector<1x8x64xf32> to vector<8x64xf32>
    %54 = vector.shape_cast %51 : vector<8x64xf32> to vector<1x8x64xf32>
    tpu.vector_store %arg9[%c0_25, %c0_26, %c0_27], %54 {strides = array<i32>} : memref<1x8x64xf32, #tpu.memory_space<vmem>>, vector<1x8x64xf32>,
    return
  }
  func.func @transform_0(%arg0: i32) -> (i32, i32, i32) {
    %c0_i32 = arith.constant 0 : i32
    %c0_i32_0 = arith.constant 0 : i32
    %c0_i32_1 = arith.constant 0 : i32
    return %arg0, %c0_i32, %c0_i32_0 : i32, i32, i32
  }
  func.func @transform_1(%arg0: i32) -> (i32, i32, i32) {
    %c0_i32 = arith.constant 0 : i32
    %c0_i32_0 = arith.constant 0 : i32
    %c0_i32_1 = arith.constant 0 : i32
    return %arg0, %c0_i32, %c0_i32_0 : i32, i32, i32
  }
  func.func @transform_2(%arg0: i32) -> (i32, i32, i32) {
    %c0_i32 = arith.constant 0 : i32
    %c0_i32_0 = arith.constant 0 : i32
    %c0_i32_1 = arith.constant 0 : i32
    return %arg0, %c0_i32, %c0_i32_0 : i32, i32, i32
  }
  func.func @transform_3(%arg0: i32) -> (i32, i32) {
    %c0_i32 = arith.constant 0 : i32
    %c0_i32_0 = arith.constant 0 : i32
    %c0_i32_1 = arith.constant 0 : i32
    return %c0_i32, %c0_i32_0 : i32, i32
  }
  func.func @transform_4(%arg0: i32) -> (i32, i32) {
    %c0_i32 = arith.constant 0 : i32
    %c0_i32_0 = arith.constant 0 : i32
    %c0_i32_1 = arith.constant 0 : i32
    return %c0_i32, %c0_i32_0 : i32, i32
  }
  func.func @transform_5(%arg0: i32) -> (i32, i32) {
    %c0_i32 = arith.constant 0 : i32
    %c0_i32_0 = arith.constant 0 : i32
    %c0_i32_1 = arith.constant 0 : i32
    return %c0_i32, %c0_i32_0 : i32, i32
  }
  func.func @transform_6(%arg0: i32) -> (i32, i32) {
    %c0_i32 = arith.constant 0 : i32
    %c0_i32_0 = arith.constant 0 : i32
    %c0_i32_1 = arith.constant 0 : i32
    return %c0_i32, %c0_i32_0 : i32, i32
  }
  func.func @transform_7(%arg0: i32) -> (i32, i32, i32) {
    %c0_i32 = arith.constant 0 : i32
    %c0_i32_0 = arith.constant 0 : i32
    %c0_i32_1 = arith.constant 0 : i32
    return %arg0, %c0_i32, %c0_i32_0 : i32, i32, i32
  }
  func.func @transform_8(%arg0: i32) -> (i32, i32, i32) {
    %c0_i32 = arith.constant 0 : i32
    %c0_i32_0 = arith.constant 0 : i32
    %c0_i32_1 = arith.constant 0 : i32
    return %arg0, %c0_i32, %c0_i32_0 : i32, i32, i32
  }
}

</mosaic_0001>

<llo_original>
// kernel: encoder_layer_grouped_forward.4
$region0: #{encoder_layer_grouped_forward.4}
  #allocation0 [shape = 'u32[]', space=smem, size = 0x4, offset = 0x4, fixed_abs, tag = 'smem constant byte address 0x4 - core index']
  #allocation1 [shape = 'u32[144,128]{1,0:T(1,128)}', space=vmem, size = 0x12000, scoped, tag = 'internal scratch']
  %s0 = inlined_call_operand.vmem [shape: bf16[2,16,256], index: 0, kind: input, shape index: {}]
  %s1 = inlined_call_operand.vmem [shape: f32[2,4,256], index: 1, kind: input, shape index: {}]
  %s2 = inlined_call_operand.vmem [shape: f32[16,1], index: 2, kind: input, shape index: {}]
  %s3 = inlined_call_operand.vmem [shape: f32[16,1], index: 3, kind: input, shape index: {}]
  %s4 = inlined_call_operand.vmem [shape: bf16[8,20], index: 4, kind: input, shape index: {}]
  %s5 = inlined_call_operand.vmem [shape: bf16[2,8,256], index: 5, kind: output, shape index: {0}]
  %s6 = inlined_call_operand.vmem [shape: f32[2,1,16,1], index: 6, kind: output, shape index: {1}]
  %7 = xla_tuple %s5, %s6
  %s8 = sld [smem:[#allocation0]]
  $region61: #{encoder_layer_grouped_forward.4} parent=0
    _
  %s10 = ssub.s32 1, %s8
  %s11 = scalar_select 0, %s10, %s8
  loop: start=0, step=1, limit=4
  $region2: #{encoder_layer_grouped_forward.4} parent=0 // loop_pre_header
    _
  $region3: #{encoder_layer_grouped_forward.4} parent=0 // loop_header
    %s13 = sphi 0, %s17
    %p14 = scmp.ge.s32.totalorder %s13, 4
    %s20 = sphi 0, %s32
    %s21 = sphi 0, %s28
    %s22 = sphi 0, %s20
    %s23 = sphi 0, %s21
    %s24 = sphi 0, %s22
    %s25 = sphi 0, %s23
    %s37 = sphi 0, %s39
    %s40 = sphi 0, %s37
    %s41 = sphi 0, %s40
    %s57 = sphi 0, %s41
    %s65 = sphi 0, %s67
    %s68 = sphi 0, %s65
    %s69 = sphi 0, %s68
    %s85 = sphi 0, %s69
    %s89 = sphi 0, %s89
    %s91 = sphi 0, %s89
    %s92 = sphi 0, %s91
    %s106 = sphi 0, %s92
    %s110 = sphi 0, %s110
    %s112 = sphi 0, %s110
    %s113 = sphi 0, %s112
    %s127 = sphi 0, %s113
    %s131 = sphi 0, %s131
    %s133 = sphi 0, %s131
    %s134 = sphi 0, %s133
    %s148 = sphi 0, %s134
    %s156 = sphi 0, %s158
    %s159 = sphi 0, %s156
    %s160 = sphi 0, %s159
    %s176 = sphi 0, %s160
    %s184 = sphi 0, %s186
    %s187 = sphi 0, %s184
    %s188 = sphi 0, %s187
    %s204 = sphi 0, %s188
  $region4: #{encoder_layer_grouped_forward.4} parent=0 // loop_header_branch
    %16 = sbr.rel (%p14) target = $region8
  $region5: #{encoder_layer_grouped_forward.4} parent=0 // loop_body
    %s18 = ssub.s32 %s13, 1
    %s19 = ssub.s32 %s13, 2
    %s26 = sadd.s32 1, %s21
    %p27 = scmp.ge.s32.totalorder %s26, 1
    %s28 = scalar_select %p27, 0, %s26
    %s29 = sadd.s32 1, %s20
    %s30 = scalar_select %p27, %s29, %s20
    %p31 = scmp.ge.s32.totalorder %s30, 2
    %s32 = scalar_select %p31, 0, %s30
    %s33 = ssub.s32 %s20, %s32
    %s34 = ssub.s32 %s21, %s28
    %s35 = sor.u32 %s33, %s34
    %p36 = scmp.eq.s32.totalorder %s35, 0
    %s38 = sadd.s32 %s37, 1
    %s39 = scalar_select %p36, %s37, %s38
    %p42 = pneg %p36
    %p43 = scmp.eq.s32.totalorder %s13, 1
    %p44 = por %p42, %p43
    %p45 = scmp.ne.s32.totalorder %s37, %s40
    %p46 = scmp.eq.s32.totalorder %s13, 0
    %p47 = por %p45, %p46
    %p48 = scmp.ne.s32.totalorder %s37, %s40
    %p49 = scmp.eq.s32.totalorder %s18, 1
    %p50 = por %p48, %p49
    %p51 = scmp.ne.s32.totalorder %s40, %s41
    %p52 = scmp.eq.s32.totalorder %s18, 0
    %p53 = por %p51, %p52
    %p54 = scmp.ne.s32.totalorder %s40, %s41
    %p55 = scmp.eq.s32.totalorder %s19, 1
    %p56 = por %p54, %p55
    %p58 = scmp.ne.s32.totalorder %s41, %s57
    %p59 = scmp.eq.s32.totalorder %s19, 0
    %p60 = por %p58, %p59
    %s61 = ssub.s32 %s20, %s32
    %s62 = ssub.s32 %s21, %s28
    %s63 = sor.u32 %s61, %s62
    %p64 = scmp.eq.s32.totalorder %s63, 0
    %s66 = sadd.s32 %s65, 1
    %s67 = scalar_select %p64, %s65, %s66
    %p70 = pneg %p64
    %p71 = scmp.eq.s32.totalorder %s13, 1
    %p72 = por %p70, %p71
    %p73 = scmp.ne.s32.totalorder %s65, %s68
    %p74 = scmp.eq.s32.totalorder %s13, 0
    %p75 = por %p73, %p74
    %p76 = scmp.ne.s32.totalorder %s65, %s68
    %p77 = scmp.eq.s32.totalorder %s18, 1
    %p78 = por %p76, %p77
    %p79 = scmp.ne.s32.totalorder %s68, %s69
    %p80 = scmp.eq.s32.totalorder %s18, 0
    %p81 = por %p79, %p80
    %p82 = scmp.ne.s32.totalorder %s68, %s69
    %p83 = scmp.eq.s32.totalorder %s19, 1
    %p84 = por %p82, %p83
    %p86 = scmp.ne.s32.totalorder %s69, %s85
    %p87 = scmp.eq.s32.totalorder %s19, 0
    %p88 = por %p86, %p87
    %s90 = sadd.s32 %s89, 1
    %p93 = scmp.eq.s32.totalorder %s13, 1
    %p94 = scmp.ne.s32.totalorder %s89, %s91
    %p95 = scmp.eq.s32.totalorder %s13, 0
    %p96 = por %p94, %p95
    %p97 = scmp.ne.s32.totalorder %s89, %s91
    %p98 = scmp.eq.s32.totalorder %s18, 1
    %p99 = por %p97, %p98
    %p100 = scmp.ne.s32.totalorder %s91, %s92
    %p101 = scmp.eq.s32.totalorder %s18, 0
    %p102 = por %p100, %p101
    %p103 = scmp.ne.s32.totalorder %s91, %s92
    %p104 = scmp.eq.s32.totalorder %s19, 1
    %p105 = por %p103, %p104
    %p107 = scmp.ne.s32.totalorder %s92, %s106
    %p108 = scmp.eq.s32.totalorder %s19, 0
    %p109 = por %p107, %p108
    %s111 = sadd.s32 %s110, 1
    %p114 = scmp.eq.s32.totalorder %s13, 1
    %p115 = scmp.ne.s32.totalorder %s110, %s112
    %p116 = scmp.eq.s32.totalorder %s13, 0
    %p117 = por %p115, %p116
    %p118 = scmp.ne.s32.totalorder %s110, %s112
    %p119 = scmp.eq.s32.totalorder %s18, 1
    %p120 = por %p118, %p119
    %p121 = scmp.ne.s32.totalorder %s112, %s113
    %p122 = scmp.eq.s32.totalorder %s18, 0
    %p123 = por %p121, %p122
    %p124 = scmp.ne.s32.totalorder %s112, %s113
    %p125 = scmp.eq.s32.totalorder %s19, 1
    %p126 = por %p124, %p125
    %p128 = scmp.ne.s32.totalorder %s113, %s127
    %p129 = scmp.eq.s32.totalorder %s19, 0
    %p130 = por %p128, %p129
    %s132 = sadd.s32 %s131, 1
    %p135 = scmp.eq.s32.totalorder %s13, 1
    %p136 = scmp.ne.s32.totalorder %s131, %s133
    %p137 = scmp.eq.s32.totalorder %s13, 0
    %p138 = por %p136, %p137
    %p139 = scmp.ne.s32.totalorder %s131, %s133
    %p140 = scmp.eq.s32.totalorder %s18, 1
    %p141 = por %p139, %p140
    %p142 = scmp.ne.s32.totalorder %s133, %s134
    %p143 = scmp.eq.s32.totalorder %s18, 0
    %p144 = por %p142, %p143
    %p145 = scmp.ne.s32.totalorder %s133, %s134
    %p146 = scmp.eq.s32.totalorder %s19, 1
    %p147 = por %p145, %p146
    %p149 = scmp.ne.s32.totalorder %s134, %s148
    %p150 = scmp.eq.s32.totalorder %s19, 0
    %p151 = por %p149, %p150
    %s152 = ssub.s32 %s20, %s32
    %s153 = ssub.s32 %s21, %s28
    %s154 = sor.u32 %s152, %s153
    %p155 = scmp.eq.s32.totalorder %s154, 0
    %s157 = sadd.s32 %s156, 1
    %s158 = scalar_select %p155, %s156, %s157
    %p161 = pneg %p155
    %p162 = scmp.eq.s32.totalorder %s13, 1
    %p163 = por %p161, %p162
    %p164 = scmp.ne.s32.totalorder %s156, %s159
    %p165 = scmp.eq.s32.totalorder %s13, 0
    %p166 = por %p164, %p165
    %p167 = scmp.ne.s32.totalorder %s156, %s159
    %p168 = scmp.eq.s32.totalorder %s18, 1
    %p169 = por %p167, %p168
    %p170 = scmp.ne.s32.totalorder %s159, %s160
    %p171 = scmp.eq.s32.totalorder %s18, 0
    %p172 = por %p170, %p171
    %p173 = scmp.ne.s32.totalorder %s159, %s160
    %p174 = scmp.eq.s32.totalorder %s19, 1
    %p175 = por %p173, %p174
    %p177 = scmp.ne.s32.totalorder %s160, %s176
    %p178 = scmp.eq.s32.totalorder %s19, 0
    %p179 = por %p177, %p178
    %s180 = ssub.s32 %s20, %s32
    %s181 = ssub.s32 %s21, %s28
    %s182 = sor.u32 %s180, %s181
    %p183 = scmp.eq.s32.totalorder %s182, 0
    %s185 = sadd.s32 %s184, 1
    %s186 = scalar_select %p183, %s184, %s185
    %p189 = pneg %p183
    %p190 = scmp.eq.s32.totalorder %s13, 1
    %p191 = por %p189, %p190
    %p192 = scmp.ne.s32.totalorder %s184, %s187
    %p193 = scmp.eq.s32.totalorder %s13, 0
    %p194 = por %p192, %p193
    %p195 = scmp.ne.s32.totalorder %s184, %s187
    %p196 = scmp.eq.s32.totalorder %s18, 1
    %p197 = por %p195, %p196
    %p198 = scmp.ne.s32.totalorder %s187, %s188
    %p199 = scmp.eq.s32.totalorder %s18, 0
    %p200 = por %p198, %p199
    %p201 = scmp.ne.s32.totalorder %s187, %s188
    %p202 = scmp.eq.s32.totalorder %s19, 1
    %p203 = por %p201, %p202
    %p205 = scmp.ne.s32.totalorder %s188, %s204
    %p206 = scmp.eq.s32.totalorder %s19, 0
    %p207 = por %p205, %p206
    %p208 = scmp.le.s32.totalorder 1, %s13
    %p209 = scmp.lt.s32.totalorder %s13, 3
    %p210 = pnand %p208, %p209
    %p211 = pneg %p210
    // Predicated region
    $region9: #{encoder_layer_grouped_forward.4} parent=5 // pred_check
      _
    $region10: #{encoder_layer_grouped_forward.4} parent=5 // pred_check_branch
      %213 = sbr.rel (%p210) target = $region12
    $region11: #{encoder_layer_grouped_forward.4} parent=5 // pred_region
      %s214 = ssub.s32 %s13, 1
      // Predicated region
      $region13: #{encoder_layer_grouped_forward.4} parent=11 // pred_check
        %p215 = pneg %p102
      $region14: #{encoder_layer_grouped_forward.4} parent=11 // pred_check_branch
        %217 = sbr.rel (%p215) target = $region16
      $region15: #{encoder_layer_grouped_forward.4} parent=11 // pred_region
        _
      $region16: #{encoder_layer_grouped_forward.4} parent=11 // pred_fallthru
        _
      // Predicated region
      $region17: #{encoder_layer_grouped_forward.4} parent=11 // pred_check
        %p218 = pneg %p123
      $region18: #{encoder_layer_grouped_forward.4} parent=11 // pred_check_branch
        %220 = sbr.rel (%p218) target = $region20
      $region19: #{encoder_layer_grouped_forward.4} parent=11 // pred_region
        _
      $region20: #{encoder_layer_grouped_forward.4} parent=11 // pred_fallthru
        _
      // Predicated region
      $region21: #{encoder_layer_grouped_forward.4} parent=11 // pred_check
        %p221 = pneg %p144
      $region22: #{encoder_layer_grouped_forward.4} parent=11 // pred_check_branch
        %223 = sbr.rel (%p221) target = $region24
      $region23: #{encoder_layer_grouped_forward.4} parent=11 // pred_region
        _
      $region24: #{encoder_layer_grouped_forward.4} parent=11 // pred_fallthru
        _
    $region12: #{encoder_layer_grouped_forward.4} parent=5 // pred_fallthru
      _
    %p224 = scmp.lt.s32.totalorder %s13, 2
    // Predicated region
    $region25: #{encoder_layer_grouped_forward.4} parent=5 // pred_check
      %p225 = pneg %p224
    $region26: #{encoder_layer_grouped_forward.4} parent=5 // pred_check_branch
      %227 = sbr.rel (%p225) target = $region28
    $region27: #{encoder_layer_grouped_forward.4} parent=5 // pred_region
      // Predicated region
      $region29: #{encoder_layer_grouped_forward.4} parent=27 // pred_check
        %p228 = pneg %p47
      $region30: #{encoder_layer_grouped_forward.4} parent=27 // pred_check_branch
        %230 = sbr.rel (%p228) target = $region32
      $region31: #{encoder_layer_grouped_forward.4} parent=27 // pred_region
        %s231 = smul.u32 2, %s21
        %p232 = scmp.lt.s32.totalorder %s20, 1
        %s233 = scalar_select %p232, %s20, 1
        %p234 = scmp.lt.s32.totalorder %s231, 1
        %s235 = scalar_select %p234, %s231, 1
        %s236 = smul.addr %s233, 4
        %s237 = sadd.s32 %s235, %s236
        %s238 = smul.addr %s237, 4
        %s239 = scalar_lea.vmem %s0, %s238
        %s240 = smul.u32 2, %s21
      $region32: #{encoder_layer_grouped_forward.4} parent=27 // pred_fallthru
        _
      // Predicated region
      $region33: #{encoder_layer_grouped_forward.4} parent=27 // pred_check
        %p241 = pneg %p75
      $region34: #{encoder_layer_grouped_forward.4} parent=27 // pred_check_branch
        %243 = sbr.rel (%p241) target = $region36
      $region35: #{encoder_layer_grouped_forward.4} parent=27 // pred_region
        %s244 = smul.u32 2, %s21
        %p245 = scmp.lt.s32.totalorder %s20, 1
        %s246 = scalar_select %p245, %s20, 1
        %p247 = scmp.lt.s32.totalorder %s244, 1
        %s248 = scalar_select %p247, %s244, 1
        %s249 = smul.addr %s246, 2
        %s250 = sadd.s32 %s248, %s249
        %s251 = smul.addr %s250, 4
        %s252 = scalar_lea.vmem %s1, %s251
        %s253 = smul.u32 2, %s21
      $region36: #{encoder_layer_grouped_forward.4} parent=27 // pred_fallthru
        _
    $region28: #{encoder_layer_grouped_forward.4} parent=5 // pred_fallthru
      _
    %p254 = scmp.le.s32.totalorder 1, %s13
    %p255 = scmp.lt.s32.totalorder %s13, 3
    %p256 = pnand %p254, %p255
    %p257 = pneg %p256
    // Predicated region
    $region37: #{encoder_layer_grouped_forward.4} parent=5 // pred_check
      _
    $region38: #{encoder_layer_grouped_forward.4} parent=5 // pred_check_branch
      %259 = sbr.rel (%p256) target = $region40
    $region39: #{encoder_layer_grouped_forward.4} parent=5 // pred_region
      %s260 = ssub.s32 %s13, 1
      %s261 = smul.u32 2, %s23
      %p262 = scmp.lt.s32.totalorder %s22, 1
      %s263 = scalar_select %p262, %s22, 1
      %p264 = scmp.lt.s32.totalorder %s261, 1
      %s265 = scalar_select %p264, %s261, 1
      %s266 = smul.addr %s263, 4
      %s267 = sadd.s32 %s265, %s266
      %s268 = smul.addr %s267, 4
      %s269 = scalar_lea.vmem %s0, %s268
      %p270 = pneg %p53
      %p271 = pneg %p50
      %s272 = smul.u32 2, %s23
      %p273 = scmp.lt.s32.totalorder %s22, 1
      %s274 = scalar_select %p273, %s22, 1
      %p275 = scmp.lt.s32.totalorder %s272, 1
      %s276 = scalar_select %p275, %s272, 1
      %s277 = smul.addr %s274, 2
      %s278 = sadd.s32 %s276, %s277
      %s279 = smul.addr %s278, 4
      %s280 = scalar_lea.vmem %s1, %s279
      %p281 = pneg %p81
      %p282 = pneg %p78
      %p283 = pneg %p102
      %p284 = pneg %p99
      %p285 = pneg %p123
      %p286 = pneg %p120
      %p287 = pneg %p144
      %p288 = pneg %p141
      %p289 = pneg %p172
      %p290 = pneg %p169
      %s291 = smul.u32 2, %s23
      %p292 = scmp.lt.s32.totalorder %s22, 1
      %s293 = scalar_select %p292, %s22, 1
      %p294 = scmp.lt.s32.totalorder %s291, 1
      %s295 = scalar_select %p294, %s291, 1
      %s296 = smul.addr %s293, 2
      %s297 = sadd.s32 %s295, %s296
      %s298 = smul.addr %s297, 4
      %s299 = scalar_lea.vmem %s5, %s298
      %p300 = pneg %p200
      %p301 = pneg %p197
      %p302 = scmp.lt.s32.totalorder %s22, 1
      %s303 = scalar_select %p302, %s22, 1
      %p304 = scmp.lt.s32.totalorder %s23, 0
      %s305 = scalar_select %p304, %s23, 0
      %s306 = smul.addr %s305, 2
      %s307 = smul.addr %s303, 2
      %s308 = sadd.s32 %s306, %s307
      %s309 = smul.addr %s308, 8
      %s310 = scalar_lea.vmem %s6, %s309
      %s311 = smul.u32 2, %s23
      %p312 = scmp.lt.s32.totalorder %s22, 1
      %s313 = scalar_select %p312, %s22, 1
      %p314 = scmp.lt.s32.totalorder %s311, 1
      %s315 = scalar_select %p314, %s311, 1
      %s316 = smul.addr %s313, 4
      %s317 = sadd.s32 %s315, %s316
      %s318 = smul.addr %s317, 4
      %s319 = scalar_lea.vmem %s0, %s318
      %s320 = smul.u32 2, %s23
      %s321 = smul.u32 2, %s23
      %p322 = scmp.lt.s32.totalorder %s22, 1
      %s323 = scalar_select %p322, %s22, 1
      %p324 = scmp.lt.s32.totalorder %s321, 1
      %s325 = scalar_select %p324, %s321, 1
      %s326 = smul.addr %s323, 2
      %s327 = sadd.s32 %s325, %s326
      %s328 = smul.addr %s327, 4
      %s329 = scalar_lea.vmem %s1, %s328
      %s330 = smul.u32 2, %s23
      %s331 = smul.u32 2, %s23
      %p332 = scmp.lt.s32.totalorder %s22, 1
      %s333 = scalar_select %p332, %s22, 1
      %p334 = scmp.lt.s32.totalorder %s331, 1
      %s335 = scalar_select %p334, %s331, 1
      %s336 = smul.addr %s333, 2
      %s337 = sadd.s32 %s335, %s336
      %s338 = smul.addr %s337, 4
      %s339 = scalar_lea.vmem %s5, %s338
      %s340 = smul.u32 2, %s23
      %p341 = scmp.lt.s32.totalorder %s22, 1
      %s342 = scalar_select %p341, %s22, 1
      %p343 = scmp.lt.s32.totalorder %s23, 0
      %s344 = scalar_select %p343, %s23, 0
      %s345 = smul.addr %s344, 2
      %s346 = smul.addr %s342, 2
      %s347 = sadd.s32 %s345, %s346
      %s348 = smul.addr %s347, 8
      %s349 = scalar_lea.vmem %s6, %s348
      %v351 = vld [vmem:[%s319] sm:$0xff]
      %v352 = vld [vmem:[%s319 + $0x8] sm:$0xff]
      %v353 = vunpack.c.l.bf16 %v351
      %v354 = vunpack.c.h.bf16 %v351
      %v355 = vunpack.c.l.bf16 %v352
      %v356 = vunpack.c.h.bf16 %v352
      %v357 = vld [vmem:[%s2] sm:$0xff]
      %v358 = vld [vmem:[%s2 + $0x8] sm:$0xff]
      %360 = vset.pattern.permute.xlu0 0
      %361 = vperm.xlu0 %360, %v357
      %v362 = vpop.permute.xlu0 %361
      %365 = vset.pattern.permute.xlu0 0
      %366 = vperm.xlu0 %365, %v358
      %v367 = vpop.permute.xlu0 %366
      %v369 = vmul.f32 %v353, %v362
      %v370 = vmul.f32 %v354, %v362
      %v371 = vmul.f32 %v355, %v367
      %v372 = vmul.f32 %v356, %v367
      %v373 = vld [vmem:[%s3] sm:$0xff]
      %v374 = vld [vmem:[%s3 + $0x8] sm:$0xff]
      %376 = vset.pattern.permute.xlu0 0
      %377 = vperm.xlu0 %376, %v373
      %v378 = vpop.permute.xlu0 %377
      %381 = vset.pattern.permute.xlu0 0
      %382 = vperm.xlu0 %381, %v374
      %v383 = vpop.permute.xlu0 %382
      %v385 = vadd.f32 %v369, %v378
      %v386 = vadd.f32 %v370, %v378
      %v387 = vadd.f32 %v371, %v383
      %v388 = vadd.f32 %v372, %v383
      %v389 = vmin.f32 %v385, 20.0
      %v390 = vmin.f32 %v386, 20.0
      %v391 = vmin.f32 %v387, 20.0
      %v392 = vmin.f32 %v388, 20.0
      %v393 = vmul.f32 %v389, 1.442695
      %v394 = vpow.pop %v393
      %v395 = vmul.f32 %v390, 1.442695
      %v396 = vpow.pop %v395
      %v397 = vmul.f32 %v391, 1.442695
      %v398 = vpow.pop %v397
      %v399 = vmul.f32 %v392, 1.442695
      %v400 = vpow.pop %v399
      %v401 = vadd.f32 %v394, 1.0
      %v402 = vadd.f32 %v396, 1.0
      %v403 = vadd.f32 %v398, 1.0
      %v404 = vadd.f32 %v400, 1.0
      %v405 = vmul.f32 %v401, %v401
      %v406 = vmul.f32 %v402, %v402
      %v407 = vmul.f32 %v403, %v403
      %v408 = vmul.f32 %v404, %v404
      %v409 = vsub.f32 %v405, 1.0
      %v410 = vsub.f32 %v406, 1.0
      %v411 = vsub.f32 %v407, 1.0
      %v412 = vsub.f32 %v408, 1.0
      %v413 = vmul.f32 %v385, %v409
      %v414 = vmul.f32 %v386, %v410
      %v415 = vmul.f32 %v387, %v411
      %v416 = vmul.f32 %v388, %v412
      %v417 = vadd.f32 %v405, 1.0
      %v418 = vadd.f32 %v406, 1.0
      %v419 = vadd.f32 %v407, 1.0
      %v420 = vadd.f32 %v408, 1.0
      %v421 = vrcp.pop %v417
      %v422 = vmul.f32 %v413, %v421
      %v423 = vrcp.pop %v418
      %v424 = vmul.f32 %v414, %v423
      %v425 = vrcp.pop %v419
      %v426 = vmul.f32 %v415, %v425
      %v427 = vrcp.pop %v420
      %v428 = vmul.f32 %v416, %v427
      %v429 = vld [vmem:[%s329] sm:$0xff]
      %v431 = vcombine.high %v429, %v429
      %v433 = vpack.c.bf16 %v426, %v422
      %v434 = vpack.c.bf16 %v428, %v424
      %v435 = vpack.c.bf16 %v429, %v429
      %v436 = vpack.c.bf16 %v431, %v431
      %v437 = vld [vmem:[%s4] sm:$0xf]
      %vm438 = vcmask 162816
      %v440 = vsel %vm438, %v437, 0
      %vm442 = vcmask 1041408
      %v444 = vsel %vm442, %v435, 0
      %v447 = vsel %vm442, %v436, 0
      %449 = vmatprep.subr.bf16.mxu0 %v434
      %450 = vmatpush1.bf16.msra.mxu0 %v433
      %451 = vmatprep.subr.bf16.mxu0 %v447
      %452 = vmatpush1.bf16.msra.mxu0 %v444
      %453 = vmatprep.subr.bf16.mxu0 0
      %454 = vmatpush1.bf16.msra.mxu0 0
      %455 = vmatprep.subr.bf16.mxu0 0
      %456 = vmatpush1.bf16.msra.mxu0 0
      %457 = vmatprep.subr.bf16.mxu0 0
      %458 = vmatpush1.bf16.msra.mxu0 0
      %459 = vmatprep.subr.bf16.mxu0 0
      %460 = vmatpush1.bf16.msra.mxu0 0
      %461 = vmatprep.subr.bf16.mxu0 0
      %462 = vmatpush1.bf16.msra.mxu0 0
      %463 = vmatprep.subr.bf16.mxu0 0
      %464 = vmatpush1.bf16.msra.mxu0 0
      %465 = vmatprep.subr.bf16.mxu0 0
      %466 = vmatpush1.bf16.msra.mxu0 0
      %467 = vmatprep.subr.bf16.mxu0 0
      %468 = vmatpush1.bf16.msra.mxu0 0
      %469 = vmatprep.subr.bf16.mxu0 0
      %470 = vmatpush1.bf16.msra.mxu0 0
      %471 = vmatprep.subr.bf16.mxu0 0
      %472 = vmatpush1.bf16.msra.mxu0 0
      %473 = vmatprep.subr.bf16.mxu0 0
      %474 = vmatpush1.bf16.msra.mxu0 0
      %475 = vmatprep.subr.bf16.mxu0 0
      %476 = vmatpush1.bf16.msra.mxu0 0
      %477 = vmatprep.subr.bf16.mxu0 0
      %478 = vmatpush1.bf16.msra.mxu0 0
      %479 = vmatprep.subr.bf16.mxu0 0
      %480 = vmatpush1.bf16.msra.mxu0 0
      %481 = vmatprep.mubr.bf16.mxu0 0
      %482 = vmatmul.mubr.bf16.gmra.mrb[0].mxu0 %v440
      %v483 = vpop.f32.mrb[0].mxu0
      %v484 = vadd.f32 0.0, %v483
      %v485 = vpop.f32.mrb[0].mxu0
      %v486 = vadd.f32 0.0, %v485
      %v487 = vpop.f32.mrb[0].mxu0
      %v488 = vpop.f32.mrb[0].mxu0
      %489 = vdwg.mxu0
      %v490 = vpack.c.bf16 %v484, %v484
      %v491 = vpack.c.bf16 %v486, %v486
      %v494 = vunpack.c.l.b16 %v490
      %v495 = vunpack.c.l.b16 %v491
      %v496 = vpack.c.b16 %v495, %v494
      %498 = vst [vmem:[%s339] sm:$0xff] %v496
      %v499 = vmul.f32 %v484, %v484
      %v500 = vmul.f32 %v486, %v486
      %v501 = vadd.f32 %v484, %v486
      %502 = vadd.xlane.f32.xlu0 %v501
      %v503 = vpop.xlane.xlu0 %502
      %v504 = vadd.f32 %v499, %v500
      %505 = vadd.xlane.f32.xlu0 %v504
      %v506 = vpop.xlane.xlu0 %505
      %vm507 = vcmask 7168
      %508 = vst.msk [vmem:[%s349] sm:$0xff] %vm507, %v503
      %509 = vst.msk [vmem:[%s349 + $0x8] sm:$0xff] %vm507, %v506
      %s510 = smul.u32 2, %s23
      %p511 = scmp.lt.s32.totalorder %s22, 1
      %s512 = scalar_select %p511, %s22, 1
      %p513 = scmp.lt.s32.totalorder %s510, 1
      %s514 = scalar_select %p513, %s510, 1
      %s515 = smul.addr %s512, 2
      %s516 = sadd.s32 %s514, %s515
      %s517 = smul.addr %s516, 4
      %s518 = scalar_lea.vmem %s5, %s517
      %p519 = scmp.lt.s32.totalorder %s22, 1
      %s520 = scalar_select %p519, %s22, 1
      %p521 = scmp.lt.s32.totalorder %s23, 0
      %s522 = scalar_select %p521, %s23, 0
      %s523 = smul.addr %s522, 2
      %s524 = smul.addr %s520, 2
      %s525 = sadd.s32 %s523, %s524
      %s526 = smul.addr %s525, 8
      %s527 = scalar_lea.vmem %s6, %s526
      // Predicated region
      $region41: #{encoder_layer_grouped_forward.4} parent=39 // pred_check
        %p528 = pneg %p169
      $region42: #{encoder_layer_grouped_forward.4} parent=39 // pred_check_branch
        %530 = sbr.rel (%p528) target = $region44
      $region43: #{encoder_layer_grouped_forward.4} parent=39 // pred_region
        %s531 = smul.u32 2, %s23
      $region44: #{encoder_layer_grouped_forward.4} parent=39 // pred_fallthru
        _
      // Predicated region
      $region45: #{encoder_layer_grouped_forward.4} parent=39 // pred_check
        %p532 = pneg %p197
      $region46: #{encoder_layer_grouped_forward.4} parent=39 // pred_check_branch
        %534 = sbr.rel (%p532) target = $region48
      $region47: #{encoder_layer_grouped_forward.4} parent=39 // pred_region
        _
      $region48: #{encoder_layer_grouped_forward.4} parent=39 // pred_fallthru
        _
    $region40: #{encoder_layer_grouped_forward.4} parent=5 // pred_fallthru
      _
    %p535 = scmp.le.s32.totalorder 2, %s13
    // Predicated region
    $region49: #{encoder_layer_grouped_forward.4} parent=5 // pred_check
      %p536 = pneg %p535
    $region50: #{encoder_layer_grouped_forward.4} parent=5 // pred_check_branch
      %538 = sbr.rel (%p536) target = $region52
    $region51: #{encoder_layer_grouped_forward.4} parent=5 // pred_region
      %s539 = ssub.s32 %s13, 2
      // Predicated region
      $region53: #{encoder_layer_grouped_forward.4} parent=51 // pred_check
        %p540 = pneg %p175
      $region54: #{encoder_layer_grouped_forward.4} parent=51 // pred_check_branch
        %542 = sbr.rel (%p540) target = $region56
      $region55: #{encoder_layer_grouped_forward.4} parent=51 // pred_region
        %s543 = smul.u32 2, %s25
        %p544 = scmp.lt.s32.totalorder %s24, 1
        %s545 = scalar_select %p544, %s24, 1
        %p546 = scmp.lt.s32.totalorder %s543, 1
        %s547 = scalar_select %p546, %s543, 1
        %s548 = smul.addr %s545, 2
        %s549 = sadd.s32 %s547, %s548
        %s550 = smul.addr %s549, 4
        %s551 = scalar_lea.vmem %s5, %s550
      $region56: #{encoder_layer_grouped_forward.4} parent=51 // pred_fallthru
        _
      // Predicated region
      $region57: #{encoder_layer_grouped_forward.4} parent=51 // pred_check
        %p552 = pneg %p203
      $region58: #{encoder_layer_grouped_forward.4} parent=51 // pred_check_branch
        %554 = sbr.rel (%p552) target = $region60
      $region59: #{encoder_layer_grouped_forward.4} parent=51 // pred_region
        %p555 = scmp.lt.s32.totalorder %s24, 1
        %s556 = scalar_select %p555, %s24, 1
        %p557 = scmp.lt.s32.totalorder %s25, 0
        %s558 = scalar_select %p557, %s25, 0
        %s559 = smul.addr %s558, 2
        %s560 = smul.addr %s556, 2
        %s561 = sadd.s32 %s559, %s560
        %s562 = smul.addr %s561, 8
        %s563 = scalar_lea.vmem %s6, %s562
      $region60: #{encoder_layer_grouped_forward.4} parent=51 // pred_fallthru
        _
    $region52: #{encoder_layer_grouped_forward.4} parent=5 // pred_fallthru
      _
  $region6: #{encoder_layer_grouped_forward.4} parent=0 // loop_footer
    %s17 = sadd.s32 1, %s13
  $region7: #{encoder_layer_grouped_forward.4} parent=0 // loop_footer_branch
    %12 = sbr.rel target = $region3
  $region8: #{encoder_layer_grouped_forward.4} parent=0 // loop_exit
    _

// kernel: encoder_layer_grouped_forward.5
$region0: #{encoder_layer_grouped_forward.5}
  #allocation0 [shape = 'u32[]', space=smem, size = 0x4, offset = 0x4, fixed_abs, tag = 'smem constant byte address 0x4 - core index']
  #allocation1 [shape = 'u32[144,128]{1,0:T(1,128)}', space=vmem, size = 0x12000, scoped, tag = 'internal scratch']
  %s0 = inlined_call_operand.vmem [shape: bf16[2,8,256], index: 0, kind: input, shape index: {}]
  %s1 = inlined_call_operand.vmem [shape: f32[2,4,256], index: 1, kind: input, shape index: {}]
  %s2 = inlined_call_operand.vmem [shape: f32[2,4,256], index: 2, kind: input, shape index: {}]
  %s3 = inlined_call_operand.vmem [shape: f32[8,1], index: 3, kind: input, shape index: {}]
  %s4 = inlined_call_operand.vmem [shape: f32[8,1], index: 4, kind: input, shape index: {}]
  %s5 = inlined_call_operand.vmem [shape: bf16[127,64], index: 5, kind: input, shape index: {}]
  %s6 = inlined_call_operand.vmem [shape: bf16[256,64], index: 6, kind: input, shape index: {}]
  %s7 = inlined_call_operand.vmem [shape: f32[2,8,64], index: 7, kind: output, shape index: {0}]
  %s8 = inlined_call_operand.vmem [shape: f32[2,8,64], index: 8, kind: output, shape index: {1}]
  %9 = xla_tuple %s7, %s8
  %s10 = sld [smem:[#allocation0]]
  $region69: #{encoder_layer_grouped_forward.5} parent=0
    _
  %s12 = ssub.s32 1, %s10
  %s13 = scalar_select 0, %s12, %s10
  loop: start=0, step=1, limit=4
  $region2: #{encoder_layer_grouped_forward.5} parent=0 // loop_pre_header
    _
  $region3: #{encoder_layer_grouped_forward.5} parent=0 // loop_header
    %s15 = sphi 0, %s19
    %p16 = scmp.ge.s32.totalorder %s15, 4
    %s25 = sphi 0, %s27
    %s28 = sphi 0, %s25
    %s29 = sphi 0, %s28
    %s45 = sphi 0, %s29
    %s51 = sphi 0, %s53
    %s54 = sphi 0, %s51
    %s55 = sphi 0, %s54
    %s71 = sphi 0, %s55
    %s77 = sphi 0, %s79
    %s80 = sphi 0, %s77
    %s81 = sphi 0, %s80
    %s97 = sphi 0, %s81
    %s101 = sphi 0, %s101
    %s103 = sphi 0, %s101
    %s104 = sphi 0, %s103
    %s118 = sphi 0, %s104
    %s122 = sphi 0, %s122
    %s124 = sphi 0, %s122
    %s125 = sphi 0, %s124
    %s139 = sphi 0, %s125
    %s143 = sphi 0, %s143
    %s145 = sphi 0, %s143
    %s146 = sphi 0, %s145
    %s160 = sphi 0, %s146
    %s164 = sphi 0, %s164
    %s166 = sphi 0, %s164
    %s167 = sphi 0, %s166
    %s181 = sphi 0, %s167
    %s187 = sphi 0, %s189
    %s190 = sphi 0, %s187
    %s191 = sphi 0, %s190
    %s207 = sphi 0, %s191
    %s213 = sphi 0, %s215
    %s216 = sphi 0, %s213
    %s217 = sphi 0, %s216
    %s233 = sphi 0, %s217
  $region4: #{encoder_layer_grouped_forward.5} parent=0 // loop_header_branch
    %18 = sbr.rel (%p16) target = $region8
  $region5: #{encoder_layer_grouped_forward.5} parent=0 // loop_body
    %s20 = ssub.s32 %s15, 1
    %s21 = ssub.s32 %s15, 2
    %s22 = sadd.s32 %s15, 1
    %s23 = ssub.s32 %s15, %s22
    %p24 = scmp.eq.s32.totalorder %s23, 0
    %s26 = sadd.s32 %s25, 1
    %s27 = scalar_select %p24, %s25, %s26
    %p30 = pneg %p24
    %p31 = scmp.eq.s32.totalorder %s15, 1
    %p32 = por %p30, %p31
    %p33 = scmp.ne.s32.totalorder %s25, %s28
    %p34 = scmp.eq.s32.totalorder %s15, 0
    %p35 = por %p33, %p34
    %p36 = scmp.ne.s32.totalorder %s25, %s28
    %p37 = scmp.eq.s32.totalorder %s20, 1
    %p38 = por %p36, %p37
    %p39 = scmp.ne.s32.totalorder %s28, %s29
    %p40 = scmp.eq.s32.totalorder %s20, 0
    %p41 = por %p39, %p40
    %p42 = scmp.ne.s32.totalorder %s28, %s29
    %p43 = scmp.eq.s32.totalorder %s21, 1
    %p44 = por %p42, %p43
    %p46 = scmp.ne.s32.totalorder %s29, %s45
    %p47 = scmp.eq.s32.totalorder %s21, 0
    %p48 = por %p46, %p47
    %s49 = ssub.s32 %s15, %s22
    %p50 = scmp.eq.s32.totalorder %s49, 0
    %s52 = sadd.s32 %s51, 1
    %s53 = scalar_select %p50, %s51, %s52
    %p56 = pneg %p50
    %p57 = scmp.eq.s32.totalorder %s15, 1
    %p58 = por %p56, %p57
    %p59 = scmp.ne.s32.totalorder %s51, %s54
    %p60 = scmp.eq.s32.totalorder %s15, 0
    %p61 = por %p59, %p60
    %p62 = scmp.ne.s32.totalorder %s51, %s54
    %p63 = scmp.eq.s32.totalorder %s20, 1
    %p64 = por %p62, %p63
    %p65 = scmp.ne.s32.totalorder %s54, %s55
    %p66 = scmp.eq.s32.totalorder %s20, 0
    %p67 = por %p65, %p66
    %p68 = scmp.ne.s32.totalorder %s54, %s55
    %p69 = scmp.eq.s32.totalorder %s21, 1
    %p70 = por %p68, %p69
    %p72 = scmp.ne.s32.totalorder %s55, %s71
    %p73 = scmp.eq.s32.totalorder %s21, 0
    %p74 = por %p72, %p73
    %s75 = ssub.s32 %s15, %s22
    %p76 = scmp.eq.s32.totalorder %s75, 0
    %s78 = sadd.s32 %s77, 1
    %s79 = scalar_select %p76, %s77, %s78
    %p82 = pneg %p76
    %p83 = scmp.eq.s32.totalorder %s15, 1
    %p84 = por %p82, %p83
    %p85 = scmp.ne.s32.totalorder %s77, %s80
    %p86 = scmp.eq.s32.totalorder %s15, 0
    %p87 = por %p85, %p86
    %p88 = scmp.ne.s32.totalorder %s77, %s80
    %p89 = scmp.eq.s32.totalorder %s20, 1
    %p90 = por %p88, %p89
    %p91 = scmp.ne.s32.totalorder %s80, %s81
    %p92 = scmp.eq.s32.totalorder %s20, 0
    %p93 = por %p91, %p92
    %p94 = scmp.ne.s32.totalorder %s80, %s81
    %p95 = scmp.eq.s32.totalorder %s21, 1
    %p96 = por %p94, %p95
    %p98 = scmp.ne.s32.totalorder %s81, %s97
    %p99 = scmp.eq.s32.totalorder %s21, 0
    %p100 = por %p98, %p99
    %s102 = sadd.s32 %s101, 1
    %p105 = scmp.eq.s32.totalorder %s15, 1
    %p106 = scmp.ne.s32.totalorder %s101, %s103
    %p107 = scmp.eq.s32.totalorder %s15, 0
    %p108 = por %p106, %p107
    %p109 = scmp.ne.s32.totalorder %s101, %s103
    %p110 = scmp.eq.s32.totalorder %s20, 1
    %p111 = por %p109, %p110
    %p112 = scmp.ne.s32.totalorder %s103, %s104
    %p113 = scmp.eq.s32.totalorder %s20, 0
    %p114 = por %p112, %p113
    %p115 = scmp.ne.s32.totalorder %s103, %s104
    %p116 = scmp.eq.s32.totalorder %s21, 1
    %p117 = por %p115, %p116
    %p119 = scmp.ne.s32.totalorder %s104, %s118
    %p120 = scmp.eq.s32.totalorder %s21, 0
    %p121 = por %p119, %p120
    %s123 = sadd.s32 %s122, 1
    %p126 = scmp.eq.s32.totalorder %s15, 1
    %p127 = scmp.ne.s32.totalorder %s122, %s124
    %p128 = scmp.eq.s32.totalorder %s15, 0
    %p129 = por %p127, %p128
    %p130 = scmp.ne.s32.totalorder %s122, %s124
    %p131 = scmp.eq.s32.totalorder %s20, 1
    %p132 = por %p130, %p131
    %p133 = scmp.ne.s32.totalorder %s124, %s125
    %p134 = scmp.eq.s32.totalorder %s20, 0
    %p135 = por %p133, %p134
    %p136 = scmp.ne.s32.totalorder %s124, %s125
    %p137 = scmp.eq.s32.totalorder %s21, 1
    %p138 = por %p136, %p137
    %p140 = scmp.ne.s32.totalorder %s125, %s139
    %p141 = scmp.eq.s32.totalorder %s21, 0
    %p142 = por %p140, %p141
    %s144 = sadd.s32 %s143, 1
    %p147 = scmp.eq.s32.totalorder %s15, 1
    %p148 = scmp.ne.s32.totalorder %s143, %s145
    %p149 = scmp.eq.s32.totalorder %s15, 0
    %p150 = por %p148, %p149
    %p151 = scmp.ne.s32.totalorder %s143, %s145
    %p152 = scmp.eq.s32.totalorder %s20, 1
    %p153 = por %p151, %p152
    %p154 = scmp.ne.s32.totalorder %s145, %s146
    %p155 = scmp.eq.s32.totalorder %s20, 0
    %p156 = por %p154, %p155
    %p157 = scmp.ne.s32.totalorder %s145, %s146
    %p158 = scmp.eq.s32.totalorder %s21, 1
    %p159 = por %p157, %p158
    %p161 = scmp.ne.s32.totalorder %s146, %s160
    %p162 = scmp.eq.s32.totalorder %s21, 0
    %p163 = por %p161, %p162
    %s165 = sadd.s32 %s164, 1
    %p168 = scmp.eq.s32.totalorder %s15, 1
    %p169 = scmp.ne.s32.totalorder %s164, %s166
    %p170 = scmp.eq.s32.totalorder %s15, 0
    %p171 = por %p169, %p170
    %p172 = scmp.ne.s32.totalorder %s164, %s166
    %p173 = scmp.eq.s32.totalorder %s20, 1
    %p174 = por %p172, %p173
    %p175 = scmp.ne.s32.totalorder %s166, %s167
    %p176 = scmp.eq.s32.totalorder %s20, 0
    %p177 = por %p175, %p176
    %p178 = scmp.ne.s32.totalorder %s166, %s167
    %p179 = scmp.eq.s32.totalorder %s21, 1
    %p180 = por %p178, %p179
    %p182 = scmp.ne.s32.totalorder %s167, %s181
    %p183 = scmp.eq.s32.totalorder %s21, 0
    %p184 = por %p182, %p183
    %s185 = ssub.s32 %s15, %s22
    %p186 = scmp.eq.s32.totalorder %s185, 0
    %s188 = sadd.s32 %s187, 1
    %s189 = scalar_select %p186, %s187, %s188
    %p192 = pneg %p186
    %p193 = scmp.eq.s32.totalorder %s15, 1
    %p194 = por %p192, %p193
    %p195 = scmp.ne.s32.totalorder %s187, %s190
    %p196 = scmp.eq.s32.totalorder %s15, 0
    %p197 = por %p195, %p196
    %p198 = scmp.ne.s32.totalorder %s187, %s190
    %p199 = scmp.eq.s32.totalorder %s20, 1
    %p200 = por %p198, %p199
    %p201 = scmp.ne.s32.totalorder %s190, %s191
    %p202 = scmp.eq.s32.totalorder %s20, 0
    %p203 = por %p201, %p202
    %p204 = scmp.ne.s32.totalorder %s190, %s191
    %p205 = scmp.eq.s32.totalorder %s21, 1
    %p206 = por %p204, %p205
    %p208 = scmp.ne.s32.totalorder %s191, %s207
    %p209 = scmp.eq.s32.totalorder %s21, 0
    %p210 = por %p208, %p209
    %s211 = ssub.s32 %s15, %s22
    %p212 = scmp.eq.s32.totalorder %s211, 0
    %s214 = sadd.s32 %s213, 1
    %s215 = scalar_select %p212, %s213, %s214
    %p218 = pneg %p212
    %p219 = scmp.eq.s32.totalorder %s15, 1
    %p220 = por %p218, %p219
    %p221 = scmp.ne.s32.totalorder %s213, %s216
    %p222 = scmp.eq.s32.totalorder %s15, 0
    %p223 = por %p221, %p222
    %p224 = scmp.ne.s32.totalorder %s213, %s216
    %p225 = scmp.eq.s32.totalorder %s20, 1
    %p226 = por %p224, %p225
    %p227 = scmp.ne.s32.totalorder %s216, %s217
    %p228 = scmp.eq.s32.totalorder %s20, 0
    %p229 = por %p227, %p228
    %p230 = scmp.ne.s32.totalorder %s216, %s217
    %p231 = scmp.eq.s32.totalorder %s21, 1
    %p232 = por %p230, %p231
    %p234 = scmp.ne.s32.totalorder %s217, %s233
    %p235 = scmp.eq.s32.totalorder %s21, 0
    %p236 = por %p234, %p235
    %p237 = scmp.le.s32.totalorder 1, %s15
    %p238 = scmp.lt.s32.totalorder %s15, 3
    %p239 = pnand %p237, %p238
    %p240 = pneg %p239
    // Predicated region
    $region9: #{encoder_layer_grouped_forward.5} parent=5 // pred_check
      _
    $region10: #{encoder_layer_grouped_forward.5} parent=5 // pred_check_branch
      %242 = sbr.rel (%p239) target = $region12
    $region11: #{encoder_layer_grouped_forward.5} parent=5 // pred_region
      %s243 = ssub.s32 %s15, 1
      // Predicated region
      $region13: #{encoder_layer_grouped_forward.5} parent=11 // pred_check
        %p244 = pneg %p114
      $region14: #{encoder_layer_grouped_forward.5} parent=11 // pred_check_branch
        %246 = sbr.rel (%p244) target = $region16
      $region15: #{encoder_layer_grouped_forward.5} parent=11 // pred_region
        _
      $region16: #{encoder_layer_grouped_forward.5} parent=11 // pred_fallthru
        _
      // Predicated region
      $region17: #{encoder_layer_grouped_forward.5} parent=11 // pred_check
        %p247 = pneg %p135
      $region18: #{encoder_layer_grouped_forward.5} parent=11 // pred_check_branch
        %249 = sbr.rel (%p247) target = $region20
      $region19: #{encoder_layer_grouped_forward.5} parent=11 // pred_region
        _
      $region20: #{encoder_layer_grouped_forward.5} parent=11 // pred_fallthru
        _
      // Predicated region
      $region21: #{encoder_layer_grouped_forward.5} parent=11 // pred_check
        %p250 = pneg %p156
      $region22: #{encoder_layer_grouped_forward.5} parent=11 // pred_check_branch
        %252 = sbr.rel (%p250) target = $region24
      $region23: #{encoder_layer_grouped_forward.5} parent=11 // pred_region
        _
      $region24: #{encoder_layer_grouped_forward.5} parent=11 // pred_fallthru
        _
      // Predicated region
      $region25: #{encoder_layer_grouped_forward.5} parent=11 // pred_check
        %p253 = pneg %p177
      $region26: #{encoder_layer_grouped_forward.5} parent=11 // pred_check_branch
        %255 = sbr.rel (%p253) target = $region28
      $region27: #{encoder_layer_grouped_forward.5} parent=11 // pred_region
        _
      $region28: #{encoder_layer_grouped_forward.5} parent=11 // pred_fallthru
        _
    $region12: #{encoder_layer_grouped_forward.5} parent=5 // pred_fallthru
      _
    %p256 = scmp.lt.s32.totalorder %s15, 2
    // Predicated region
    $region29: #{encoder_layer_grouped_forward.5} parent=5 // pred_check
      %p257 = pneg %p256
    $region30: #{encoder_layer_grouped_forward.5} parent=5 // pred_check_branch
      %259 = sbr.rel (%p257) target = $region32
    $region31: #{encoder_layer_grouped_forward.5} parent=5 // pred_region
      // Predicated region
      $region33: #{encoder_layer_grouped_forward.5} parent=31 // pred_check
        %p260 = pneg %p35
      $region34: #{encoder_layer_grouped_forward.5} parent=31 // pred_check_branch
        %262 = sbr.rel (%p260) target = $region36
      $region35: #{encoder_layer_grouped_forward.5} parent=31 // pred_region
        %p263 = scmp.lt.s32.totalorder %s15, 1
        %s264 = scalar_select %p263, %s15, 1
        %s265 = smul.addr %s264, 2
        %s266 = smul.addr %s265, 4
        %s267 = scalar_lea.vmem %s0, %s266
      $region36: #{encoder_layer_grouped_forward.5} parent=31 // pred_fallthru
        _
      // Predicated region
      $region37: #{encoder_layer_grouped_forward.5} parent=31 // pred_check
        %p268 = pneg %p61
      $region38: #{encoder_layer_grouped_forward.5} parent=31 // pred_check_branch
        %270 = sbr.rel (%p268) target = $region40
      $region39: #{encoder_layer_grouped_forward.5} parent=31 // pred_region
        %p271 = scmp.lt.s32.totalorder %s15, 1
        %s272 = scalar_select %p271, %s15, 1
        %s273 = smul.addr %s272, 2
        %s274 = smul.addr %s273, 4
        %s275 = scalar_lea.vmem %s1, %s274
      $region40: #{encoder_layer_grouped_forward.5} parent=31 // pred_fallthru
        _
      // Predicated region
      $region41: #{encoder_layer_grouped_forward.5} parent=31 // pred_check
        %p276 = pneg %p87
      $region42: #{encoder_layer_grouped_forward.5} parent=31 // pred_check_branch
        %278 = sbr.rel (%p276) target = $region44
      $region43: #{encoder_layer_grouped_forward.5} parent=31 // pred_region
        %p279 = scmp.lt.s32.totalorder %s15, 1
        %s280 = scalar_select %p279, %s15, 1
        %s281 = smul.addr %s280, 2
        %s282 = smul.addr %s281, 4
        %s283 = scalar_lea.vmem %s2, %s282
      $region44: #{encoder_layer_grouped_forward.5} parent=31 // pred_fallthru
        _
    $region32: #{encoder_layer_grouped_forward.5} parent=5 // pred_fallthru
      _
    %p284 = scmp.le.s32.totalorder 1, %s15
    %p285 = scmp.lt.s32.totalorder %s15, 3
    %p286 = pnand %p284, %p285
    %p287 = pneg %p286
    // Predicated region
    $region45: #{encoder_layer_grouped_forward.5} parent=5 // pred_check
      _
    $region46: #{encoder_layer_grouped_forward.5} parent=5 // pred_check_branch
      %289 = sbr.rel (%p286) target = $region48
    $region47: #{encoder_layer_grouped_forward.5} parent=5 // pred_region
      %s290 = ssub.s32 %s15, 1
      %p291 = scmp.lt.s32.totalorder %s20, 1
      %s292 = scalar_select %p291, %s20, 1
      %s293 = smul.addr %s292, 2
      %s294 = smul.addr %s293, 4
      %s295 = scalar_lea.vmem %s0, %s294
      %p296 = pneg %p41
      %p297 = pneg %p38
      %p298 = scmp.lt.s32.totalorder %s20, 1
      %s299 = scalar_select %p298, %s20, 1
      %s300 = smul.addr %s299, 2
      %s301 = smul.addr %s300, 4
      %s302 = scalar_lea.vmem %s1, %s301
      %p303 = pneg %p67
      %p304 = pneg %p64
      %p305 = scmp.lt.s32.totalorder %s20, 1
      %s306 = scalar_select %p305, %s20, 1
      %s307 = smul.addr %s306, 2
      %s308 = smul.addr %s307, 4
      %s309 = scalar_lea.vmem %s2, %s308
      %p310 = pneg %p93
      %p311 = pneg %p90
      %p312 = pneg %p114
      %p313 = pneg %p111
      %p314 = pneg %p135
      %p315 = pneg %p132
      %p316 = pneg %p156
      %p317 = pneg %p153
      %p318 = pneg %p177
      %p319 = pneg %p174
      %p320 = pneg %p203
      %p321 = pneg %p200
      %p322 = scmp.lt.s32.totalorder %s20, 1
      %s323 = scalar_select %p322, %s20, 1
      %s324 = smul.addr %s323, 8
      %s325 = scalar_lea.vmem %s7, %s324
      %p326 = pneg %p229
      %p327 = pneg %p226
      %p328 = scmp.lt.s32.totalorder %s20, 1
      %s329 = scalar_select %p328, %s20, 1
      %s330 = smul.addr %s329, 8
      %s331 = scalar_lea.vmem %s8, %s330
      %p332 = scmp.lt.s32.totalorder %s20, 1
      %s333 = scalar_select %p332, %s20, 1
      %s334 = smul.addr %s333, 2
      %s335 = smul.addr %s334, 4
      %s336 = scalar_lea.vmem %s0, %s335
      %p337 = scmp.lt.s32.totalorder %s20, 1
      %s338 = scalar_select %p337, %s20, 1
      %s339 = smul.addr %s338, 2
      %s340 = smul.addr %s339, 4
      %s341 = scalar_lea.vmem %s1, %s340
      %p342 = scmp.lt.s32.totalorder %s20, 1
      %s343 = scalar_select %p342, %s20, 1
      %s344 = smul.addr %s343, 2
      %s345 = smul.addr %s344, 4
      %s346 = scalar_lea.vmem %s2, %s345
      %p347 = scmp.lt.s32.totalorder %s20, 1
      %s348 = scalar_select %p347, %s20, 1
      %s349 = smul.addr %s348, 8
      %s350 = scalar_lea.vmem %s7, %s349
      %p351 = scmp.lt.s32.totalorder %s20, 1
      %s352 = scalar_select %p351, %s20, 1
      %s353 = smul.addr %s352, 8
      %s354 = scalar_lea.vmem %s8, %s353
      %v356 = vld [vmem:[%s336] sm:$0xff]
      %v357 = vunpack.c.l.bf16 %v356
      %v358 = vunpack.c.h.bf16 %v356
      %v359 = vld [vmem:[%s3] sm:$0xff]
      %361 = vset.pattern.permute.xlu0 0
      %362 = vperm.xlu0 %361, %v359
      %v363 = vpop.permute.xlu0 %362
      %v365 = vmul.f32 %v357, %v363
      %v366 = vmul.f32 %v358, %v363
      %v367 = vld [vmem:[%s4] sm:$0xff]
      %369 = vset.pattern.permute.xlu0 0
      %370 = vperm.xlu0 %369, %v367
      %v371 = vpop.permute.xlu0 %370
      %v373 = vadd.f32 %v365, %v371
      %v374 = vadd.f32 %v366, %v371
      %v375 = vmin.f32 %v373, 20.0
      %v376 = vmin.f32 %v374, 20.0
      %v377 = vmul.f32 %v375, 1.442695
      %v378 = vpow.pop %v377
      %v379 = vmul.f32 %v376, 1.442695
      %v380 = vpow.pop %v379
      %v381 = vadd.f32 %v378, 1.0
      %v382 = vadd.f32 %v380, 1.0
      %v383 = vmul.f32 %v381, %v381
      %v384 = vmul.f32 %v382, %v382
      %v385 = vsub.f32 %v383, 1.0
      %v386 = vsub.f32 %v384, 1.0
      %v387 = vmul.f32 %v373, %v385
      %v388 = vmul.f32 %v374, %v386
      %v389 = vadd.f32 %v383, 1.0
      %v390 = vadd.f32 %v384, 1.0
      %v391 = vrcp.pop %v389
      %v392 = vmul.f32 %v387, %v391
      %v393 = vrcp.pop %v390
      %v394 = vmul.f32 %v388, %v393
      %397 = vrot.lane.b32.xlu0 %v392, 112
      %v398 = vpop.permute.xlu0 %397
      %399 = vrot.lane.b32.xlu0 %v394, 112
      %v400 = vpop.permute.xlu0 %399
      %vm401 = vcmask 916480
      %v402 = vsel %vm401, %v398, %v400
      %v405 = vmax.f32 %v392, %v402
      %v406 = vmax.f32 %v394, %v400
      %408 = vrot.lane.b32.xlu0 %v405, 112
      %v409 = vpop.permute.xlu0 %408
      %411 = vrot.lane.b32.xlu0 %v405, 96
      %v412 = vpop.permute.xlu0 %411
      %414 = vrot.lane.b32.xlu0 %v405, 80
      %v415 = vpop.permute.xlu0 %414
      %418 = vrot.lane.b32.xlu0 %v406, 64
      %v419 = vpop.permute.xlu0 %418
      %421 = vrot.lane.b32.xlu0 %v406, 48
      %v422 = vpop.permute.xlu0 %421
      %424 = vrot.lane.b32.xlu0 %v406, 32
      %v425 = vpop.permute.xlu0 %424
      %427 = vrot.lane.b32.xlu0 %v406, 16
      %v428 = vpop.permute.xlu0 %427
      %vm430 = vcmask 130048
      %v431 = vsel %vm430, %v405, %v409
      %vm432 = vcmask 261120
      %v433 = vsel %vm432, %v431, %v412
      %vm434 = vcmask 392192
      %v435 = vsel %vm434, %v433, %v415
      %vm436 = vcmask 523264
      %v437 = vsel %vm436, %v435, %v419
      %vm438 = vcmask 654336
      %v439 = vsel %vm438, %v437, %v422
      %vm440 = vcmask 785408
      %v441 = vsel %vm440, %v439, %v425
      %v442 = vsel %vm401, %v441, %v428
      %444 = vrot.lane.b32.xlu0 %v442, 127
      %v445 = vpop.permute.xlu0 %444
      %v447 = vmax.f32 %v442, %v445
      %v448 = vpack.c.bf16 %v447, %v447
      %v449 = vld [vmem:[%s5] sm:$0xf]
      %v450 = vld [vmem:[%s5 + $0x4] sm:$0xf]
      %v451 = vld [vmem:[%s5 + $0x8] sm:$0xf]
      %v452 = vld [vmem:[%s5 + $0xc] sm:$0xf]
      %v453 = vld [vmem:[%s5 + $0x10] sm:$0xf]
      %v454 = vld [vmem:[%s5 + $0x14] sm:$0xf]
      %v455 = vld [vmem:[%s5 + $0x18] sm:$0xf]
      %v456 = vld [vmem:[%s5 + $0x1c] sm:$0xf]
      %v457 = vld [vmem:[%s5 + $0x20] sm:$0xf]
      %v458 = vld [vmem:[%s5 + $0x24] sm:$0xf]
      %v459 = vld [vmem:[%s5 + $0x28] sm:$0xf]
      %v460 = vld [vmem:[%s5 + $0x2c] sm:$0xf]
      %v461 = vld [vmem:[%s5 + $0x30] sm:$0xf]
      %v462 = vld [vmem:[%s5 + $0x34] sm:$0xf]
      %v463 = vld [vmem:[%s5 + $0x38] sm:$0xf]
      %v464 = vld [vmem:[%s5 + $0x3c] sm:$0xf]
      %v481 = vunpack.c.l.b16 %v449
      %v482 = vunpack.c.l.b16 %v450
      %v483 = vunpack.c.l.b16 %v451
      %v484 = vunpack.c.l.b16 %v452
      %v485 = vunpack.c.l.b16 %v453
      %v486 = vunpack.c.l.b16 %v454
      %v487 = vunpack.c.l.b16 %v455
      %v488 = vunpack.c.l.b16 %v456
      %v489 = vunpack.c.l.b16 %v457
      %v490 = vunpack.c.l.b16 %v458
      %v491 = vunpack.c.l.b16 %v459
      %v492 = vunpack.c.l.b16 %v460
      %v493 = vunpack.c.l.b16 %v461
      %v494 = vunpack.c.l.b16 %v462
      %v495 = vunpack.c.l.b16 %v463
      %v496 = vunpack.c.l.b16 %v464
      %v497 = vpack.c.b16 %v482, %v481
      %v498 = vpack.c.b16 %v484, %v483
      %v499 = vpack.c.b16 %v486, %v485
      %v500 = vpack.c.b16 %v488, %v487
      %v501 = vpack.c.b16 %v490, %v489
      %v502 = vpack.c.b16 %v492, %v491
      %v503 = vpack.c.b16 %v494, %v493
      %v504 = vpack.c.b16 %v496, %v495
      %vm512 = vcmask 1039360
      %v514 = vsel %vm512, %v448, 0
      %vm516 = vcmask 1046528
      %vm517 = vcmask 1047552
      %v518 = vsel %vm516, 4294967295, 65535
      %v519 = vsel %vm517, %v518, 0
      %v521 = vand.u32 %v504, %v519
      %523 = vmatprep.subr.bf16.mxu0 0
      %524 = vmatpush1.bf16.msra.mxu0 %v497
      %525 = vmatprep.subr.bf16.mxu0 0
      %526 = vmatpush1.bf16.msra.mxu0 %v498
      %527 = vmatprep.subr.bf16.mxu0 0
      %528 = vmatpush1.bf16.msra.mxu0 %v499
      %529 = vmatprep.subr.bf16.mxu0 0
      %530 = vmatpush1.bf16.msra.mxu0 %v500
      %531 = vmatprep.subr.bf16.mxu0 0
      %532 = vmatpush1.bf16.msra.mxu0 %v501
      %533 = vmatprep.subr.bf16.mxu0 0
      %534 = vmatpush1.bf16.msra.mxu0 %v502
      %535 = vmatprep.subr.bf16.mxu0 0
      %536 = vmatpush1.bf16.msra.mxu0 %v503
      %537 = vmatprep.subr.bf16.mxu0 0
      %538 = vmatpush1.bf16.msra.mxu0 %v521
      %539 = vmatprep.subr.bf16.mxu0 0
      %540 = vmatpush1.bf16.msra.mxu0 0
      %541 = vmatprep.subr.bf16.mxu0 0
      %542 = vmatpush1.bf16.msra.mxu0 0
      %543 = vmatprep.subr.bf16.mxu0 0
      %544 = vmatpush1.bf16.msra.mxu0 0
      %545 = vmatprep.subr.bf16.mxu0 0
      %546 = vmatpush1.bf16.msra.mxu0 0
      %547 = vmatprep.subr.bf16.mxu0 0
      %548 = vmatpush1.bf16.msra.mxu0 0
      %549 = vmatprep.subr.bf16.mxu0 0
      %550 = vmatpush1.bf16.msra.mxu0 0
      %551 = vmatprep.subr.bf16.mxu0 0
      %552 = vmatpush1.bf16.msra.mxu0 0
      %553 = vmatprep.subr.bf16.mxu0 0
      %554 = vmatpush1.bf16.msra.mxu0 0
      %555 = vmatprep.mubr.bf16.mxu0 0
      %556 = vmatmul.mubr.bf16.gmra.mrb[0].mxu0 %v514
      %v557 = vpop.f32.mrb[0].mxu0
      %v558 = vadd.f32 0.0, %v557
      %v559 = vpop.f32.mrb[0].mxu0
      %v560 = vpop.f32.mrb[0].mxu0
      %v561 = vpop.f32.mrb[0].mxu0
      %562 = vdwg.mxu0
      %563 = vst.msk [vmem:[%s350] sm:$0xff] %vm436, %v558
      %v564 = vld [vmem:[%s341] sm:$0xff]
      %v565 = vld [vmem:[%s346] sm:$0xff]
      %v567 = vcombine.high %v564, %v564
      %v570 = vcombine.low %v565, %v565
      %vm572 = vcmask 1043456
      %v573 = vsel %vm572, %v564, %v570
      %v574 = vsel %vm572, %v567, %v565
      %v575 = vpack.c.bf16 %v573, %v573
      %v576 = vpack.c.bf16 %v574, %v574
      %v577 = vld [vmem:[%s6] sm:$0xf]
      %v578 = vld [vmem:[%s6 + $0x4] sm:$0xf]
      %v579 = vld [vmem:[%s6 + $0x8] sm:$0xf]
      %v580 = vld [vmem:[%s6 + $0xc] sm:$0xf]
      %v581 = vld [vmem:[%s6 + $0x10] sm:$0xf]
      %v582 = vld [vmem:[%s6 + $0x14] sm:$0xf]
      %v583 = vld [vmem:[%s6 + $0x18] sm:$0xf]
      %v584 = vld [vmem:[%s6 + $0x1c] sm:$0xf]
      %v585 = vld [vmem:[%s6 + $0x20] sm:$0xf]
      %v586 = vld [vmem:[%s6 + $0x24] sm:$0xf]
      %v587 = vld [vmem:[%s6 + $0x28] sm:$0xf]
      %v588 = vld [vmem:[%s6 + $0x2c] sm:$0xf]
      %v589 = vld [vmem:[%s6 + $0x30] sm:$0xf]
      %v590 = vld [vmem:[%s6 + $0x34] sm:$0xf]
      %v591 = vld [vmem:[%s6 + $0x38] sm:$0xf]
      %v592 = vld [vmem:[%s6 + $0x3c] sm:$0xf]
      %v593 = vld [vmem:[%s6 + $0x40] sm:$0xf]
      %v594 = vld [vmem:[%s6 + $0x44] sm:$0xf]
      %v595 = vld [vmem:[%s6 + $0x48] sm:$0xf]
      %v596 = vld [vmem:[%s6 + $0x4c] sm:$0xf]
      %v597 = vld [vmem:[%s6 + $0x50] sm:$0xf]
      %v598 = vld [vmem:[%s6 + $0x54] sm:$0xf]
      %v599 = vld [vmem:[%s6 + $0x58] sm:$0xf]
      %v600 = vld [vmem:[%s6 + $0x5c] sm:$0xf]
      %v601 = vld [vmem:[%s6 + $0x60] sm:$0xf]
      %v602 = vld [vmem:[%s6 + $0x64] sm:$0xf]
      %v603 = vld [vmem:[%s6 + $0x68] sm:$0xf]
      %v604 = vld [vmem:[%s6 + $0x6c] sm:$0xf]
      %v605 = vld [vmem:[%s6 + $0x70] sm:$0xf]
      %v606 = vld [vmem:[%s6 + $0x74] sm:$0xf]
      %v607 = vld [vmem:[%s6 + $0x78] sm:$0xf]
      %v608 = vld [vmem:[%s6 + $0x7c] sm:$0xf]
      %v641 = vunpack.c.l.b16 %v577
      %v642 = vunpack.c.l.b16 %v578
      %v643 = vunpack.c.l.b16 %v579
      %v644 = vunpack.c.l.b16 %v580
      %v645 = vunpack.c.l.b16 %v581
      %v646 = vunpack.c.l.b16 %v582
      %v647 = vunpack.c.l.b16 %v583
      %v648 = vunpack.c.l.b16 %v584
      %v649 = vunpack.c.l.b16 %v585
      %v650 = vunpack.c.l.b16 %v586
      %v651 = vunpack.c.l.b16 %v587
      %v652 = vunpack.c.l.b16 %v588
      %v653 = vunpack.c.l.b16 %v589
      %v654 = vunpack.c.l.b16 %v590
      %v655 = vunpack.c.l.b16 %v591
      %v656 = vunpack.c.l.b16 %v592
      %v657 = vunpack.c.l.b16 %v593
      %v658 = vunpack.c.l.b16 %v594
      %v659 = vunpack.c.l.b16 %v595
      %v660 = vunpack.c.l.b16 %v596
      %v661 = vunpack.c.l.b16 %v597
      %v662 = vunpack.c.l.b16 %v598
      %v663 = vunpack.c.l.b16 %v599
      %v664 = vunpack.c.l.b16 %v600
      %v665 = vunpack.c.l.b16 %v601
      %v666 = vunpack.c.l.b16 %v602
      %v667 = vunpack.c.l.b16 %v603
      %v668 = vunpack.c.l.b16 %v604
      %v669 = vunpack.c.l.b16 %v605
      %v670 = vunpack.c.l.b16 %v606
      %v671 = vunpack.c.l.b16 %v607
      %v672 = vunpack.c.l.b16 %v608
      %v673 = vpack.c.b16 %v642, %v641
      %v674 = vpack.c.b16 %v644, %v643
      %v675 = vpack.c.b16 %v646, %v645
      %v676 = vpack.c.b16 %v648, %v647
      %v677 = vpack.c.b16 %v650, %v649
      %v678 = vpack.c.b16 %v652, %v651
      %v679 = vpack.c.b16 %v654, %v653
      %v680 = vpack.c.b16 %v656, %v655
      %v681 = vpack.c.b16 %v658, %v657
      %v682 = vpack.c.b16 %v660, %v659
      %v683 = vpack.c.b16 %v662, %v661
      %v684 = vpack.c.b16 %v664, %v663
      %v685 = vpack.c.b16 %v666, %v665
      %v686 = vpack.c.b16 %v668, %v667
      %v687 = vpack.c.b16 %v670, %v669
      %v688 = vpack.c.b16 %v672, %v671
      %705 = vmatprep.subr.bf16.mxu0 0
      %706 = vmatpush1.bf16.msra.mxu0 %v673
      %707 = vmatprep.subr.bf16.mxu0 0
      %708 = vmatpush1.bf16.msra.mxu0 %v674
      %709 = vmatprep.subr.bf16.mxu0 0
      %710 = vmatpush1.bf16.msra.mxu0 %v675
      %711 = vmatprep.subr.bf16.mxu0 0
      %712 = vmatpush1.bf16.msra.mxu0 %v676
      %713 = vmatprep.subr.bf16.mxu0 0
      %714 = vmatpush1.bf16.msra.mxu0 %v677
      %715 = vmatprep.subr.bf16.mxu0 0
      %716 = vmatpush1.bf16.msra.mxu0 %v678
      %717 = vmatprep.subr.bf16.mxu0 0
      %718 = vmatpush1.bf16.msra.mxu0 %v679
      %719 = vmatprep.subr.bf16.mxu0 0
      %720 = vmatpush1.bf16.msra.mxu0 %v680
      %721 = vmatprep.subr.bf16.mxu0 0
      %722 = vmatpush1.bf16.msra.mxu0 %v681
      %723 = vmatprep.subr.bf16.mxu0 0
      %724 = vmatpush1.bf16.msra.mxu0 %v682
      %725 = vmatprep.subr.bf16.mxu0 0
      %726 = vmatpush1.bf16.msra.mxu0 %v683
      %727 = vmatprep.subr.bf16.mxu0 0
      %728 = vmatpush1.bf16.msra.mxu0 %v684
      %729 = vmatprep.subr.bf16.mxu0 0
      %730 = vmatpush1.bf16.msra.mxu0 %v685
      %731 = vmatprep.subr.bf16.mxu0 0
      %732 = vmatpush1.bf16.msra.mxu0 %v686
      %733 = vmatprep.subr.bf16.mxu0 0
      %734 = vmatpush1.bf16.msra.mxu0 %v687
      %735 = vmatprep.subr.bf16.mxu0 0
      %736 = vmatpush1.bf16.msra.mxu0 %v688
      %737 = vmatprep.mubr.bf16.mxu0 %v576
      %738 = vmatmul.mubr.bf16.gmra.mrb[0].mxu0 %v575
      %v739 = vpop.f32.mrb[0].mxu0
      %v740 = vadd.f32 0.0, %v739
      %v741 = vpop.f32.mrb[0].mxu0
      %v742 = vpop.f32.mrb[0].mxu0
      %v743 = vpop.f32.mrb[0].mxu0
      %744 = vdwg.mxu0
      %745 = vst.msk [vmem:[%s354] sm:$0xff] %vm436, %v740
      %p746 = scmp.lt.s32.totalorder %s20, 1
      %s747 = scalar_select %p746, %s20, 1
      %s748 = smul.addr %s747, 8
      %s749 = scalar_lea.vmem %s7, %s748
      %p750 = scmp.lt.s32.totalorder %s20, 1
      %s751 = scalar_select %p750, %s20, 1
      %s752 = smul.addr %s751, 8
      %s753 = scalar_lea.vmem %s8, %s752
      // Predicated region
      $region49: #{encoder_layer_grouped_forward.5} parent=47 // pred_check
        %p754 = pneg %p200
      $region50: #{encoder_layer_grouped_forward.5} parent=47 // pred_check_branch
        %756 = sbr.rel (%p754) target = $region52
      $region51: #{encoder_layer_grouped_forward.5} parent=47 // pred_region
        _
      $region52: #{encoder_layer_grouped_forward.5} parent=47 // pred_fallthru
        _
      // Predicated region
      $region53: #{encoder_layer_grouped_forward.5} parent=47 // pred_check
        %p757 = pneg %p226
      $region54: #{encoder_layer_grouped_forward.5} parent=47 // pred_check_branch
        %759 = sbr.rel (%p757) target = $region56
      $region55: #{encoder_layer_grouped_forward.5} parent=47 // pred_region
        _
      $region56: #{encoder_layer_grouped_forward.5} parent=47 // pred_fallthru
        _
    $region48: #{encoder_layer_grouped_forward.5} parent=5 // pred_fallthru
      _
    %p760 = scmp.le.s32.totalorder 2, %s15
    // Predicated region
    $region57: #{encoder_layer_grouped_forward.5} parent=5 // pred_check
      %p761 = pneg %p760
    $region58: #{encoder_layer_grouped_forward.5} parent=5 // pred_check_branch
      %763 = sbr.rel (%p761) target = $region60
    $region59: #{encoder_layer_grouped_forward.5} parent=5 // pred_region
      %s764 = ssub.s32 %s15, 2
      // Predicated region
      $region61: #{encoder_layer_grouped_forward.5} parent=59 // pred_check
        %p765 = pneg %p206
      $region62: #{encoder_layer_grouped_forward.5} parent=59 // pred_check_branch
        %767 = sbr.rel (%p765) target = $region64
      $region63: #{encoder_layer_grouped_forward.5} parent=59 // pred_region
        %p768 = scmp.lt.s32.totalorder %s21, 1
        %s769 = scalar_select %p768, %s21, 1
        %s770 = smul.addr %s769, 8
        %s771 = scalar_lea.vmem %s7, %s770
      $region64: #{encoder_layer_grouped_forward.5} parent=59 // pred_fallthru
        _
      // Predicated region
      $region65: #{encoder_layer_grouped_forward.5} parent=59 // pred_check
        %p772 = pneg %p232
      $region66: #{encoder_layer_grouped_forward.5} parent=59 // pred_check_branch
        %774 = sbr.rel (%p772) target = $region68
      $region67: #{encoder_layer_grouped_forward.5} parent=59 // pred_region
        %p775 = scmp.lt.s32.totalorder %s21, 1
        %s776 = scalar_select %p775, %s21, 1
        %s777 = smul.addr %s776, 8
        %s778 = scalar_lea.vmem %s8, %s777
      $region68: #{encoder_layer_grouped_forward.5} parent=59 // pred_fallthru
        _
    $region60: #{encoder_layer_grouped_forward.5} parent=5 // pred_fallthru
      _
  $region6: #{encoder_layer_grouped_forward.5} parent=0 // loop_footer
    %s19 = sadd.s32 1, %s15
  $region7: #{encoder_layer_grouped_forward.5} parent=0 // loop_footer_branch
    %14 = sbr.rel target = $region3
  $region8: #{encoder_layer_grouped_forward.5} parent=0 // loop_exit
    _

// kernel: encoder_layer_grouped_forward.3
$region0: #{encoder_layer_grouped_forward.3}
  #allocation0 [shape = 'u32[]', space=smem, size = 0x4, offset = 0x4, fixed_abs, tag = 'smem constant byte address 0x4 - core index']
  #allocation1 [shape = 'u32[144,128]{1,0:T(1,128)}', space=vmem, size = 0x12000, scoped, tag = 'internal scratch']
  %s0 = inlined_call_operand.vmem [shape: f32[2,8,256], index: 0, kind: input, shape index: {}]
  %s1 = inlined_call_operand.vmem [shape: f32[2,4,256], index: 1, kind: input, shape index: {}]
  %s2 = inlined_call_operand.vmem [shape: bf16[12,8], index: 2, kind: input, shape index: {}]
  %s3 = inlined_call_operand.vmem [shape: bf16[12,4], index: 3, kind: input, shape index: {}]
  %s4 = inlined_call_operand.vmem [shape: bf16[16,40], index: 4, kind: input, shape index: {}]
  %s5 = inlined_call_operand.vmem [shape: f32[16,1], index: 5, kind: input, shape index: {}]
  %s6 = inlined_call_operand.vmem [shape: bf16[16,80], index: 6, kind: input, shape index: {}]
  %s7 = inlined_call_operand.vmem [shape: f32[16,1], index: 7, kind: input, shape index: {}]
  %s8 = inlined_call_operand.vmem [shape: bf16[2,16,256], index: 8, kind: output, shape index: {0}]
  %s9 = inlined_call_operand.vmem [shape: f32[2,4,256], index: 9, kind: output, shape index: {1}]
  %s10 = inlined_call_operand.vmem [shape: f32[2,32,1], index: 10, kind: output, shape index: {2}]
  %11 = xla_tuple %s8, %s9, %s10
  %s12 = sld [smem:[#allocation0]]
  $region81: #{encoder_layer_grouped_forward.3} parent=0
    _
  %s14 = ssub.s32 1, %s12
  %s15 = scalar_select 0, %s14, %s12
  loop: start=0, step=1, limit=4
  $region2: #{encoder_layer_grouped_forward.3} parent=0 // loop_pre_header
    _
  $region3: #{encoder_layer_grouped_forward.3} parent=0 // loop_header
    %s17 = sphi 0, %s21
    %p18 = scmp.ge.s32.totalorder %s17, 4
    %s27 = sphi 0, %s29
    %s30 = sphi 0, %s27
    %s31 = sphi 0, %s30
    %s47 = sphi 0, %s31
    %s53 = sphi 0, %s55
    %s56 = sphi 0, %s53
    %s57 = sphi 0, %s56
    %s73 = sphi 0, %s57
    %s77 = sphi 0, %s77
    %s79 = sphi 0, %s77
    %s80 = sphi 0, %s79
    %s94 = sphi 0, %s80
    %s98 = sphi 0, %s98
    %s100 = sphi 0, %s98
    %s101 = sphi 0, %s100
    %s115 = sphi 0, %s101
    %s119 = sphi 0, %s119
    %s121 = sphi 0, %s119
    %s122 = sphi 0, %s121
    %s136 = sphi 0, %s122
    %s140 = sphi 0, %s140
    %s142 = sphi 0, %s140
    %s143 = sphi 0, %s142
    %s157 = sphi 0, %s143
    %s161 = sphi 0, %s161
    %s163 = sphi 0, %s161
    %s164 = sphi 0, %s163
    %s178 = sphi 0, %s164
    %s182 = sphi 0, %s182
    %s184 = sphi 0, %s182
    %s185 = sphi 0, %s184
    %s199 = sphi 0, %s185
    %s205 = sphi 0, %s207
    %s208 = sphi 0, %s205
    %s209 = sphi 0, %s208
    %s225 = sphi 0, %s209
    %s231 = sphi 0, %s233
    %s234 = sphi 0, %s231
    %s235 = sphi 0, %s234
    %s251 = sphi 0, %s235
    %s257 = sphi 0, %s259
    %s260 = sphi 0, %s257
    %s261 = sphi 0, %s260
    %s277 = sphi 0, %s261
  $region4: #{encoder_layer_grouped_forward.3} parent=0 // loop_header_branch
    %20 = sbr.rel (%p18) target = $region8
  $region5: #{encoder_layer_grouped_forward.3} parent=0 // loop_body
    %s22 = ssub.s32 %s17, 1
    %s23 = ssub.s32 %s17, 2
    %s24 = sadd.s32 %s17, 1
    %s25 = ssub.s32 %s17, %s24
    %p26 = scmp.eq.s32.totalorder %s25, 0
    %s28 = sadd.s32 %s27, 1
    %s29 = scalar_select %p26, %s27, %s28
    %p32 = pneg %p26
    %p33 = scmp.eq.s32.totalorder %s17, 1
    %p34 = por %p32, %p33
    %p35 = scmp.ne.s32.totalorder %s27, %s30
    %p36 = scmp.eq.s32.totalorder %s17, 0
    %p37 = por %p35, %p36
    %p38 = scmp.ne.s32.totalorder %s27, %s30
    %p39 = scmp.eq.s32.totalorder %s22, 1
    %p40 = por %p38, %p39
    %p41 = scmp.ne.s32.totalorder %s30, %s31
    %p42 = scmp.eq.s32.totalorder %s22, 0
    %p43 = por %p41, %p42
    %p44 = scmp.ne.s32.totalorder %s30, %s31
    %p45 = scmp.eq.s32.totalorder %s23, 1
    %p46 = por %p44, %p45
    %p48 = scmp.ne.s32.totalorder %s31, %s47
    %p49 = scmp.eq.s32.totalorder %s23, 0
    %p50 = por %p48, %p49
    %s51 = ssub.s32 %s17, %s24
    %p52 = scmp.eq.s32.totalorder %s51, 0
    %s54 = sadd.s32 %s53, 1
    %s55 = scalar_select %p52, %s53, %s54
    %p58 = pneg %p52
    %p59 = scmp.eq.s32.totalorder %s17, 1
    %p60 = por %p58, %p59
    %p61 = scmp.ne.s32.totalorder %s53, %s56
    %p62 = scmp.eq.s32.totalorder %s17, 0
    %p63 = por %p61, %p62
    %p64 = scmp.ne.s32.totalorder %s53, %s56
    %p65 = scmp.eq.s32.totalorder %s22, 1
    %p66 = por %p64, %p65
    %p67 = scmp.ne.s32.totalorder %s56, %s57
    %p68 = scmp.eq.s32.totalorder %s22, 0
    %p69 = por %p67, %p68
    %p70 = scmp.ne.s32.totalorder %s56, %s57
    %p71 = scmp.eq.s32.totalorder %s23, 1
    %p72 = por %p70, %p71
    %p74 = scmp.ne.s32.totalorder %s57, %s73
    %p75 = scmp.eq.s32.totalorder %s23, 0
    %p76 = por %p74, %p75
    %s78 = sadd.s32 %s77, 1
    %p81 = scmp.eq.s32.totalorder %s17, 1
    %p82 = scmp.ne.s32.totalorder %s77, %s79
    %p83 = scmp.eq.s32.totalorder %s17, 0
    %p84 = por %p82, %p83
    %p85 = scmp.ne.s32.totalorder %s77, %s79
    %p86 = scmp.eq.s32.totalorder %s22, 1
    %p87 = por %p85, %p86
    %p88 = scmp.ne.s32.totalorder %s79, %s80
    %p89 = scmp.eq.s32.totalorder %s22, 0
    %p90 = por %p88, %p89
    %p91 = scmp.ne.s32.totalorder %s79, %s80
    %p92 = scmp.eq.s32.totalorder %s23, 1
    %p93 = por %p91, %p92
    %p95 = scmp.ne.s32.totalorder %s80, %s94
    %p96 = scmp.eq.s32.totalorder %s23, 0
    %p97 = por %p95, %p96
    %s99 = sadd.s32 %s98, 1
    %p102 = scmp.eq.s32.totalorder %s17, 1
    %p103 = scmp.ne.s32.totalorder %s98, %s100
    %p104 = scmp.eq.s32.totalorder %s17, 0
    %p105 = por %p103, %p104
    %p106 = scmp.ne.s32.totalorder %s98, %s100
    %p107 = scmp.eq.s32.totalorder %s22, 1
    %p108 = por %p106, %p107
    %p109 = scmp.ne.s32.totalorder %s100, %s101
    %p110 = scmp.eq.s32.totalorder %s22, 0
    %p111 = por %p109, %p110
    %p112 = scmp.ne.s32.totalorder %s100, %s101
    %p113 = scmp.eq.s32.totalorder %s23, 1
    %p114 = por %p112, %p113
    %p116 = scmp.ne.s32.totalorder %s101, %s115
    %p117 = scmp.eq.s32.totalorder %s23, 0
    %p118 = por %p116, %p117
    %s120 = sadd.s32 %s119, 1
    %p123 = scmp.eq.s32.totalorder %s17, 1
    %p124 = scmp.ne.s32.totalorder %s119, %s121
    %p125 = scmp.eq.s32.totalorder %s17, 0
    %p126 = por %p124, %p125
    %p127 = scmp.ne.s32.totalorder %s119, %s121
    %p128 = scmp.eq.s32.totalorder %s22, 1
    %p129 = por %p127, %p128
    %p130 = scmp.ne.s32.totalorder %s121, %s122
    %p131 = scmp.eq.s32.totalorder %s22, 0
    %p132 = por %p130, %p131
    %p133 = scmp.ne.s32.totalorder %s121, %s122
    %p134 = scmp.eq.s32.totalorder %s23, 1
    %p135 = por %p133, %p134
    %p137 = scmp.ne.s32.totalorder %s122, %s136
    %p138 = scmp.eq.s32.totalorder %s23, 0
    %p139 = por %p137, %p138
    %s141 = sadd.s32 %s140, 1
    %p144 = scmp.eq.s32.totalorder %s17, 1
    %p145 = scmp.ne.s32.totalorder %s140, %s142
    %p146 = scmp.eq.s32.totalorder %s17, 0
    %p147 = por %p145, %p146
    %p148 = scmp.ne.s32.totalorder %s140, %s142
    %p149 = scmp.eq.s32.totalorder %s22, 1
    %p150 = por %p148, %p149
    %p151 = scmp.ne.s32.totalorder %s142, %s143
    %p152 = scmp.eq.s32.totalorder %s22, 0
    %p153 = por %p151, %p152
    %p154 = scmp.ne.s32.totalorder %s142, %s143
    %p155 = scmp.eq.s32.totalorder %s23, 1
    %p156 = por %p154, %p155
    %p158 = scmp.ne.s32.totalorder %s143, %s157
    %p159 = scmp.eq.s32.totalorder %s23, 0
    %p160 = por %p158, %p159
    %s162 = sadd.s32 %s161, 1
    %p165 = scmp.eq.s32.totalorder %s17, 1
    %p166 = scmp.ne.s32.totalorder %s161, %s163
    %p167 = scmp.eq.s32.totalorder %s17, 0
    %p168 = por %p166, %p167
    %p169 = scmp.ne.s32.totalorder %s161, %s163
    %p170 = scmp.eq.s32.totalorder %s22, 1
    %p171 = por %p169, %p170
    %p172 = scmp.ne.s32.totalorder %s163, %s164
    %p173 = scmp.eq.s32.totalorder %s22, 0
    %p174 = por %p172, %p173
    %p175 = scmp.ne.s32.totalorder %s163, %s164
    %p176 = scmp.eq.s32.totalorder %s23, 1
    %p177 = por %p175, %p176
    %p179 = scmp.ne.s32.totalorder %s164, %s178
    %p180 = scmp.eq.s32.totalorder %s23, 0
    %p181 = por %p179, %p180
    %s183 = sadd.s32 %s182, 1
    %p186 = scmp.eq.s32.totalorder %s17, 1
    %p187 = scmp.ne.s32.totalorder %s182, %s184
    %p188 = scmp.eq.s32.totalorder %s17, 0
    %p189 = por %p187, %p188
    %p190 = scmp.ne.s32.totalorder %s182, %s184
    %p191 = scmp.eq.s32.totalorder %s22, 1
    %p192 = por %p190, %p191
    %p193 = scmp.ne.s32.totalorder %s184, %s185
    %p194 = scmp.eq.s32.totalorder %s22, 0
    %p195 = por %p193, %p194
    %p196 = scmp.ne.s32.totalorder %s184, %s185
    %p197 = scmp.eq.s32.totalorder %s23, 1
    %p198 = por %p196, %p197
    %p200 = scmp.ne.s32.totalorder %s185, %s199
    %p201 = scmp.eq.s32.totalorder %s23, 0
    %p202 = por %p200, %p201
    %s203 = ssub.s32 %s17, %s24
    %p204 = scmp.eq.s32.totalorder %s203, 0
    %s206 = sadd.s32 %s205, 1
    %s207 = scalar_select %p204, %s205, %s206
    %p210 = pneg %p204
    %p211 = scmp.eq.s32.totalorder %s17, 1
    %p212 = por %p210, %p211
    %p213 = scmp.ne.s32.totalorder %s205, %s208
    %p214 = scmp.eq.s32.totalorder %s17, 0
    %p215 = por %p213, %p214
    %p216 = scmp.ne.s32.totalorder %s205, %s208
    %p217 = scmp.eq.s32.totalorder %s22, 1
    %p218 = por %p216, %p217
    %p219 = scmp.ne.s32.totalorder %s208, %s209
    %p220 = scmp.eq.s32.totalorder %s22, 0
    %p221 = por %p219, %p220
    %p222 = scmp.ne.s32.totalorder %s208, %s209
    %p223 = scmp.eq.s32.totalorder %s23, 1
    %p224 = por %p222, %p223
    %p226 = scmp.ne.s32.totalorder %s209, %s225
    %p227 = scmp.eq.s32.totalorder %s23, 0
    %p228 = por %p226, %p227
    %s229 = ssub.s32 %s17, %s24
    %p230 = scmp.eq.s32.totalorder %s229, 0
    %s232 = sadd.s32 %s231, 1
    %s233 = scalar_select %p230, %s231, %s232
    %p236 = pneg %p230
    %p237 = scmp.eq.s32.totalorder %s17, 1
    %p238 = por %p236, %p237
    %p239 = scmp.ne.s32.totalorder %s231, %s234
    %p240 = scmp.eq.s32.totalorder %s17, 0
    %p241 = por %p239, %p240
    %p242 = scmp.ne.s32.totalorder %s231, %s234
    %p243 = scmp.eq.s32.totalorder %s22, 1
    %p244 = por %p242, %p243
    %p245 = scmp.ne.s32.totalorder %s234, %s235
    %p246 = scmp.eq.s32.totalorder %s22, 0
    %p247 = por %p245, %p246
    %p248 = scmp.ne.s32.totalorder %s234, %s235
    %p249 = scmp.eq.s32.totalorder %s23, 1
    %p250 = por %p248, %p249
    %p252 = scmp.ne.s32.totalorder %s235, %s251
    %p253 = scmp.eq.s32.totalorder %s23, 0
    %p254 = por %p252, %p253
    %s255 = ssub.s32 %s17, %s24
    %p256 = scmp.eq.s32.totalorder %s255, 0
    %s258 = sadd.s32 %s257, 1
    %s259 = scalar_select %p256, %s257, %s258
    %p262 = pneg %p256
    %p263 = scmp.eq.s32.totalorder %s17, 1
    %p264 = por %p262, %p263
    %p265 = scmp.ne.s32.totalorder %s257, %s260
    %p266 = scmp.eq.s32.totalorder %s17, 0
    %p267 = por %p265, %p266
    %p268 = scmp.ne.s32.totalorder %s257, %s260
    %p269 = scmp.eq.s32.totalorder %s22, 1
    %p270 = por %p268, %p269
    %p271 = scmp.ne.s32.totalorder %s260, %s261
    %p272 = scmp.eq.s32.totalorder %s22, 0
    %p273 = por %p271, %p272
    %p274 = scmp.ne.s32.totalorder %s260, %s261
    %p275 = scmp.eq.s32.totalorder %s23, 1
    %p276 = por %p274, %p275
    %p278 = scmp.ne.s32.totalorder %s261, %s277
    %p279 = scmp.eq.s32.totalorder %s23, 0
    %p280 = por %p278, %p279
    %p281 = scmp.le.s32.totalorder 1, %s17
    %p282 = scmp.lt.s32.totalorder %s17, 3
    %p283 = pnand %p281, %p282
    %p284 = pneg %p283
    // Predicated region
    $region9: #{encoder_layer_grouped_forward.3} parent=5 // pred_check
      _
    $region10: #{encoder_layer_grouped_forward.3} parent=5 // pred_check_branch
      %286 = sbr.rel (%p283) target = $region12
    $region11: #{encoder_layer_grouped_forward.3} parent=5 // pred_region
      %s287 = ssub.s32 %s17, 1
      // Predicated region
      $region13: #{encoder_layer_grouped_forward.3} parent=11 // pred_check
        %p288 = pneg %p90
      $region14: #{encoder_layer_grouped_forward.3} parent=11 // pred_check_branch
        %290 = sbr.rel (%p288) target = $region16
      $region15: #{encoder_layer_grouped_forward.3} parent=11 // pred_region
        _
      $region16: #{encoder_layer_grouped_forward.3} parent=11 // pred_fallthru
        _
      // Predicated region
      $region17: #{encoder_layer_grouped_forward.3} parent=11 // pred_check
        %p291 = pneg %p111
      $region18: #{encoder_layer_grouped_forward.3} parent=11 // pred_check_branch
        %293 = sbr.rel (%p291) target = $region20
      $region19: #{encoder_layer_grouped_forward.3} parent=11 // pred_region
        _
      $region20: #{encoder_layer_grouped_forward.3} parent=11 // pred_fallthru
        _
      // Predicated region
      $region21: #{encoder_layer_grouped_forward.3} parent=11 // pred_check
        %p294 = pneg %p132
      $region22: #{encoder_layer_grouped_forward.3} parent=11 // pred_check_branch
        %296 = sbr.rel (%p294) target = $region24
      $region23: #{encoder_layer_grouped_forward.3} parent=11 // pred_region
        _
      $region24: #{encoder_layer_grouped_forward.3} parent=11 // pred_fallthru
        _
      // Predicated region
      $region25: #{encoder_layer_grouped_forward.3} parent=11 // pred_check
        %p297 = pneg %p153
      $region26: #{encoder_layer_grouped_forward.3} parent=11 // pred_check_branch
        %299 = sbr.rel (%p297) target = $region28
      $region27: #{encoder_layer_grouped_forward.3} parent=11 // pred_region
        _
      $region28: #{encoder_layer_grouped_forward.3} parent=11 // pred_fallthru
        _
      // Predicated region
      $region29: #{encoder_layer_grouped_forward.3} parent=11 // pred_check
        %p300 = pneg %p174
      $region30: #{encoder_layer_grouped_forward.3} parent=11 // pred_check_branch
        %302 = sbr.rel (%p300) target = $region32
      $region31: #{encoder_layer_grouped_forward.3} parent=11 // pred_region
        _
      $region32: #{encoder_layer_grouped_forward.3} parent=11 // pred_fallthru
        _
      // Predicated region
      $region33: #{encoder_layer_grouped_forward.3} parent=11 // pred_check
        %p303 = pneg %p195
      $region34: #{encoder_layer_grouped_forward.3} parent=11 // pred_check_branch
        %305 = sbr.rel (%p303) target = $region36
      $region35: #{encoder_layer_grouped_forward.3} parent=11 // pred_region
        _
      $region36: #{encoder_layer_grouped_forward.3} parent=11 // pred_fallthru
        _
    $region12: #{encoder_layer_grouped_forward.3} parent=5 // pred_fallthru
      _
    %p306 = scmp.lt.s32.totalorder %s17, 2
    // Predicated region
    $region37: #{encoder_layer_grouped_forward.3} parent=5 // pred_check
      %p307 = pneg %p306
    $region38: #{encoder_layer_grouped_forward.3} parent=5 // pred_check_branch
      %309 = sbr.rel (%p307) target = $region40
    $region39: #{encoder_layer_grouped_forward.3} parent=5 // pred_region
      // Predicated region
      $region41: #{encoder_layer_grouped_forward.3} parent=39 // pred_check
        %p310 = pneg %p37
      $region42: #{encoder_layer_grouped_forward.3} parent=39 // pred_check_branch
        %312 = sbr.rel (%p310) target = $region44
      $region43: #{encoder_layer_grouped_forward.3} parent=39 // pred_region
        %p313 = scmp.lt.s32.totalorder %s17, 1
        %s314 = scalar_select %p313, %s17, 1
        %s315 = smul.addr %s314, 2
        %s316 = smul.addr %s315, 8
        %s317 = scalar_lea.vmem %s0, %s316
      $region44: #{encoder_layer_grouped_forward.3} parent=39 // pred_fallthru
        _
      // Predicated region
      $region45: #{encoder_layer_grouped_forward.3} parent=39 // pred_check
        %p318 = pneg %p63
      $region46: #{encoder_layer_grouped_forward.3} parent=39 // pred_check_branch
        %320 = sbr.rel (%p318) target = $region48
      $region47: #{encoder_layer_grouped_forward.3} parent=39 // pred_region
        %p321 = scmp.lt.s32.totalorder %s17, 1
        %s322 = scalar_select %p321, %s17, 1
        %s323 = smul.addr %s322, 2
        %s324 = smul.addr %s323, 4
        %s325 = scalar_lea.vmem %s1, %s324
      $region48: #{encoder_layer_grouped_forward.3} parent=39 // pred_fallthru
        _
    $region40: #{encoder_layer_grouped_forward.3} parent=5 // pred_fallthru
      _
    %p326 = scmp.le.s32.totalorder 1, %s17
    %p327 = scmp.lt.s32.totalorder %s17, 3
    %p328 = pnand %p326, %p327
    %p329 = pneg %p328
    // Predicated region
    $region49: #{encoder_layer_grouped_forward.3} parent=5 // pred_check
      _
    $region50: #{encoder_layer_grouped_forward.3} parent=5 // pred_check_branch
      %331 = sbr.rel (%p328) target = $region52
    $region51: #{encoder_layer_grouped_forward.3} parent=5 // pred_region
      %s332 = ssub.s32 %s17, 1
      %p333 = scmp.lt.s32.totalorder %s22, 1
      %s334 = scalar_select %p333, %s22, 1
      %s335 = smul.addr %s334, 2
      %s336 = smul.addr %s335, 8
      %s337 = scalar_lea.vmem %s0, %s336
      %p338 = pneg %p43
      %p339 = pneg %p40
      %p340 = scmp.lt.s32.totalorder %s22, 1
      %s341 = scalar_select %p340, %s22, 1
      %s342 = smul.addr %s341, 2
      %s343 = smul.addr %s342, 4
      %s344 = scalar_lea.vmem %s1, %s343
      %p345 = pneg %p69
      %p346 = pneg %p66
      %p347 = pneg %p90
      %p348 = pneg %p87
      %p349 = pneg %p111
      %p350 = pneg %p108
      %p351 = pneg %p132
      %p352 = pneg %p129
      %p353 = pneg %p153
      %p354 = pneg %p150
      %p355 = pneg %p174
      %p356 = pneg %p171
      %p357 = pneg %p195
      %p358 = pneg %p192
      %p359 = pneg %p221
      %p360 = pneg %p218
      %p361 = scmp.lt.s32.totalorder %s22, 1
      %s362 = scalar_select %p361, %s22, 1
      %s363 = smul.addr %s362, 4
      %s364 = smul.addr %s363, 4
      %s365 = scalar_lea.vmem %s8, %s364
      %p366 = pneg %p247
      %p367 = pneg %p244
      %p368 = scmp.lt.s32.totalorder %s22, 1
      %s369 = scalar_select %p368, %s22, 1
      %s370 = smul.addr %s369, 2
      %s371 = smul.addr %s370, 4
      %s372 = scalar_lea.vmem %s9, %s371
      %p373 = pneg %p273
      %p374 = pneg %p270
      %p375 = scmp.lt.s32.totalorder %s22, 1
      %s376 = scalar_select %p375, %s22, 1
      %s377 = smul.addr %s376, 4
      %s378 = smul.addr %s377, 8
      %s379 = scalar_lea.vmem %s10, %s378
      %p380 = scmp.lt.s32.totalorder %s22, 1
      %s381 = scalar_select %p380, %s22, 1
      %s382 = smul.addr %s381, 2
      %s383 = smul.addr %s382, 8
      %s384 = scalar_lea.vmem %s0, %s383
      %p385 = scmp.lt.s32.totalorder %s22, 1
      %s386 = scalar_select %p385, %s22, 1
      %s387 = smul.addr %s386, 2
      %s388 = smul.addr %s387, 4
      %s389 = scalar_lea.vmem %s1, %s388
      %p390 = scmp.lt.s32.totalorder %s22, 1
      %s391 = scalar_select %p390, %s22, 1
      %s392 = smul.addr %s391, 4
      %s393 = smul.addr %s392, 4
      %s394 = scalar_lea.vmem %s8, %s393
      %p395 = scmp.lt.s32.totalorder %s22, 1
      %s396 = scalar_select %p395, %s22, 1
      %s397 = smul.addr %s396, 2
      %s398 = smul.addr %s397, 4
      %s399 = scalar_lea.vmem %s9, %s398
      %p400 = scmp.lt.s32.totalorder %s22, 1
      %s401 = scalar_select %p400, %s22, 1
      %s402 = smul.addr %s401, 4
      %s403 = smul.addr %s402, 8
      %s404 = scalar_lea.vmem %s10, %s403
      %v406 = vld [vmem:[%s384] sm:$0xff]
      %v407 = vld [vmem:[%s384 + $0x8] sm:$0xff]
      %v408 = vpack.c.bf16 %v406, %v406
      %v409 = vpack.c.bf16 %v407, %v407
      %v410 = vld [vmem:[%s389] sm:$0xff]
      %v412 = vcombine.high %v410, %v410
      %v414 = vpack.c.bf16 %v410, %v410
      %v415 = vpack.c.bf16 %v412, %v412
      %v416 = vld [vmem:[%s2] sm:$0xf]
      %v417 = vld [vmem:[%s2 + $0x4] sm:$0x3]
      %v418 = vld [vmem:[%s3] sm:$0xf]
      %v419 = vld [vmem:[%s3 + $0x4] sm:$0x3]
      %v422 = vunpack.c.l.b16 %v418
      %v423 = vunpack.c.l.b16 %v419
      %v424 = vpack.c.b16 %v423, %v422
      %vm425 = vcmask 31744
      %v427 = vsel %vm425, %v424, 0
      %vm429 = vcmask 1041408
      %v431 = vsel %vm429, %v414, 0
      %v434 = vsel %vm429, %v415, 0
      %436 = vmatprep.subr.bf16.mxu0 %v434
      %437 = vmatpush1.bf16.msra.mxu0 %v431
      %438 = vmatprep.subr.bf16.mxu0 0
      %439 = vmatpush1.bf16.msra.mxu0 0
      %440 = vmatprep.subr.bf16.mxu0 0
      %441 = vmatpush1.bf16.msra.mxu0 0
      %442 = vmatprep.subr.bf16.mxu0 0
      %443 = vmatpush1.bf16.msra.mxu0 0
      %444 = vmatprep.subr.bf16.mxu0 0
      %445 = vmatpush1.bf16.msra.mxu0 0
      %446 = vmatprep.subr.bf16.mxu0 0
      %447 = vmatpush1.bf16.msra.mxu0 0
      %448 = vmatprep.subr.bf16.mxu0 0
      %449 = vmatpush1.bf16.msra.mxu0 0
      %450 = vmatprep.subr.bf16.mxu0 0
      %451 = vmatpush1.bf16.msra.mxu0 0
      %452 = vmatprep.subr.bf16.mxu0 0
      %453 = vmatpush1.bf16.msra.mxu0 0
      %454 = vmatprep.subr.bf16.mxu0 0
      %455 = vmatpush1.bf16.msra.mxu0 0
      %456 = vmatprep.subr.bf16.mxu0 0
      %457 = vmatpush1.bf16.msra.mxu0 0
      %458 = vmatprep.subr.bf16.mxu0 0
      %459 = vmatpush1.bf16.msra.mxu0 0
      %460 = vmatprep.subr.bf16.mxu0 0
      %461 = vmatpush1.bf16.msra.mxu0 0
      %462 = vmatprep.subr.bf16.mxu0 0
      %463 = vmatpush1.bf16.msra.mxu0 0
      %464 = vmatprep.subr.bf16.mxu0 0
      %465 = vmatpush1.bf16.msra.mxu0 0
      %466 = vmatprep.subr.bf16.mxu0 0
      %467 = vmatpush1.bf16.msra.mxu0 0
      %468 = vmatprep.mubr.bf16.mxu0 0
      %469 = vmatmul.mubr.bf16.gmra.mrb[0].mxu0 %v427
      %v470 = vpop.f32.mrb[0].mxu0
      %v471 = vadd.f32 0.0, %v470
      %v472 = vpop.f32.mrb[0].mxu0
      %v473 = vadd.f32 0.0, %v472
      %v474 = vpop.f32.mrb[0].mxu0
      %v475 = vadd.f32 0.0, %v474
      %v476 = vpop.f32.mrb[0].mxu0
      %v477 = vadd.f32 0.0, %v476
      %478 = vdwg.mxu0
      %v481 = vunpack.c.l.b16 %v416
      %v482 = vunpack.c.l.b16 %v417
      %v483 = vpack.c.b16 %v482, %v481
      %vm484 = vcmask 64512
      %v486 = vsel %vm484, %v483, 0
      %vm488 = vcmask 1043456
      %v490 = vsel %vm488, %v408, 0
      %v493 = vsel %vm488, %v409, 0
      %495 = vmatprep.subr.bf16.mxu0 %v493
      %496 = vmatpush1.bf16.msra.mxu0 %v490
      %497 = vmatprep.subr.bf16.mxu0 0
      %498 = vmatpush1.bf16.msra.mxu0 0
      %499 = vmatprep.subr.bf16.mxu0 0
      %500 = vmatpush1.bf16.msra.mxu0 0
      %501 = vmatprep.subr.bf16.mxu0 0
      %502 = vmatpush1.bf16.msra.mxu0 0
      %503 = vmatprep.subr.bf16.mxu0 0
      %504 = vmatpush1.bf16.msra.mxu0 0
      %505 = vmatprep.subr.bf16.mxu0 0
      %506 = vmatpush1.bf16.msra.mxu0 0
      %507 = vmatprep.subr.bf16.mxu0 0
      %508 = vmatpush1.bf16.msra.mxu0 0
      %509 = vmatprep.subr.bf16.mxu0 0
      %510 = vmatpush1.bf16.msra.mxu0 0
      %511 = vmatprep.subr.bf16.mxu0 0
      %512 = vmatpush1.bf16.msra.mxu0 0
      %513 = vmatprep.subr.bf16.mxu0 0
      %514 = vmatpush1.bf16.msra.mxu0 0
      %515 = vmatprep.subr.bf16.mxu0 0
      %516 = vmatpush1.bf16.msra.mxu0 0
      %517 = vmatprep.subr.bf16.mxu0 0
      %518 = vmatpush1.bf16.msra.mxu0 0
      %519 = vmatprep.subr.bf16.mxu0 0
      %520 = vmatpush1.bf16.msra.mxu0 0
      %521 = vmatprep.subr.bf16.mxu0 0
      %522 = vmatpush1.bf16.msra.mxu0 0
      %523 = vmatprep.subr.bf16.mxu0 0
      %524 = vmatpush1.bf16.msra.mxu0 0
      %525 = vmatprep.subr.bf16.mxu0 0
      %526 = vmatpush1.bf16.msra.mxu0 0
      %527 = vmatprep.mubr.bf16.mxu0 0
      %528 = vmatmul.mubr.bf16.gmra.mrb[0].mxu0 %v486
      %v529 = vpop.f32.mrb[0].mxu0
      %v530 = vadd.f32 %v471, %v529
      %v531 = vpop.f32.mrb[0].mxu0
      %v532 = vadd.f32 %v473, %v531
      %v533 = vpop.f32.mrb[0].mxu0
      %v534 = vadd.f32 %v475, %v533
      %v535 = vpop.f32.mrb[0].mxu0
      %v536 = vadd.f32 %v477, %v535
      %537 = vdwg.mxu0
      %v540 = vcombine.low %v534, %v536
      %542 = vst [vmem:[%s399] sm:$0xff] %v540
      %545 = vrot.lane.b32.xlu0 %v530, 32
      %v546 = vpop.permute.xlu0 %545
      %547 = vrot.lane.b32.xlu0 %v532, 32
      %v548 = vpop.permute.xlu0 %547
      %vm549 = vcmask 261120
      %v550 = vsel %vm549, %v546, %v548
      %v554 = vsel %vm549, 0.0, %v546
      %v555 = vsel %vm549, %v548, 0.0
      %558 = vrot.lane.b32.xlu0 %v554, 112
      %v559 = vpop.permute.xlu0 %558
      %560 = vrot.lane.b32.xlu0 %v550, 112
      %v561 = vpop.permute.xlu0 %560
      %562 = vrot.lane.b32.xlu0 %v555, 112
      %v563 = vpop.permute.xlu0 %562
      %vm564 = vcmask 916480
      %v565 = vsel %vm564, %v559, %v561
      %v566 = vsel %vm564, %v561, %v563
      %569 = vrot.lane.b32.xlu0 %v554, 96
      %v570 = vpop.permute.xlu0 %569
      %571 = vrot.lane.b32.xlu0 %v550, 96
      %v572 = vpop.permute.xlu0 %571
      %573 = vrot.lane.b32.xlu0 %v555, 96
      %v574 = vpop.permute.xlu0 %573
      %vm575 = vcmask 785408
      %v576 = vsel %vm575, %v570, %v572
      %v577 = vsel %vm575, %v572, %v574
      %580 = vrot.lane.b32.xlu0 %v554, 80
      %v581 = vpop.permute.xlu0 %580
      %582 = vrot.lane.b32.xlu0 %v550, 80
      %v583 = vpop.permute.xlu0 %582
      %584 = vrot.lane.b32.xlu0 %v555, 80
      %v585 = vpop.permute.xlu0 %584
      %vm586 = vcmask 654336
      %v587 = vsel %vm586, %v581, %v583
      %v588 = vsel %vm586, %v583, %v585
      %591 = vrot.lane.b32.xlu0 %v554, 64
      %v592 = vpop.permute.xlu0 %591
      %593 = vrot.lane.b32.xlu0 %v550, 64
      %v594 = vpop.permute.xlu0 %593
      %595 = vrot.lane.b32.xlu0 %v555, 64
      %v596 = vpop.permute.xlu0 %595
      %vm597 = vcmask 523264
      %v598 = vsel %vm597, %v592, %v594
      %v599 = vsel %vm597, %v594, %v596
      %v602 = vld [vmem:[%s4] sm:$0xf]
      %v603 = vld [vmem:[%s4 + $0x4] sm:$0xf]
      %v604 = vpack.c.bf16 %v565, %v554
      %v605 = vpack.c.bf16 %v566, %v550
      %v606 = vpack.c.bf16 %v587, %v576
      %v607 = vpack.c.bf16 %v588, %v577
      %v608 = vpack.c.bf16 %v598, %v598
      %v609 = vpack.c.bf16 %v599, %v599
      %v610 = vld [vmem:[%s5] sm:$0xff]
      %v611 = vld [vmem:[%s5 + $0x8] sm:$0xff]
      %613 = vset.pattern.permute.xlu0 0
      %614 = vperm.xlu0 %613, %v610
      %v615 = vpop.permute.xlu0 %614
      %618 = vset.pattern.permute.xlu0 0
      %619 = vperm.xlu0 %618, %v611
      %v620 = vpop.permute.xlu0 %619
      %v624 = vunpack.c.l.b16 %v602
      %v625 = vunpack.c.l.b16 %v603
      %v626 = vpack.c.b16 %v625, %v624
      %vm627 = vcmask 326656
      %v629 = vsel %vm627, %v626, 0
      %v632 = vsel %vm488, %v608, 0
      %v635 = vsel %vm488, %v609, 0
      %637 = vmatprep.subr.bf16.mxu0 %v605
      %638 = vmatpush1.bf16.msra.mxu0 %v604
      %639 = vmatprep.subr.bf16.mxu0 %v607
      %640 = vmatpush1.bf16.msra.mxu0 %v606
      %641 = vmatprep.subr.bf16.mxu0 %v635
      %642 = vmatpush1.bf16.msra.mxu0 %v632
      %643 = vmatprep.subr.bf16.mxu0 0
      %644 = vmatpush1.bf16.msra.mxu0 0
      %645 = vmatprep.subr.bf16.mxu0 0
      %646 = vmatpush1.bf16.msra.mxu0 0
      %647 = vmatprep.subr.bf16.mxu0 0
      %648 = vmatpush1.bf16.msra.mxu0 0
      %649 = vmatprep.subr.bf16.mxu0 0
      %650 = vmatpush1.bf16.msra.mxu0 0
      %651 = vmatprep.subr.bf16.mxu0 0
      %652 = vmatpush1.bf16.msra.mxu0 0
      %653 = vmatprep.subr.bf16.mxu0 0
      %654 = vmatpush1.bf16.msra.mxu0 0
      %655 = vmatprep.subr.bf16.mxu0 0
      %656 = vmatpush1.bf16.msra.mxu0 0
      %657 = vmatprep.subr.bf16.mxu0 0
      %658 = vmatpush1.bf16.msra.mxu0 0
      %659 = vmatprep.subr.bf16.mxu0 0
      %660 = vmatpush1.bf16.msra.mxu0 0
      %661 = vmatprep.subr.bf16.mxu0 0
      %662 = vmatpush1.bf16.msra.mxu0 0
      %663 = vmatprep.subr.bf16.mxu0 0
      %664 = vmatpush1.bf16.msra.mxu0 0
      %665 = vmatprep.subr.bf16.mxu0 0
      %666 = vmatpush1.bf16.msra.mxu0 0
      %667 = vmatprep.subr.bf16.mxu0 0
      %668 = vmatpush1.bf16.msra.mxu0 0
      %669 = vmatprep.mubr.bf16.mxu0 0
      %670 = vmatmul.mubr.bf16.gmra.mrb[0].mxu0 %v629
      %v671 = vpop.f32.mrb[0].mxu0
      %v672 = vadd.f32 %v615, %v671
      %v673 = vpop.f32.mrb[0].mxu0
      %v674 = vadd.f32 %v615, %v673
      %v675 = vpop.f32.mrb[0].mxu0
      %v676 = vadd.f32 %v620, %v675
      %v677 = vpop.f32.mrb[0].mxu0
      %v678 = vadd.f32 %v620, %v677
      %679 = vdwg.mxu0
      %684 = vrot.lane.b32.xlu0 %v672, 2
      %v685 = vpop.permute.xlu0 %684
      %686 = vrot.lane.b32.xlu0 %v674, 2
      %v687 = vpop.permute.xlu0 %686
      %688 = vrot.lane.b32.xlu0 %v676, 2
      %v689 = vpop.permute.xlu0 %688
      %690 = vrot.lane.b32.xlu0 %v678, 2
      %v691 = vpop.permute.xlu0 %690
      %vm692 = vcmask 15360
      %v693 = vsel %vm692, %v685, %v687
      %v694 = vsel %vm692, %v689, %v691
      %v701 = vsel %vm692, 0.0, %v685
      %v702 = vsel %vm692, 0.0, %v689
      %v703 = vsel %vm692, %v687, 0.0
      %v704 = vsel %vm692, %v691, 0.0
      %v705 = vlaneseq
      %v706 = vand.u32 %v705, 127
      %v707 = vadd.s32 %v706, 128
      %vm708 = vcmp.lt.s32.totalorder %v706, 0
      %v709 = vsub.s32 0, %v706
      %v710 = vsel %vm708, %v709, %v706
      %v711 = vshrl.u32 %v710, 4
      %v712 = vand.u32 %v710, 15
      %v713 = vsub.s32 0, %v712
      %v714 = vsel %vm708, %v713, %v712
      %vm715 = vcmp.lt.s32.totalorder %v707, 0
      %v716 = vsub.s32 0, %v707
      %v717 = vsel %vm715, %v716, %v707
      %v718 = vshrl.u32 %v717, 4
      %v719 = vand.u32 %v717, 15
      %v720 = vsub.s32 0, %v719
      %v721 = vsel %vm715, %v720, %v719
      %vm722 = vcmp.ne.s32.totalorder %v714, 0
      %vm723 = vcmp.ne.s32.totalorder %v721, 0
      %vm724 = vcmp.lt.s32.totalorder %v714, 0
      %vm725 = vcmp.lt.s32.totalorder %v721, 0
      %vm726 = vmand %vm724, %vm722
      %vm727 = vmand %vm725, %vm723
      %v728 = vadd.s32 %v714, 16
      %v729 = vadd.s32 %v721, 16
      %v730 = vsel %vm726, %v728, %v714
      %v731 = vsel %vm727, %v729, %v721
      %v732 = vadd.s32 %v730, 4294967294
      %v733 = vadd.s32 %v731, 4294967294
      %vm734 = vcmp.ge.s32.totalorder %v732, 0
      %vm735 = vcmp.ge.s32.totalorder %v733, 0
      %vm736 = vcmp.lt.s32.totalorder %v732, 16
      %vm737 = vcmp.lt.s32.totalorder %v733, 16
      %vm738 = vmand %vm734, %vm736
      %vm739 = vmand %vm735, %vm737
      %v740 = vsel %vm738, 1, 0
      %v741 = vsel %vm739, 1, 0
      %vm742 = vcmp.eq.s32.totalorder %v740, 1
      %vm743 = vcmp.eq.s32.totalorder %v741, 1
      %v744 = vsel %vm742, %v701, 0.0
      %v745 = vsel %vm743, %v693, 0.0
      %v746 = vsel %vm742, %v702, 0.0
      %v747 = vsel %vm743, %v694, 0.0
      %v748 = vadd.s32 %v730, 4294967295
      %v749 = vadd.s32 %v731, 4294967295
      %vm750 = vcmp.ge.s32.totalorder %v748, 0
      %vm751 = vcmp.ge.s32.totalorder %v749, 0
      %vm752 = vcmp.lt.s32.totalorder %v748, 16
      %vm753 = vcmp.lt.s32.totalorder %v749, 16
      %vm754 = vmand %vm750, %vm752
      %vm755 = vmand %vm751, %vm753
      %v756 = vsel %vm754, 1, 0
      %v757 = vsel %vm755, 1, 0
      %vm758 = vcmp.eq.s32.totalorder %v756, 1
      %vm759 = vcmp.eq.s32.totalorder %v757, 1
      %764 = vrot.lane.b32.xlu0 %v701, 127
      %v765 = vpop.permute.xlu0 %764
      %766 = vrot.lane.b32.xlu0 %v693, 127
      %v767 = vpop.permute.xlu0 %766
      %768 = vrot.lane.b32.xlu0 %v703, 127
      %v769 = vpop.permute.xlu0 %768
      %770 = vrot.lane.b32.xlu0 %v702, 127
      %v771 = vpop.permute.xlu0 %770
      %772 = vrot.lane.b32.xlu0 %v694, 127
      %v773 = vpop.permute.xlu0 %772
      %774 = vrot.lane.b32.xlu0 %v704, 127
      %v775 = vpop.permute.xlu0 %774
      %vm776 = vcmask 1039360
      %v777 = vsel %vm776, %v765, %v767
      %v778 = vsel %vm776, %v767, %v769
      %v779 = vsel %vm776, %v771, %v773
      %v780 = vsel %vm776, %v773, %v775
      %v785 = vsel %vm758, %v777, 0.0
      %v786 = vsel %vm759, %v778, 0.0
      %v787 = vsel %vm758, %v779, 0.0
      %v788 = vsel %vm759, %v780, 0.0
      %vm789 = vcmp.ge.s32.totalorder %v730, 0
      %vm790 = vcmp.ge.s32.totalorder %v731, 0
      %vm791 = vcmp.lt.s32.totalorder %v730, 16
      %vm792 = vcmp.lt.s32.totalorder %v731, 16
      %vm793 = vmand %vm789, %vm791
      %vm794 = vmand %vm790, %vm792
      %v795 = vsel %vm793, 1, 0
      %v796 = vsel %vm794, 1, 0
      %vm797 = vcmp.eq.s32.totalorder %v795, 1
      %vm798 = vcmp.eq.s32.totalorder %v796, 1
      %799 = vrot.lane.b32.xlu0 %v701, 126
      %v800 = vpop.permute.xlu0 %799
      %801 = vrot.lane.b32.xlu0 %v693, 126
      %v802 = vpop.permute.xlu0 %801
      %803 = vrot.lane.b32.xlu0 %v703, 126
      %v804 = vpop.permute.xlu0 %803
      %805 = vrot.lane.b32.xlu0 %v702, 126
      %v806 = vpop.permute.xlu0 %805
      %807 = vrot.lane.b32.xlu0 %v694, 126
      %v808 = vpop.permute.xlu0 %807
      %809 = vrot.lane.b32.xlu0 %v704, 126
      %v810 = vpop.permute.xlu0 %809
      %vm811 = vcmask 1031168
      %v812 = vsel %vm811, %v800, %v802
      %v813 = vsel %vm811, %v802, %v804
      %v814 = vsel %vm811, %v806, %v808
      %v815 = vsel %vm811, %v808, %v810
      %v820 = vsel %vm797, %v812, 0.0
      %v821 = vsel %vm798, %v813, 0.0
      %v822 = vsel %vm797, %v814, 0.0
      %v823 = vsel %vm798, %v815, 0.0
      %v824 = vadd.s32 %v730, 1
      %v825 = vadd.s32 %v731, 1
      %vm826 = vcmp.ge.s32.totalorder %v824, 0
      %vm827 = vcmp.ge.s32.totalorder %v825, 0
      %vm828 = vcmp.lt.s32.totalorder %v824, 16
      %vm829 = vcmp.lt.s32.totalorder %v825, 16
      %vm830 = vmand %vm826, %vm828
      %vm831 = vmand %vm827, %vm829
      %v832 = vsel %vm830, 1, 0
      %v833 = vsel %vm831, 1, 0
      %vm834 = vcmp.eq.s32.totalorder %v832, 1
      %vm835 = vcmp.eq.s32.totalorder %v833, 1
      %836 = vrot.lane.b32.xlu0 %v701, 125
      %v837 = vpop.permute.xlu0 %836
      %838 = vrot.lane.b32.xlu0 %v693, 125
      %v839 = vpop.permute.xlu0 %838
      %840 = vrot.lane.b32.xlu0 %v703, 125
      %v841 = vpop.permute.xlu0 %840
      %842 = vrot.lane.b32.xlu0 %v702, 125
      %v843 = vpop.permute.xlu0 %842
      %844 = vrot.lane.b32.xlu0 %v694, 125
      %v845 = vpop.permute.xlu0 %844
      %846 = vrot.lane.b32.xlu0 %v704, 125
      %v847 = vpop.permute.xlu0 %846
      %vm848 = vcmask 1022976
      %v849 = vsel %vm848, %v837, %v839
      %v850 = vsel %vm848, %v839, %v841
      %v851 = vsel %vm848, %v843, %v845
      %v852 = vsel %vm848, %v845, %v847
      %v857 = vsel %vm834, %v849, 0.0
      %v858 = vsel %vm835, %v850, 0.0
      %v859 = vsel %vm834, %v851, 0.0
      %v860 = vsel %vm835, %v852, 0.0
      %v861 = vadd.s32 %v730, 2
      %v862 = vadd.s32 %v731, 2
      %vm863 = vcmp.ge.s32.totalorder %v861, 0
      %vm864 = vcmp.ge.s32.totalorder %v862, 0
      %vm865 = vcmp.lt.s32.totalorder %v861, 16
      %vm866 = vcmp.lt.s32.totalorder %v862, 16
      %vm867 = vmand %vm863, %vm865
      %vm868 = vmand %vm864, %vm866
      %v869 = vsel %vm867, 1, 0
      %v870 = vsel %vm868, 1, 0
      %vm871 = vcmp.eq.s32.totalorder %v869, 1
      %vm872 = vcmp.eq.s32.totalorder %v870, 1
      %873 = vrot.lane.b32.xlu0 %v701, 124
      %v874 = vpop.permute.xlu0 %873
      %875 = vrot.lane.b32.xlu0 %v693, 124
      %v876 = vpop.permute.xlu0 %875
      %877 = vrot.lane.b32.xlu0 %v703, 124
      %v878 = vpop.permute.xlu0 %877
      %879 = vrot.lane.b32.xlu0 %v702, 124
      %v880 = vpop.permute.xlu0 %879
      %881 = vrot.lane.b32.xlu0 %v694, 124
      %v882 = vpop.permute.xlu0 %881
      %883 = vrot.lane.b32.xlu0 %v704, 124
      %v884 = vpop.permute.xlu0 %883
      %vm885 = vcmask 1014784
      %v886 = vsel %vm885, %v874, %v876
      %v887 = vsel %vm885, %v876, %v878
      %v888 = vsel %vm885, %v880, %v882
      %v889 = vsel %vm885, %v882, %v884
      %v894 = vsel %vm871, %v886, 0.0
      %v895 = vsel %vm872, %v887, 0.0
      %v896 = vsel %vm871, %v888, 0.0
      %v897 = vsel %vm872, %v889, 0.0
      %v898 = vld [vmem:[%s6] sm:$0xf]
      %v899 = vld [vmem:[%s6 + $0x4] sm:$0xf]
      %v900 = vpack.c.bf16 %v746, %v744
      %v901 = vpack.c.bf16 %v747, %v745
      %v902 = vpack.c.bf16 %v787, %v785
      %v903 = vpack.c.bf16 %v788, %v786
      %v904 = vpack.c.bf16 %v822, %v820
      %v905 = vpack.c.bf16 %v823, %v821
      %v906 = vpack.c.bf16 %v859, %v857
      %v907 = vpack.c.bf16 %v860, %v858
      %v908 = vpack.c.bf16 %v896, %v894
      %v909 = vpack.c.bf16 %v897, %v895
      %v910 = vld [vmem:[%s7] sm:$0xff]
      %v911 = vld [vmem:[%s7 + $0x8] sm:$0xff]
      %913 = vset.pattern.permute.xlu0 0
      %914 = vperm.xlu0 %913, %v910
      %v915 = vpop.permute.xlu0 %914
      %918 = vset.pattern.permute.xlu0 0
      %919 = vperm.xlu0 %918, %v911
      %v920 = vpop.permute.xlu0 %919
      %v924 = vunpack.c.l.b16 %v898
      %v925 = vunpack.c.l.b16 %v899
      %v926 = vpack.c.b16 %v925, %v924
      %v928 = vsel %vm586, %v926, 0
      %930 = vmatprep.subr.bf16.mxu0 %v901
      %931 = vmatpush1.bf16.msra.mxu0 %v900
      %932 = vmatprep.subr.bf16.mxu0 %v903
      %933 = vmatpush1.bf16.msra.mxu0 %v902
      %934 = vmatprep.subr.bf16.mxu0 %v905
      %935 = vmatpush1.bf16.msra.mxu0 %v904
      %936 = vmatprep.subr.bf16.mxu0 %v907
      %937 = vmatpush1.bf16.msra.mxu0 %v906
      %938 = vmatprep.subr.bf16.mxu0 %v909
      %939 = vmatpush1.bf16.msra.mxu0 %v908
      %940 = vmatprep.subr.bf16.mxu0 0
      %941 = vmatpush1.bf16.msra.mxu0 0
      %942 = vmatprep.subr.bf16.mxu0 0
      %943 = vmatpush1.bf16.msra.mxu0 0
      %944 = vmatprep.subr.bf16.mxu0 0
      %945 = vmatpush1.bf16.msra.mxu0 0
      %946 = vmatprep.subr.bf16.mxu0 0
      %947 = vmatpush1.bf16.msra.mxu0 0
      %948 = vmatprep.subr.bf16.mxu0 0
      %949 = vmatpush1.bf16.msra.mxu0 0
      %950 = vmatprep.subr.bf16.mxu0 0
      %951 = vmatpush1.bf16.msra.mxu0 0
      %952 = vmatprep.subr.bf16.mxu0 0
      %953 = vmatpush1.bf16.msra.mxu0 0
      %954 = vmatprep.subr.bf16.mxu0 0
      %955 = vmatpush1.bf16.msra.mxu0 0
      %956 = vmatprep.subr.bf16.mxu0 0
      %957 = vmatpush1.bf16.msra.mxu0 0
      %958 = vmatprep.subr.bf16.mxu0 0
      %959 = vmatpush1.bf16.msra.mxu0 0
      %960 = vmatprep.subr.bf16.mxu0 0
      %961 = vmatpush1.bf16.msra.mxu0 0
      %962 = vmatprep.mubr.bf16.mxu0 0
      %963 = vmatmul.mubr.bf16.gmra.mrb[0].mxu0 %v928
      %v964 = vpop.f32.mrb[0].mxu0
      %v965 = vadd.f32 %v915, %v964
      %v966 = vpop.f32.mrb[0].mxu0
      %v967 = vadd.f32 %v915, %v966
      %v968 = vpop.f32.mrb[0].mxu0
      %v969 = vadd.f32 %v920, %v968
      %v970 = vpop.f32.mrb[0].mxu0
      %v971 = vadd.f32 %v920, %v970
      %972 = vdwg.mxu0
      %v973 = vpack.c.bf16 %v969, %v965
      %v974 = vpack.c.bf16 %v971, %v967
      %v977 = vunpack.c.l.b16 %v973
      %v978 = vunpack.c.l.b16 %v974
      %v979 = vunpack.c.h.b16 %v973
      %v980 = vunpack.c.h.b16 %v974
      %v981 = vpack.c.b16 %v978, %v977
      %v982 = vpack.c.b16 %v980, %v979
      %985 = vst [vmem:[%s394] sm:$0xff] %v981
      %986 = vst [vmem:[%s394 + $0x8] sm:$0xff] %v982
      %v987 = vmul.f32 %v965, %v965
      %v988 = vmul.f32 %v967, %v967
      %v989 = vmul.f32 %v969, %v969
      %v990 = vmul.f32 %v971, %v971
      %v991 = vadd.f32 %v965, %v967
      %992 = vadd.xlane.f32.xlu0 %v991
      %v993 = vpop.xlane.xlu0 %992
      %v994 = vadd.f32 %v969, %v971
      %995 = vadd.xlane.f32.xlu0 %v994
      %v996 = vpop.xlane.xlu0 %995
      %v997 = vadd.f32 %v987, %v988
      %998 = vadd.xlane.f32.xlu0 %v997
      %v999 = vpop.xlane.xlu0 %998
      %v1000 = vadd.f32 %v989, %v990
      %1001 = vadd.xlane.f32.xlu0 %v1000
      %v1002 = vpop.xlane.xlu0 %1001
      %vm1003 = vcmask 7168
      %1004 = vst.msk [vmem:[%s404] sm:$0xff] %vm1003, %v993
      %1005 = vst.msk [vmem:[%s404 + $0x8] sm:$0xff] %vm1003, %v996
      %1006 = vst.msk [vmem:[%s404 + $0x10] sm:$0xff] %vm1003, %v999
      %1007 = vst.msk [vmem:[%s404 + $0x18] sm:$0xff] %vm1003, %v1002
      %p1008 = scmp.lt.s32.totalorder %s22, 1
      %s1009 = scalar_select %p1008, %s22, 1
      %s1010 = smul.addr %s1009, 4
      %s1011 = smul.addr %s1010, 4
      %s1012 = scalar_lea.vmem %s8, %s1011
      %p1013 = scmp.lt.s32.totalorder %s22, 1
      %s1014 = scalar_select %p1013, %s22, 1
      %s1015 = smul.addr %s1014, 2
      %s1016 = smul.addr %s1015, 4
      %s1017 = scalar_lea.vmem %s9, %s1016
      %p1018 = scmp.lt.s32.totalorder %s22, 1
      %s1019 = scalar_select %p1018, %s22, 1
      %s1020 = smul.addr %s1019, 4
      %s1021 = smul.addr %s1020, 8
      %s1022 = scalar_lea.vmem %s10, %s1021
      // Predicated region
      $region53: #{encoder_layer_grouped_forward.3} parent=51 // pred_check
        %p1023 = pneg %p218
      $region54: #{encoder_layer_grouped_forward.3} parent=51 // pred_check_branch
        %1025 = sbr.rel (%p1023) target = $region56
      $region55: #{encoder_layer_grouped_forward.3} parent=51 // pred_region
        _
      $region56: #{encoder_layer_grouped_forward.3} parent=51 // pred_fallthru
        _
      // Predicated region
      $region57: #{encoder_layer_grouped_forward.3} parent=51 // pred_check
        %p1026 = pneg %p244
      $region58: #{encoder_layer_grouped_forward.3} parent=51 // pred_check_branch
        %1028 = sbr.rel (%p1026) target = $region60
      $region59: #{encoder_layer_grouped_forward.3} parent=51 // pred_region
        _
      $region60: #{encoder_layer_grouped_forward.3} parent=51 // pred_fallthru
        _
      // Predicated region
      $region61: #{encoder_layer_grouped_forward.3} parent=51 // pred_check
        %p1029 = pneg %p270
      $region62: #{encoder_layer_grouped_forward.3} parent=51 // pred_check_branch
        %1031 = sbr.rel (%p1029) target = $region64
      $region63: #{encoder_layer_grouped_forward.3} parent=51 // pred_region
        _
      $region64: #{encoder_layer_grouped_forward.3} parent=51 // pred_fallthru
        _
    $region52: #{encoder_layer_grouped_forward.3} parent=5 // pred_fallthru
      _
    %p1032 = scmp.le.s32.totalorder 2, %s17
    // Predicated region
    $region65: #{encoder_layer_grouped_forward.3} parent=5 // pred_check
      %p1033 = pneg %p1032
    $region66: #{encoder_layer_grouped_forward.3} parent=5 // pred_check_branch
      %1035 = sbr.rel (%p1033) target = $region68
    $region67: #{encoder_layer_grouped_forward.3} parent=5 // pred_region
      %s1036 = ssub.s32 %s17, 2
      // Predicated region
      $region69: #{encoder_layer_grouped_forward.3} parent=67 // pred_check
        %p1037 = pneg %p224
      $region70: #{encoder_layer_grouped_forward.3} parent=67 // pred_check_branch
        %1039 = sbr.rel (%p1037) target = $region72
      $region71: #{encoder_layer_grouped_forward.3} parent=67 // pred_region
        %p1040 = scmp.lt.s32.totalorder %s23, 1
        %s1041 = scalar_select %p1040, %s23, 1
        %s1042 = smul.addr %s1041, 4
        %s1043 = smul.addr %s1042, 4
        %s1044 = scalar_lea.vmem %s8, %s1043
      $region72: #{encoder_layer_grouped_forward.3} parent=67 // pred_fallthru
        _
      // Predicated region
      $region73: #{encoder_layer_grouped_forward.3} parent=67 // pred_check
        %p1045 = pneg %p250
      $region74: #{encoder_layer_grouped_forward.3} parent=67 // pred_check_branch
        %1047 = sbr.rel (%p1045) target = $region76
      $region75: #{encoder_layer_grouped_forward.3} parent=67 // pred_region
        %p1048 = scmp.lt.s32.totalorder %s23, 1
        %s1049 = scalar_select %p1048, %s23, 1
        %s1050 = smul.addr %s1049, 2
        %s1051 = smul.addr %s1050, 4
        %s1052 = scalar_lea.vmem %s9, %s1051
      $region76: #{encoder_layer_grouped_forward.3} parent=67 // pred_fallthru
        _
      // Predicated region
      $region77: #{encoder_layer_grouped_forward.3} parent=67 // pred_check
        %p1053 = pneg %p276
      $region78: #{encoder_layer_grouped_forward.3} parent=67 // pred_check_branch
        %1055 = sbr.rel (%p1053) target = $region80
      $region79: #{encoder_layer_grouped_forward.3} parent=67 // pred_region
        %p1056 = scmp.lt.s32.totalorder %s23, 1
        %s1057 = scalar_select %p1056, %s23, 1
        %s1058 = smul.addr %s1057, 4
        %s1059 = smul.addr %s1058, 8
        %s1060 = scalar_lea.vmem %s10, %s1059
      $region80: #{encoder_layer_grouped_forward.3} parent=67 // pred_fallthru
        _
    $region68: #{encoder_layer_grouped_forward.3} parent=5 // pred_fallthru
      _
  $region6: #{encoder_layer_grouped_forward.3} parent=0 // loop_footer
    %s21 = sadd.s32 1, %s17
  $region7: #{encoder_layer_grouped_forward.3} parent=0 // loop_footer_branch
    %16 = sbr.rel target = $region3
  $region8: #{encoder_layer_grouped_forward.3} parent=0 // loop_exit
    _

</llo_original>
